<compile_context>
chip_gen: v7x
topology: tpu7x:2x2x1
jax: 0.10.0
libtpu: 0.0.40
codegen_flags: <defaults>
</compile_context>

<pallas_src>
import functools
import math

import jax
import jax.numpy as jnp
from jax import lax
from jax.experimental import pallas as pl
from jax.experimental.pallas import tpu as pltpu


def _cdiv(a, b):
    return -(-a // b)


def _full(shape):
    zeros = (0,) * len(shape)
    return pl.BlockSpec(shape, lambda i: zeros)


# ----------------------------------------------------------------------------
# The single fused kernel (whole forward, whole batch, one grid step).
# ----------------------------------------------------------------------------
def _fused_forward_kernel(
        patches_ref, audio_ref,
        w1_ref, b1_ref, w2_ref, b2_ref, w3_ref, b3_ref,
        wa_ref, wv_ref, benc_ref, whid_ref, bhid_ref, wout_ref, bout_ref,
        o_ref,
        h1_ref, h2_ref, v_ref,
        *, batch, ksize, stride, g1h, g1w, m2, out3_h, out3_w,
        c2, c3, hidden, actions):
    """Layout contract (built once by the wrapper / pack_params):

    patches_ref : (batch*r1, k*k*cin)  conv1 im2col, rows grouped by the
                  conv2-phase (py,px) of the conv1 output position and padded
                  to a (g1h, g1w) grid per phase; r1 = stride^2 * g1h * g1w.
    h1_ref      : (batch*r1, 16)  conv1 output in the same phase-grouped
                  layout -> every conv2 tap is one contiguous slice.
    h2_ref      : (batch*m2, 32)  conv2 output, row index oh2*g1w + ow2
                  (junk columns ow2 >= out2_w never read by conv3).
    v_ref       : (batch, out3_h*out3_w*64)  flattened conv3 output, (oh,ow,c).
    o_ref       : (batch, 128) lane-dense packed [softmax(actor) | critic | 0].
    """
    s = stride
    r1 = s * s * g1h * g1w

    # ---- conv1: ONE whole-batch MXU matmul, K = k*k*cin, bias+ReLU fused ----
    h1 = jnp.dot(patches_ref[...], w1_ref[...],
                 preferred_element_type=jnp.float32)
    h1_ref[...] = jnp.maximum(h1 + b1_ref[...], 0.0)

    # ---- conv2 + conv3, per image (tiny: batch * (9 + 9) small matmuls) ----
    for b in range(batch):
        base1 = b * r1

        # conv2: per-tap contiguous slices of the phase-grouped h1.
        acc2 = jnp.zeros((m2, c2), jnp.float32)
        for ky in range(ksize):
            for kx in range(ksize):
                p = (ky % s) * s + (kx % s)            # phase of this tap
                off = (ky // s) * g1w + (kx // s)      # offset inside phase
                start = base1 + p * (g1h * g1w) + off
                lhs = h1_ref[start:start + m2, :]      # (m2, 16)
                acc2 = acc2 + jnp.dot(lhs, w2_ref[ky * ksize + kx],
                                      preferred_element_type=jnp.float32)
        h2_ref[b * m2:(b + 1) * m2, :] = jnp.maximum(acc2 + b2_ref[...], 0.0)

        # conv3 (+ Flatten): 1x1 spatial output here -> 9 tiny row matmuls.
        for oh in range(out3_h):
            for ow in range(out3_w):
                acc3 = jnp.zeros((1, c3), jnp.float32)
                for ky in range(ksize):
                    for kx in range(ksize):
                        row = b * m2 + (oh * s + ky) * g1w + (ow * s + kx)
                        lhs = h2_ref[row:row + 1, :]   # (1, 32)
                        acc3 = acc3 + jnp.dot(lhs, w3_ref[ky * ksize + kx],
                                              preferred_element_type=jnp.float32)
                col = (oh * out3_w + ow) * c3
                v_ref[b:b + 1, col:col + c3] = jnp.maximum(acc3 + b3_ref[...],
                                                           0.0)

    # ---- fused heads: encoders (concat-free), actor/critic towers ----------
    audio = audio_ref[...]
    v = v_ref[...]
    feat = jnp.dot(audio, wa_ref[...], preferred_element_type=jnp.float32)
    feat = feat + jnp.dot(v, wv_ref[...], preferred_element_type=jnp.float32)
    feat = jnp.maximum(feat + benc_ref[...], 0.0)      # [audio_feat|video_feat]

    hid = jnp.dot(feat, whid_ref[...],
                  preferred_element_type=jnp.float32) + bhid_ref[...]
    hcol = lax.broadcasted_iota(jnp.int32, hid.shape, 1)
    hid = jnp.where(hcol < hidden, jnp.tanh(hid), jnp.maximum(hid, 0.0))

    z = jnp.dot(hid, wout_ref[...],
                preferred_element_type=jnp.float32) + bout_ref[...]
    ocol = lax.broadcasted_iota(jnp.int32, z.shape, 1)
    amask = ocol < actions
    zm = jnp.where(amask, z, -jnp.inf)                 # mask lane padding
    zmax = jnp.max(zm, axis=-1, keepdims=True)
    ez = jnp.exp(zm - zmax)
    denom = jnp.sum(ez, axis=-1, keepdims=True)
    probs = ez / denom                                 # exact softmax
    o_ref[...] = jnp.where(amask, probs, jnp.where(ocol == actions, z, 0.0))


# ----------------------------------------------------------------------------
# Wrapper-side conv1 im2col (one XLA fusion; rows phase-grouped for conv2).
# ----------------------------------------------------------------------------
def _conv1_phase_patches(video, *, ksize, stride, out_h, out_w, g_h, g_w):
    """NCHW video -> (batch*stride^2*g_h*g_w, k*k*cin) conv1 im2col.

    Row index (within an image) = (py*stride+px)*(g_h*g_w) + i*g_w + j for the
    conv1 output position (py+stride*i, px+stride*j); out-of-range positions
    are zero rows.  Window features are flattened in (ky, kx, cin) order.
    """
    b, c, _, _ = video.shape
    x = jnp.transpose(video, (0, 2, 3, 1)).astype(jnp.float32)        # NHWC
    taps = []
    for ky in range(ksize):
        for kx in range(ksize):
            taps.append(x[:, ky:ky + stride * (out_h - 1) + 1:stride,
                            kx:kx + stride * (out_w - 1) + 1:stride, :])
    pat = jnp.stack(taps, axis=3).reshape(b, out_h, out_w, ksize * ksize * c)
    pat = jnp.pad(pat, ((0, 0), (0, g_h * stride - out_h),
                        (0, g_w * stride - out_w), (0, 0)))
    pat = pat.reshape(b, g_h, stride, g_w, stride, ksize * ksize * c)
    pat = pat.transpose(0, 2, 4, 1, 3, 5)              # (b, py, px, i, j, K)
    return pat.reshape(b * stride * stride * g_h * g_w, ksize * ksize * c)


# ----------------------------------------------------------------------------
# Parameters: mirror the torch module, then pack/fuse once.
# ----------------------------------------------------------------------------
def init_params(key, cfg):
    c0, h0, w0 = cfg["state_dim"]
    s_dim = cfg["sound_dim"][0]
    a_dim = cfg["action_dim"]
    k = cfg["kernel_size"]
    st = cfg["stride"]
    hid = cfg["hidden_dim"]

    chans = [c0, 16, 32, 64]
    h, w = h0, w0
    for _ in range(3):
        h = (h - k) // st + 1
        w = (w - k) // st + 1
    conv_flat = chans[-1] * h * w                      # == get_conv_output(...)

    keys = jax.random.split(key, 9)

    def linear(kk, fan_in, fan_out):
        kw_, kb_ = jax.random.split(kk)
        bound = 1.0 / math.sqrt(fan_in)
        return (jax.random.uniform(kw_, (fan_in, fan_out), jnp.float32, -bound, bound),
                jax.random.uniform(kb_, (fan_out,), jnp.float32, -bound, bound))

    def conv(kk, cin, cout):
        kw_, kb_ = jax.random.split(kk)
        bound = 1.0 / math.sqrt(cin * k * k)
        return (jax.random.uniform(kw_, (k * k, cin, cout), jnp.float32, -bound, bound),
                jax.random.uniform(kb_, (cout,), jnp.float32, -bound, bound))

    p = {}
    p["audio_w"], p["audio_b"] = linear(keys[0], s_dim, hid)
    p["video_w"], p["video_b"] = linear(keys[1], conv_flat, hid)
    p["actor_h_w"], p["actor_h_b"] = linear(keys[2], 2 * hid, hid)
    p["actor_o_w"], p["actor_o_b"] = linear(keys[3], hid, a_dim)
    p["critic_h_w"], p["critic_h_b"] = linear(keys[4], 2 * hid, hid)
    p["critic_o_w"], p["critic_o_b"] = linear(keys[5], hid, 1)
    for i, (cin, cout) in enumerate(zip(chans[:-1], chans[1:])):
        p[f"conv{i + 1}_w"], p[f"conv{i + 1}_b"] = conv(keys[6 + i], cin, cout)
    return p


def pack_params(raw, cfg):
    """Fold scales, fuse heads, pad to lane-friendly shapes (done once)."""
    c0, h0, w0 = cfg["state_dim"]
    s_dim = cfg["sound_dim"][0]
    a_dim = cfg["action_dim"]
    k = cfg["kernel_size"]
    st = cfg["stride"]
    hid = cfg["hidden_dim"]

    h, w = h0, w0
    for _ in range(3):
        h = (h - k) // st + 1
        w = (w - k) // st + 1
    out3_h, out3_w = h, w
    c3 = raw["conv3_b"].shape[0]
    conv_flat = c3 * out3_h * out3_w

    packed = {}
    # conv1 as one K = k*k*cin matmul; video/255 folded into its weights.
    packed["w1"] = (raw["conv1_w"] / 255.0).reshape(k * k * c0, raw["conv1_b"].shape[0])
    packed["b1"] = raw["conv1_b"].reshape(1, -1)
    packed["w2"] = raw["conv2_w"]                      # (k*k, 16, 32) per-tap
    packed["b2"] = raw["conv2_b"].reshape(1, -1)
    packed["w3"] = raw["conv3_w"]                      # (k*k, 32, 64) per-tap
    packed["b3"] = raw["conv3_b"].reshape(1, -1)

    # Encoders: feat = relu(audio@wa + vflat@wv + benc) = [audio_feat|video_feat]
    # exactly like torch.cat((audio_feat, video_feat), 1), with no in-kernel concat.
    wa = jnp.zeros((s_dim, 2 * hid), jnp.float32).at[:, :hid].set(raw["audio_w"])
    # torch Flatten() order is (c, oh, ow); the kernel emits (oh, ow, c) — permute
    # the video_feature weight rows accordingly (identity for a 1x1 conv output).
    wv_rows = raw["video_w"].reshape(c3, out3_h, out3_w, hid)
    wv_rows = jnp.transpose(wv_rows, (1, 2, 0, 3)).reshape(conv_flat, hid)
    wv = jnp.zeros((conv_flat, 2 * hid), jnp.float32).at[:, hid:].set(wv_rows)
    benc = jnp.concatenate([raw["audio_b"], raw["video_b"]]).reshape(1, -1)

    # actor-hidden (tanh) and critic-hidden (relu) towers share one matmul.
    whid = jnp.concatenate([raw["actor_h_w"], raw["critic_h_w"]], axis=1)
    bhid = jnp.concatenate([raw["actor_h_b"], raw["critic_h_b"]]).reshape(1, -1)

    # Fused, lane-padded (multiple of 128) output head: cols [0,a_dim) actor
    # logits, col a_dim the critic value, remaining lanes zero padding.
    n_out = _cdiv(a_dim + 1, 128) * 128
    wout = jnp.zeros((2 * hid, n_out), jnp.float32)
    wout = wout.at[:hid, :a_dim].set(raw["actor_o_w"])
    wout = wout.at[hid:, a_dim:a_dim + 1].set(raw["critic_o_w"])
    bout = jnp.zeros((1, n_out), jnp.float32)
    bout = bout.at[0, :a_dim].set(raw["actor_o_b"])
    bout = bout.at[0, a_dim].set(raw["critic_o_b"][0])

    packed.update(wa=wa, wv=wv, benc=benc, whid=whid, bhid=bhid,
                  wout=wout, bout=bout)
    return packed


# ----------------------------------------------------------------------------
# Forward (matches BimodalActorCritic.forward).
# ----------------------------------------------------------------------------
def build_forward(cfg):
    c0, h0, w0 = cfg["state_dim"]
    a_dim = cfg["action_dim"]
    k = cfg["kernel_size"]
    st = cfg["stride"]
    hid = cfg["hidden_dim"]
    chans = (c0, 16, 32, 64)

    out1_h, out1_w = (h0 - k) // st + 1, (w0 - k) // st + 1
    out2_h, out2_w = (out1_h - k) // st + 1, (out1_w - k) // st + 1
    out3_h, out3_w = (out2_h - k) // st + 1, (out2_w - k) // st + 1
    g1h, g1w = _cdiv(out1_h, st), _cdiv(out1_w, st)
    r1 = st * st * g1h * g1w
    m2 = (out2_h - 1) * g1w + out2_w
    conv_flat = chans[3] * out3_h * out3_w
    n_out = _cdiv(a_dim + 1, 128) * 128

    def forward(packed, audio, video):
        batch = audio.shape[0]
        # Single wrapper-side relayout (absorbs NCHW->NHWC + /im2col); the /255
        # scale lives in packed["w1"].
        patches = _conv1_phase_patches(video, ksize=k, stride=st,
                                       out_h=out1_h, out_w=out1_w,
                                       g_h=g1h, g_w=g1w)
        kern = functools.partial(
            _fused_forward_kernel, batch=batch, ksize=k, stride=st,
            g1h=g1h, g1w=g1w, m2=m2, out3_h=out3_h, out3_w=out3_w,
            c2=chans[2], c3=chans[3], hidden=hid, actions=a_dim)

        inputs = (patches, audio.astype(jnp.float32),
                  packed["w1"], packed["b1"], packed["w2"], packed["b2"],
                  packed["w3"], packed["b3"], packed["wa"], packed["wv"],
                  packed["benc"], packed["whid"], packed["bhid"],
                  packed["wout"], packed["bout"])

        out = pl.pallas_call(
            kern,
            out_shape=jax.ShapeDtypeStruct((batch, n_out), jnp.float32),
            grid=(1,),                                 # whole forward, one step
            in_specs=[_full(a.shape) for a in inputs],
            out_specs=_full((batch, n_out)),
            scratch_shapes=[
                pltpu.VMEM((batch * r1, chans[1]), jnp.float32),   # h1
                pltpu.VMEM((batch * m2, chans[2]), jnp.float32),   # h2
                pltpu.VMEM((batch, conv_flat), jnp.float32),       # vflat
            ],
            compiler_params=pltpu.CompilerParams(
                dimension_semantics=("arbitrary",),
                vmem_limit_bytes=32 * 1024 * 1024,
            ),
        )(*inputs)
        actor_probs = out[:, :a_dim]                   # softmax(actor logits)
        critic_value = out[:, a_dim:a_dim + 1]         # (N, 1)
        return actor_probs, critic_value

    return jax.jit(forward)


# ----------------------------------------------------------------------------
# Pure-JAX reference (mirrors the PyTorch module) for in-script validation.
# ----------------------------------------------------------------------------
def reference_forward(raw, cfg, audio, video):
    k = cfg["kernel_size"]
    st = cfg["stride"]

    def conv(x, w, b):
        w_oihw = w.reshape(k, k, w.shape[1], w.shape[2]).transpose(3, 2, 0, 1)
        y = lax.conv_general_dilated(x, w_oihw, (st, st), "VALID",
                                     dimension_numbers=("NCHW", "OIHW", "NCHW"))
        return jnp.maximum(y + b.reshape(1, -1, 1, 1), 0.0)

    x = video.astype(jnp.float32) / 255.0
    x = conv(x, raw["conv1_w"], raw["conv1_b"])
    x = conv(x, raw["conv2_w"], raw["conv2_b"])
    x = conv(x, raw["conv3_w"], raw["conv3_b"])
    vflat = x.reshape(x.shape[0], -1)                  # torch Flatten (c,oh,ow)
    a_feat = jnp.maximum(audio @ raw["audio_w"] + raw["audio_b"], 0.0)
    v_feat = jnp.maximum(vflat @ raw["video_w"] + raw["video_b"], 0.0)
    feat = jnp.concatenate([a_feat, v_feat], axis=1)
    actor_h = jnp.tanh(feat @ raw["actor_h_w"] + raw["actor_h_b"])
    probs = jax.nn.softmax(actor_h @ raw["actor_o_w"] + raw["actor_o_b"], -1)
    critic_h = jnp.maximum(feat @ raw["critic_h_w"] + raw["critic_h_b"], 0.0)
    value = critic_h @ raw["critic_o_w"] + raw["critic_o_b"]
    return probs, value


# ----------------------------------------------------------------------------
if __name__ == "__main__":
    cfg = dict(state_dim=(4, 16, 16), sound_dim=(8,), action_dim=6,
               kernel_size=3, stride=2, hidden_dim=32)

    key = jax.random.PRNGKey(0)
    kp, ka, kv = jax.random.split(key, 3)
    raw = init_params(kp, cfg)
    packed = pack_params(raw, cfg)

    batch = 2
    audio = jax.random.normal(ka, (batch, cfg["sound_dim"][0]), jnp.float32)
    video = jax.random.uniform(kv, (batch,) + cfg["state_dim"], jnp.float32,
                               minval=0.0, maxval=255.0)     # NCHW like torch

    forward = build_forward(cfg)
    actor_probs, critic_value = forward(packed, audio, video)
    jax.block_until_ready((actor_probs, critic_value))

    # Shape / sanity checks.
    assert actor_probs.shape == (batch, cfg["action_dim"])
    assert critic_value.shape == (batch, 1)
    assert bool(jnp.all(jnp.isfinite(actor_probs)))
    assert bool(jnp.all(jnp.isfinite(critic_value)))
    assert bool(jnp.all(jnp.abs(jnp.sum(actor_probs, axis=-1) - 1.0) < 1e-3))

    # Numerical parity with a pure-JAX reference of the PyTorch module.
    ref_probs, ref_value = reference_forward(raw, cfg, audio, video)
    assert bool(jnp.allclose(actor_probs, ref_probs, rtol=5e-3, atol=5e-3))
    assert bool(jnp.allclose(critic_value, ref_value, rtol=5e-3, atol=5e-3))

    print("KERNEL_OK")
</pallas_src>

<mosaic_0001>
module attributes {stable_mosaic.version = 11 : i64} {
  func.func @_fused_forward_kernel(%arg0: i32, %arg1: memref<128x36xf32, #tpu.memory_space<vmem>>, %arg2: memref<2x8xf32, #tpu.memory_space<vmem>>, %arg3: memref<36x16xf32, #tpu.memory_space<vmem>>, %arg4: memref<1x16xf32, #tpu.memory_space<vmem>>, %arg5: memref<9x16x32xf32, #tpu.memory_space<vmem>>, %arg6: memref<1x32xf32, #tpu.memory_space<vmem>>, %arg7: memref<9x32x64xf32, #tpu.memory_space<vmem>>, %arg8: memref<1x64xf32, #tpu.memory_space<vmem>>, %arg9: memref<8x64xf32, #tpu.memory_space<vmem>>, %arg10: memref<64x64xf32, #tpu.memory_space<vmem>>, %arg11: memref<1x64xf32, #tpu.memory_space<vmem>>, %arg12: memref<64x64xf32, #tpu.memory_space<vmem>>, %arg13: memref<1x64xf32, #tpu.memory_space<vmem>>, %arg14: memref<64x128xf32, #tpu.memory_space<vmem>>, %arg15: memref<1x128xf32, #tpu.memory_space<vmem>>, %arg16: memref<2x128xf32, #tpu.memory_space<vmem>>, %arg17: memref<128x16xf32, #tpu.memory_space<vmem>>, %arg18: memref<22x32xf32, #tpu.memory_space<vmem>>, %arg19: memref<2x64xf32, #tpu.memory_space<vmem>>) attributes {dimension_semantics = [#tpu.dimension_semantics<arbitrary>], iteration_bounds = array<i64: 1>, scalar_prefetch = 0 : i64, scratch_operands = 3 : i64, tpu.core_type = #tpu.core_type<tc>, window_params = [{pipeline_mode = #tpu.pipeline_mode<synchronous>, transform_indices = @transform_0, window_bounds = array<i64: 128, 36>}, {pipeline_mode = #tpu.pipeline_mode<synchronous>, transform_indices = @transform_1, window_bounds = array<i64: 2, 8>}, {pipeline_mode = #tpu.pipeline_mode<synchronous>, transform_indices = @transform_2, window_bounds = array<i64: 36, 16>}, {pipeline_mode = #tpu.pipeline_mode<synchronous>, transform_indices = @transform_3, window_bounds = array<i64: 1, 16>}, {pipeline_mode = #tpu.pipeline_mode<synchronous>, transform_indices = @transform_4, window_bounds = array<i64: 9, 16, 32>}, {pipeline_mode = #tpu.pipeline_mode<synchronous>, transform_indices = @transform_5, window_bounds = array<i64: 1, 32>}, {pipeline_mode = #tpu.pipeline_mode<synchronous>, transform_indices = @transform_6, window_bounds = array<i64: 9, 32, 64>}, {pipeline_mode = #tpu.pipeline_mode<synchronous>, transform_indices = @transform_7, window_bounds = array<i64: 1, 64>}, {pipeline_mode = #tpu.pipeline_mode<synchronous>, transform_indices = @transform_8, window_bounds = array<i64: 8, 64>}, {pipeline_mode = #tpu.pipeline_mode<synchronous>, transform_indices = @transform_9, window_bounds = array<i64: 64, 64>}, {pipeline_mode = #tpu.pipeline_mode<synchronous>, transform_indices = @transform_10, window_bounds = array<i64: 1, 64>}, {pipeline_mode = #tpu.pipeline_mode<synchronous>, transform_indices = @transform_11, window_bounds = array<i64: 64, 64>}, {pipeline_mode = #tpu.pipeline_mode<synchronous>, transform_indices = @transform_12, window_bounds = array<i64: 1, 64>}, {pipeline_mode = #tpu.pipeline_mode<synchronous>, transform_indices = @transform_13, window_bounds = array<i64: 64, 128>}, {pipeline_mode = #tpu.pipeline_mode<synchronous>, transform_indices = @transform_14, window_bounds = array<i64: 1, 128>}, {pipeline_mode = #tpu.pipeline_mode<synchronous>, transform_indices = @transform_15, window_bounds = array<i64: 2, 128>}]} {
    %c0 = arith.constant 0 : index
    %c0_0 = arith.constant 0 : index
    %0 = vector.load %arg1[%c0, %c0_0] : memref<128x36xf32, #tpu.memory_space<vmem>>, vector<128x36xf32>
    %c0_1 = arith.constant 0 : index
    %c0_2 = arith.constant 0 : index
    %1 = vector.load %arg3[%c0_1, %c0_2] : memref<36x16xf32, #tpu.memory_space<vmem>>, vector<36x16xf32>
    %cst = arith.constant dense<0.000000e+00> : vector<128x16xf32>
    %2 = tpu.matmul %0, %1, %cst {dimension_numbers = #tpu.dot_dimension_numbers<[1], [0], [0], [1], [0, 0, 1, 1], [], []>} : vector<128x36xf32>, vector<36x16xf32>, vector<128x16xf32> -> vector<128x16xf32>
    %c0_3 = arith.constant 0 : index
    %c0_4 = arith.constant 0 : index
    %3 = vector.load %arg4[%c0_3, %c0_4] : memref<1x16xf32, #tpu.memory_space<vmem>>, vector<1x16xf32>
    %4 = vector.broadcast %3 : vector<1x16xf32> to vector<128x16xf32>
    %5 = arith.addf %2, %4 : vector<128x16xf32>
    %cst_5 = arith.constant 0.000000e+00 : f32
    %6 = vector.broadcast %cst_5 : f32 to vector<128x16xf32>
    %7 = arith.maximumf %5, %6 : vector<128x16xf32>
    %c0_6 = arith.constant 0 : index
    %c0_7 = arith.constant 0 : index
    %8 = vector.load %arg17[%c0_6, %c0_7] : memref<128x16xf32, #tpu.memory_space<vmem>>, vector<128x16xf32>
    tpu.vector_store %arg17[%c0_6, %c0_7], %7 {strides = array<i32>} : memref<128x16xf32, #tpu.memory_space<vmem>>, vector<128x16xf32>,
    %cst_8 = arith.constant 0.000000e+00 : f32
    %9 = vector.broadcast %cst_8 : f32 to vector<11x32xf32>
    %c0_9 = arith.constant 0 : index
    %c0_10 = arith.constant 0 : index
    %10 = vector.load %arg17[%c0_9, %c0_10] : memref<128x16xf32, #tpu.memory_space<vmem>>, vector<11x16xf32>
    %c0_11 = arith.constant 0 : index
    %c0_12 = arith.constant 0 : index
    %c0_13 = arith.constant 0 : index
    %11 = vector.load %arg5[%c0_11, %c0_12, %c0_13] : memref<9x16x32xf32, #tpu.memory_space<vmem>>, vector<1x16x32xf32>
    %12 = vector.shape_cast %11 : vector<1x16x32xf32> to vector<16x32xf32>
    %cst_14 = arith.constant dense<0.000000e+00> : vector<11x32xf32>
    %13 = tpu.matmul %10, %12, %cst_14 {dimension_numbers = #tpu.dot_dimension_numbers<[1], [0], [0], [1], [0, 0, 1, 1], [], []>} : vector<11x16xf32>, vector<16x32xf32>, vector<11x32xf32> -> vector<11x32xf32>
    %14 = arith.addf %9, %13 : vector<11x32xf32>
    %c16 = arith.constant 16 : index
    %c0_15 = arith.constant 0 : index
    %15 = vector.load %arg17[%c16, %c0_15] : memref<128x16xf32, #tpu.memory_space<vmem>>, vector<11x16xf32>
    %c1 = arith.constant 1 : index
    %c0_16 = arith.constant 0 : index
    %c0_17 = arith.constant 0 : index
    %16 = vector.load %arg5[%c1, %c0_16, %c0_17] : memref<9x16x32xf32, #tpu.memory_space<vmem>>, vector<1x16x32xf32>
    %17 = vector.shape_cast %16 : vector<1x16x32xf32> to vector<16x32xf32>
    %cst_18 = arith.constant dense<0.000000e+00> : vector<11x32xf32>
    %18 = tpu.matmul %15, %17, %cst_18 {dimension_numbers = #tpu.dot_dimension_numbers<[1], [0], [0], [1], [0, 0, 1, 1], [], []>} : vector<11x16xf32>, vector<16x32xf32>, vector<11x32xf32> -> vector<11x32xf32>
    %19 = arith.addf %14, %18 : vector<11x32xf32>
    %c1_19 = arith.constant 1 : index
    %c0_20 = arith.constant 0 : index
    %20 = vector.load %arg17[%c1_19, %c0_20] : memref<128x16xf32, #tpu.memory_space<vmem>>, vector<11x16xf32>
    %c2 = arith.constant 2 : index
    %c0_21 = arith.constant 0 : index
    %c0_22 = arith.constant 0 : index
    %21 = vector.load %arg5[%c2, %c0_21, %c0_22] : memref<9x16x32xf32, #tpu.memory_space<vmem>>, vector<1x16x32xf32>
    %22 = vector.shape_cast %21 : vector<1x16x32xf32> to vector<16x32xf32>
    %cst_23 = arith.constant dense<0.000000e+00> : vector<11x32xf32>
    %23 = tpu.matmul %20, %22, %cst_23 {dimension_numbers = #tpu.dot_dimension_numbers<[1], [0], [0], [1], [0, 0, 1, 1], [], []>} : vector<11x16xf32>, vector<16x32xf32>, vector<11x32xf32> -> vector<11x32xf32>
    %24 = arith.addf %19, %23 : vector<11x32xf32>
    %c32 = arith.constant 32 : index
    %c0_24 = arith.constant 0 : index
    %25 = vector.load %arg17[%c32, %c0_24] : memref<128x16xf32, #tpu.memory_space<vmem>>, vector<11x16xf32>
    %c3 = arith.constant 3 : index
    %c0_25 = arith.constant 0 : index
    %c0_26 = arith.constant 0 : index
    %26 = vector.load %arg5[%c3, %c0_25, %c0_26] : memref<9x16x32xf32, #tpu.memory_space<vmem>>, vector<1x16x32xf32>
    %27 = vector.shape_cast %26 : vector<1x16x32xf32> to vector<16x32xf32>
    %cst_27 = arith.constant dense<0.000000e+00> : vector<11x32xf32>
    %28 = tpu.matmul %25, %27, %cst_27 {dimension_numbers = #tpu.dot_dimension_numbers<[1], [0], [0], [1], [0, 0, 1, 1], [], []>} : vector<11x16xf32>, vector<16x32xf32>, vector<11x32xf32> -> vector<11x32xf32>
    %29 = arith.addf %24, %28 : vector<11x32xf32>
    %c48 = arith.constant 48 : index
    %c0_28 = arith.constant 0 : index
    %30 = vector.load %arg17[%c48, %c0_28] : memref<128x16xf32, #tpu.memory_space<vmem>>, vector<11x16xf32>
    %c4 = arith.constant 4 : index
    %c0_29 = arith.constant 0 : index
    %c0_30 = arith.constant 0 : index
    %31 = vector.load %arg5[%c4, %c0_29, %c0_30] : memref<9x16x32xf32, #tpu.memory_space<vmem>>, vector<1x16x32xf32>
    %32 = vector.shape_cast %31 : vector<1x16x32xf32> to vector<16x32xf32>
    %cst_31 = arith.constant dense<0.000000e+00> : vector<11x32xf32>
    %33 = tpu.matmul %30, %32, %cst_31 {dimension_numbers = #tpu.dot_dimension_numbers<[1], [0], [0], [1], [0, 0, 1, 1], [], []>} : vector<11x16xf32>, vector<16x32xf32>, vector<11x32xf32> -> vector<11x32xf32>
    %34 = arith.addf %29, %33 : vector<11x32xf32>
    %c33 = arith.constant 33 : index
    %c0_32 = arith.constant 0 : index
    %35 = vector.load %arg17[%c33, %c0_32] : memref<128x16xf32, #tpu.memory_space<vmem>>, vector<11x16xf32>
    %c5 = arith.constant 5 : index
    %c0_33 = arith.constant 0 : index
    %c0_34 = arith.constant 0 : index
    %36 = vector.load %arg5[%c5, %c0_33, %c0_34] : memref<9x16x32xf32, #tpu.memory_space<vmem>>, vector<1x16x32xf32>
    %37 = vector.shape_cast %36 : vector<1x16x32xf32> to vector<16x32xf32>
    %cst_35 = arith.constant dense<0.000000e+00> : vector<11x32xf32>
    %38 = tpu.matmul %35, %37, %cst_35 {dimension_numbers = #tpu.dot_dimension_numbers<[1], [0], [0], [1], [0, 0, 1, 1], [], []>} : vector<11x16xf32>, vector<16x32xf32>, vector<11x32xf32> -> vector<11x32xf32>
    %39 = arith.addf %34, %38 : vector<11x32xf32>
    %c4_36 = arith.constant 4 : index
    %c0_37 = arith.constant 0 : index
    %40 = vector.load %arg17[%c4_36, %c0_37] : memref<128x16xf32, #tpu.memory_space<vmem>>, vector<11x16xf32>
    %c6 = arith.constant 6 : index
    %c0_38 = arith.constant 0 : index
    %c0_39 = arith.constant 0 : index
    %41 = vector.load %arg5[%c6, %c0_38, %c0_39] : memref<9x16x32xf32, #tpu.memory_space<vmem>>, vector<1x16x32xf32>
    %42 = vector.shape_cast %41 : vector<1x16x32xf32> to vector<16x32xf32>
    %cst_40 = arith.constant dense<0.000000e+00> : vector<11x32xf32>
    %43 = tpu.matmul %40, %42, %cst_40 {dimension_numbers = #tpu.dot_dimension_numbers<[1], [0], [0], [1], [0, 0, 1, 1], [], []>} : vector<11x16xf32>, vector<16x32xf32>, vector<11x32xf32> -> vector<11x32xf32>
    %44 = arith.addf %39, %43 : vector<11x32xf32>
    %c20 = arith.constant 20 : index
    %c0_41 = arith.constant 0 : index
    %45 = vector.load %arg17[%c20, %c0_41] : memref<128x16xf32, #tpu.memory_space<vmem>>, vector<11x16xf32>
    %c7 = arith.constant 7 : index
    %c0_42 = arith.constant 0 : index
    %c0_43 = arith.constant 0 : index
    %46 = vector.load %arg5[%c7, %c0_42, %c0_43] : memref<9x16x32xf32, #tpu.memory_space<vmem>>, vector<1x16x32xf32>
    %47 = vector.shape_cast %46 : vector<1x16x32xf32> to vector<16x32xf32>
    %cst_44 = arith.constant dense<0.000000e+00> : vector<11x32xf32>
    %48 = tpu.matmul %45, %47, %cst_44 {dimension_numbers = #tpu.dot_dimension_numbers<[1], [0], [0], [1], [0, 0, 1, 1], [], []>} : vector<11x16xf32>, vector<16x32xf32>, vector<11x32xf32> -> vector<11x32xf32>
    %49 = arith.addf %44, %48 : vector<11x32xf32>
    %c5_45 = arith.constant 5 : index
    %c0_46 = arith.constant 0 : index
    %50 = vector.load %arg17[%c5_45, %c0_46] : memref<128x16xf32, #tpu.memory_space<vmem>>, vector<11x16xf32>
    %c8 = arith.constant 8 : index
    %c0_47 = arith.constant 0 : index
    %c0_48 = arith.constant 0 : index
    %51 = vector.load %arg5[%c8, %c0_47, %c0_48] : memref<9x16x32xf32, #tpu.memory_space<vmem>>, vector<1x16x32xf32>
    %52 = vector.shape_cast %51 : vector<1x16x32xf32> to vector<16x32xf32>
    %cst_49 = arith.constant dense<0.000000e+00> : vector<11x32xf32>
    %53 = tpu.matmul %50, %52, %cst_49 {dimension_numbers = #tpu.dot_dimension_numbers<[1], [0], [0], [1], [0, 0, 1, 1], [], []>} : vector<11x16xf32>, vector<16x32xf32>, vector<11x32xf32> -> vector<11x32xf32>
    %54 = arith.addf %49, %53 : vector<11x32xf32>
    %c0_50 = arith.constant 0 : index
    %c0_51 = arith.constant 0 : index
    %55 = vector.load %arg6[%c0_50, %c0_51] : memref<1x32xf32, #tpu.memory_space<vmem>>, vector<1x32xf32>
    %56 = vector.broadcast %55 : vector<1x32xf32> to vector<11x32xf32>
    %57 = arith.addf %54, %56 : vector<11x32xf32>
    %cst_52 = arith.constant 0.000000e+00 : f32
    %58 = vector.broadcast %cst_52 : f32 to vector<11x32xf32>
    %59 = arith.maximumf %57, %58 : vector<11x32xf32>
    %c0_53 = arith.constant 0 : index
    %c0_54 = arith.constant 0 : index
    %60 = vector.load %arg18[%c0_53, %c0_54] : memref<22x32xf32, #tpu.memory_space<vmem>>, vector<11x32xf32>
    tpu.vector_store %arg18[%c0_53, %c0_54], %59 {strides = array<i32>} : memref<22x32xf32, #tpu.memory_space<vmem>>, vector<11x32xf32>,
    %cst_55 = arith.constant 0.000000e+00 : f32
    %61 = vector.broadcast %cst_55 : f32 to vector<1x64xf32>
    %c0_56 = arith.constant 0 : index
    %c0_57 = arith.constant 0 : index
    %62 = vector.load %arg18[%c0_56, %c0_57] : memref<22x32xf32, #tpu.memory_space<vmem>>, vector<1x32xf32>
    %c0_58 = arith.constant 0 : index
    %c0_59 = arith.constant 0 : index
    %c0_60 = arith.constant 0 : index
    %63 = vector.load %arg7[%c0_58, %c0_59, %c0_60] : memref<9x32x64xf32, #tpu.memory_space<vmem>>, vector<1x32x64xf32>
    %64 = vector.shape_cast %63 : vector<1x32x64xf32> to vector<32x64xf32>
    %cst_61 = arith.constant dense<0.000000e+00> : vector<1x64xf32>
    %65 = tpu.matmul %62, %64, %cst_61 {dimension_numbers = #tpu.dot_dimension_numbers<[1], [0], [0], [1], [0, 0, 1, 1], [], []>} : vector<1x32xf32>, vector<32x64xf32>, vector<1x64xf32> -> vector<1x64xf32>
    %66 = arith.addf %61, %65 : vector<1x64xf32>
    %c1_62 = arith.constant 1 : index
    %c0_63 = arith.constant 0 : index
    %67 = vector.load %arg18[%c1_62, %c0_63] : memref<22x32xf32, #tpu.memory_space<vmem>>, vector<1x32xf32>
    %c1_64 = arith.constant 1 : index
    %c0_65 = arith.constant 0 : index
    %c0_66 = arith.constant 0 : index
    %68 = vector.load %arg7[%c1_64, %c0_65, %c0_66] : memref<9x32x64xf32, #tpu.memory_space<vmem>>, vector<1x32x64xf32>
    %69 = vector.shape_cast %68 : vector<1x32x64xf32> to vector<32x64xf32>
    %cst_67 = arith.constant dense<0.000000e+00> : vector<1x64xf32>
    %70 = tpu.matmul %67, %69, %cst_67 {dimension_numbers = #tpu.dot_dimension_numbers<[1], [0], [0], [1], [0, 0, 1, 1], [], []>} : vector<1x32xf32>, vector<32x64xf32>, vector<1x64xf32> -> vector<1x64xf32>
    %71 = arith.addf %66, %70 : vector<1x64xf32>
    %c2_68 = arith.constant 2 : index
    %c0_69 = arith.constant 0 : index
    %72 = vector.load %arg18[%c2_68, %c0_69] : memref<22x32xf32, #tpu.memory_space<vmem>>, vector<1x32xf32>
    %c2_70 = arith.constant 2 : index
    %c0_71 = arith.constant 0 : index
    %c0_72 = arith.constant 0 : index
    %73 = vector.load %arg7[%c2_70, %c0_71, %c0_72] : memref<9x32x64xf32, #tpu.memory_space<vmem>>, vector<1x32x64xf32>
    %74 = vector.shape_cast %73 : vector<1x32x64xf32> to vector<32x64xf32>
    %cst_73 = arith.constant dense<0.000000e+00> : vector<1x64xf32>
    %75 = tpu.matmul %72, %74, %cst_73 {dimension_numbers = #tpu.dot_dimension_numbers<[1], [0], [0], [1], [0, 0, 1, 1], [], []>} : vector<1x32xf32>, vector<32x64xf32>, vector<1x64xf32> -> vector<1x64xf32>
    %76 = arith.addf %71, %75 : vector<1x64xf32>
    %c4_74 = arith.constant 4 : index
    %c0_75 = arith.constant 0 : index
    %77 = vector.load %arg18[%c4_74, %c0_75] : memref<22x32xf32, #tpu.memory_space<vmem>>, vector<1x32xf32>
    %c3_76 = arith.constant 3 : index
    %c0_77 = arith.constant 0 : index
    %c0_78 = arith.constant 0 : index
    %78 = vector.load %arg7[%c3_76, %c0_77, %c0_78] : memref<9x32x64xf32, #tpu.memory_space<vmem>>, vector<1x32x64xf32>
    %79 = vector.shape_cast %78 : vector<1x32x64xf32> to vector<32x64xf32>
    %cst_79 = arith.constant dense<0.000000e+00> : vector<1x64xf32>
    %80 = tpu.matmul %77, %79, %cst_79 {dimension_numbers = #tpu.dot_dimension_numbers<[1], [0], [0], [1], [0, 0, 1, 1], [], []>} : vector<1x32xf32>, vector<32x64xf32>, vector<1x64xf32> -> vector<1x64xf32>
    %81 = arith.addf %76, %80 : vector<1x64xf32>
    %c5_80 = arith.constant 5 : index
    %c0_81 = arith.constant 0 : index
    %82 = vector.load %arg18[%c5_80, %c0_81] : memref<22x32xf32, #tpu.memory_space<vmem>>, vector<1x32xf32>
    %c4_82 = arith.constant 4 : index
    %c0_83 = arith.constant 0 : index
    %c0_84 = arith.constant 0 : index
    %83 = vector.load %arg7[%c4_82, %c0_83, %c0_84] : memref<9x32x64xf32, #tpu.memory_space<vmem>>, vector<1x32x64xf32>
    %84 = vector.shape_cast %83 : vector<1x32x64xf32> to vector<32x64xf32>
    %cst_85 = arith.constant dense<0.000000e+00> : vector<1x64xf32>
    %85 = tpu.matmul %82, %84, %cst_85 {dimension_numbers = #tpu.dot_dimension_numbers<[1], [0], [0], [1], [0, 0, 1, 1], [], []>} : vector<1x32xf32>, vector<32x64xf32>, vector<1x64xf32> -> vector<1x64xf32>
    %86 = arith.addf %81, %85 : vector<1x64xf32>
    %c6_86 = arith.constant 6 : index
    %c0_87 = arith.constant 0 : index
    %87 = vector.load %arg18[%c6_86, %c0_87] : memref<22x32xf32, #tpu.memory_space<vmem>>, vector<1x32xf32>
    %c5_88 = arith.constant 5 : index
    %c0_89 = arith.constant 0 : index
    %c0_90 = arith.constant 0 : index
    %88 = vector.load %arg7[%c5_88, %c0_89, %c0_90] : memref<9x32x64xf32, #tpu.memory_space<vmem>>, vector<1x32x64xf32>
    %89 = vector.shape_cast %88 : vector<1x32x64xf32> to vector<32x64xf32>
    %cst_91 = arith.constant dense<0.000000e+00> : vector<1x64xf32>
    %90 = tpu.matmul %87, %89, %cst_91 {dimension_numbers = #tpu.dot_dimension_numbers<[1], [0], [0], [1], [0, 0, 1, 1], [], []>} : vector<1x32xf32>, vector<32x64xf32>, vector<1x64xf32> -> vector<1x64xf32>
    %91 = arith.addf %86, %90 : vector<1x64xf32>
    %c8_92 = arith.constant 8 : index
    %c0_93 = arith.constant 0 : index
    %92 = vector.load %arg18[%c8_92, %c0_93] : memref<22x32xf32, #tpu.memory_space<vmem>>, vector<1x32xf32>
    %c6_94 = arith.constant 6 : index
    %c0_95 = arith.constant 0 : index
    %c0_96 = arith.constant 0 : index
    %93 = vector.load %arg7[%c6_94, %c0_95, %c0_96] : memref<9x32x64xf32, #tpu.memory_space<vmem>>, vector<1x32x64xf32>
    %94 = vector.shape_cast %93 : vector<1x32x64xf32> to vector<32x64xf32>
    %cst_97 = arith.constant dense<0.000000e+00> : vector<1x64xf32>
    %95 = tpu.matmul %92, %94, %cst_97 {dimension_numbers = #tpu.dot_dimension_numbers<[1], [0], [0], [1], [0, 0, 1, 1], [], []>} : vector<1x32xf32>, vector<32x64xf32>, vector<1x64xf32> -> vector<1x64xf32>
    %96 = arith.addf %91, %95 : vector<1x64xf32>
    %c9 = arith.constant 9 : index
    %c0_98 = arith.constant 0 : index
    %97 = vector.load %arg18[%c9, %c0_98] : memref<22x32xf32, #tpu.memory_space<vmem>>, vector<1x32xf32>
    %c7_99 = arith.constant 7 : index
    %c0_100 = arith.constant 0 : index
    %c0_101 = arith.constant 0 : index
    %98 = vector.load %arg7[%c7_99, %c0_100, %c0_101] : memref<9x32x64xf32, #tpu.memory_space<vmem>>, vector<1x32x64xf32>
    %99 = vector.shape_cast %98 : vector<1x32x64xf32> to vector<32x64xf32>
    %cst_102 = arith.constant dense<0.000000e+00> : vector<1x64xf32>
    %100 = tpu.matmul %97, %99, %cst_102 {dimension_numbers = #tpu.dot_dimension_numbers<[1], [0], [0], [1], [0, 0, 1, 1], [], []>} : vector<1x32xf32>, vector<32x64xf32>, vector<1x64xf32> -> vector<1x64xf32>
    %101 = arith.addf %96, %100 : vector<1x64xf32>
    %c10 = arith.constant 10 : index
    %c0_103 = arith.constant 0 : index
    %102 = vector.load %arg18[%c10, %c0_103] : memref<22x32xf32, #tpu.memory_space<vmem>>, vector<1x32xf32>
    %c8_104 = arith.constant 8 : index
    %c0_105 = arith.constant 0 : index
    %c0_106 = arith.constant 0 : index
    %103 = vector.load %arg7[%c8_104, %c0_105, %c0_106] : memref<9x32x64xf32, #tpu.memory_space<vmem>>, vector<1x32x64xf32>
    %104 = vector.shape_cast %103 : vector<1x32x64xf32> to vector<32x64xf32>
    %cst_107 = arith.constant dense<0.000000e+00> : vector<1x64xf32>
    %105 = tpu.matmul %102, %104, %cst_107 {dimension_numbers = #tpu.dot_dimension_numbers<[1], [0], [0], [1], [0, 0, 1, 1], [], []>} : vector<1x32xf32>, vector<32x64xf32>, vector<1x64xf32> -> vector<1x64xf32>
    %106 = arith.addf %101, %105 : vector<1x64xf32>
    %c0_108 = arith.constant 0 : index
    %c0_109 = arith.constant 0 : index
    %107 = vector.load %arg8[%c0_108, %c0_109] : memref<1x64xf32, #tpu.memory_space<vmem>>, vector<1x64xf32>
    %108 = arith.addf %106, %107 : vector<1x64xf32>
    %cst_110 = arith.constant 0.000000e+00 : f32
    %109 = vector.broadcast %cst_110 : f32 to vector<1x64xf32>
    %110 = arith.maximumf %108, %109 : vector<1x64xf32>
    %c0_111 = arith.constant 0 : index
    %c0_112 = arith.constant 0 : index
    %111 = vector.load %arg19[%c0_111, %c0_112] : memref<2x64xf32, #tpu.memory_space<vmem>>, vector<1x64xf32>
    tpu.vector_store %arg19[%c0_111, %c0_112], %110 {strides = array<i32>} : memref<2x64xf32, #tpu.memory_space<vmem>>, vector<1x64xf32>,
    %cst_113 = arith.constant 0.000000e+00 : f32
    %112 = vector.broadcast %cst_113 : f32 to vector<11x32xf32>
    %c64 = arith.constant 64 : index
    %c0_114 = arith.constant 0 : index
    %113 = vector.load %arg17[%c64, %c0_114] : memref<128x16xf32, #tpu.memory_space<vmem>>, vector<11x16xf32>
    %c0_115 = arith.constant 0 : index
    %c0_116 = arith.constant 0 : index
    %c0_117 = arith.constant 0 : index
    %114 = vector.load %arg5[%c0_115, %c0_116, %c0_117] : memref<9x16x32xf32, #tpu.memory_space<vmem>>, vector<1x16x32xf32>
    %115 = vector.shape_cast %114 : vector<1x16x32xf32> to vector<16x32xf32>
    %cst_118 = arith.constant dense<0.000000e+00> : vector<11x32xf32>
    %116 = tpu.matmul %113, %115, %cst_118 {dimension_numbers = #tpu.dot_dimension_numbers<[1], [0], [0], [1], [0, 0, 1, 1], [], []>} : vector<11x16xf32>, vector<16x32xf32>, vector<11x32xf32> -> vector<11x32xf32>
    %117 = arith.addf %112, %116 : vector<11x32xf32>
    %c80 = arith.constant 80 : index
    %c0_119 = arith.constant 0 : index
    %118 = vector.load %arg17[%c80, %c0_119] : memref<128x16xf32, #tpu.memory_space<vmem>>, vector<11x16xf32>
    %c1_120 = arith.constant 1 : index
    %c0_121 = arith.constant 0 : index
    %c0_122 = arith.constant 0 : index
    %119 = vector.load %arg5[%c1_120, %c0_121, %c0_122] : memref<9x16x32xf32, #tpu.memory_space<vmem>>, vector<1x16x32xf32>
    %120 = vector.shape_cast %119 : vector<1x16x32xf32> to vector<16x32xf32>
    %cst_123 = arith.constant dense<0.000000e+00> : vector<11x32xf32>
    %121 = tpu.matmul %118, %120, %cst_123 {dimension_numbers = #tpu.dot_dimension_numbers<[1], [0], [0], [1], [0, 0, 1, 1], [], []>} : vector<11x16xf32>, vector<16x32xf32>, vector<11x32xf32> -> vector<11x32xf32>
    %122 = arith.addf %117, %121 : vector<11x32xf32>
    %c65 = arith.constant 65 : index
    %c0_124 = arith.constant 0 : index
    %123 = vector.load %arg17[%c65, %c0_124] : memref<128x16xf32, #tpu.memory_space<vmem>>, vector<11x16xf32>
    %c2_125 = arith.constant 2 : index
    %c0_126 = arith.constant 0 : index
    %c0_127 = arith.constant 0 : index
    %124 = vector.load %arg5[%c2_125, %c0_126, %c0_127] : memref<9x16x32xf32, #tpu.memory_space<vmem>>, vector<1x16x32xf32>
    %125 = vector.shape_cast %124 : vector<1x16x32xf32> to vector<16x32xf32>
    %cst_128 = arith.constant dense<0.000000e+00> : vector<11x32xf32>
    %126 = tpu.matmul %123, %125, %cst_128 {dimension_numbers = #tpu.dot_dimension_numbers<[1], [0], [0], [1], [0, 0, 1, 1], [], []>} : vector<11x16xf32>, vector<16x32xf32>, vector<11x32xf32> -> vector<11x32xf32>
    %127 = arith.addf %122, %126 : vector<11x32xf32>
    %c96 = arith.constant 96 : index
    %c0_129 = arith.constant 0 : index
    %128 = vector.load %arg17[%c96, %c0_129] : memref<128x16xf32, #tpu.memory_space<vmem>>, vector<11x16xf32>
    %c3_130 = arith.constant 3 : index
    %c0_131 = arith.constant 0 : index
    %c0_132 = arith.constant 0 : index
    %129 = vector.load %arg5[%c3_130, %c0_131, %c0_132] : memref<9x16x32xf32, #tpu.memory_space<vmem>>, vector<1x16x32xf32>
    %130 = vector.shape_cast %129 : vector<1x16x32xf32> to vector<16x32xf32>
    %cst_133 = arith.constant dense<0.000000e+00> : vector<11x32xf32>
    %131 = tpu.matmul %128, %130, %cst_133 {dimension_numbers = #tpu.dot_dimension_numbers<[1], [0], [0], [1], [0, 0, 1, 1], [], []>} : vector<11x16xf32>, vector<16x32xf32>, vector<11x32xf32> -> vector<11x32xf32>
    %132 = arith.addf %127, %131 : vector<11x32xf32>
    %c112 = arith.constant 112 : index
    %c0_134 = arith.constant 0 : index
    %133 = vector.load %arg17[%c112, %c0_134] : memref<128x16xf32, #tpu.memory_space<vmem>>, vector<11x16xf32>
    %c4_135 = arith.constant 4 : index
    %c0_136 = arith.constant 0 : index
    %c0_137 = arith.constant 0 : index
    %134 = vector.load %arg5[%c4_135, %c0_136, %c0_137] : memref<9x16x32xf32, #tpu.memory_space<vmem>>, vector<1x16x32xf32>
    %135 = vector.shape_cast %134 : vector<1x16x32xf32> to vector<16x32xf32>
    %cst_138 = arith.constant dense<0.000000e+00> : vector<11x32xf32>
    %136 = tpu.matmul %133, %135, %cst_138 {dimension_numbers = #tpu.dot_dimension_numbers<[1], [0], [0], [1], [0, 0, 1, 1], [], []>} : vector<11x16xf32>, vector<16x32xf32>, vector<11x32xf32> -> vector<11x32xf32>
    %137 = arith.addf %132, %136 : vector<11x32xf32>
    %c97 = arith.constant 97 : index
    %c0_139 = arith.constant 0 : index
    %138 = vector.load %arg17[%c97, %c0_139] : memref<128x16xf32, #tpu.memory_space<vmem>>, vector<11x16xf32>
    %c5_140 = arith.constant 5 : index
    %c0_141 = arith.constant 0 : index
    %c0_142 = arith.constant 0 : index
    %139 = vector.load %arg5[%c5_140, %c0_141, %c0_142] : memref<9x16x32xf32, #tpu.memory_space<vmem>>, vector<1x16x32xf32>
    %140 = vector.shape_cast %139 : vector<1x16x32xf32> to vector<16x32xf32>
    %cst_143 = arith.constant dense<0.000000e+00> : vector<11x32xf32>
    %141 = tpu.matmul %138, %140, %cst_143 {dimension_numbers = #tpu.dot_dimension_numbers<[1], [0], [0], [1], [0, 0, 1, 1], [], []>} : vector<11x16xf32>, vector<16x32xf32>, vector<11x32xf32> -> vector<11x32xf32>
    %142 = arith.addf %137, %141 : vector<11x32xf32>
    %c68 = arith.constant 68 : index
    %c0_144 = arith.constant 0 : index
    %143 = vector.load %arg17[%c68, %c0_144] : memref<128x16xf32, #tpu.memory_space<vmem>>, vector<11x16xf32>
    %c6_145 = arith.constant 6 : index
    %c0_146 = arith.constant 0 : index
    %c0_147 = arith.constant 0 : index
    %144 = vector.load %arg5[%c6_145, %c0_146, %c0_147] : memref<9x16x32xf32, #tpu.memory_space<vmem>>, vector<1x16x32xf32>
    %145 = vector.shape_cast %144 : vector<1x16x32xf32> to vector<16x32xf32>
    %cst_148 = arith.constant dense<0.000000e+00> : vector<11x32xf32>
    %146 = tpu.matmul %143, %145, %cst_148 {dimension_numbers = #tpu.dot_dimension_numbers<[1], [0], [0], [1], [0, 0, 1, 1], [], []>} : vector<11x16xf32>, vector<16x32xf32>, vector<11x32xf32> -> vector<11x32xf32>
    %147 = arith.addf %142, %146 : vector<11x32xf32>
    %c84 = arith.constant 84 : index
    %c0_149 = arith.constant 0 : index
    %148 = vector.load %arg17[%c84, %c0_149] : memref<128x16xf32, #tpu.memory_space<vmem>>, vector<11x16xf32>
    %c7_150 = arith.constant 7 : index
    %c0_151 = arith.constant 0 : index
    %c0_152 = arith.constant 0 : index
    %149 = vector.load %arg5[%c7_150, %c0_151, %c0_152] : memref<9x16x32xf32, #tpu.memory_space<vmem>>, vector<1x16x32xf32>
    %150 = vector.shape_cast %149 : vector<1x16x32xf32> to vector<16x32xf32>
    %cst_153 = arith.constant dense<0.000000e+00> : vector<11x32xf32>
    %151 = tpu.matmul %148, %150, %cst_153 {dimension_numbers = #tpu.dot_dimension_numbers<[1], [0], [0], [1], [0, 0, 1, 1], [], []>} : vector<11x16xf32>, vector<16x32xf32>, vector<11x32xf32> -> vector<11x32xf32>
    %152 = arith.addf %147, %151 : vector<11x32xf32>
    %c69 = arith.constant 69 : index
    %c0_154 = arith.constant 0 : index
    %153 = vector.load %arg17[%c69, %c0_154] : memref<128x16xf32, #tpu.memory_space<vmem>>, vector<11x16xf32>
    %c8_155 = arith.constant 8 : index
    %c0_156 = arith.constant 0 : index
    %c0_157 = arith.constant 0 : index
    %154 = vector.load %arg5[%c8_155, %c0_156, %c0_157] : memref<9x16x32xf32, #tpu.memory_space<vmem>>, vector<1x16x32xf32>
    %155 = vector.shape_cast %154 : vector<1x16x32xf32> to vector<16x32xf32>
    %cst_158 = arith.constant dense<0.000000e+00> : vector<11x32xf32>
    %156 = tpu.matmul %153, %155, %cst_158 {dimension_numbers = #tpu.dot_dimension_numbers<[1], [0], [0], [1], [0, 0, 1, 1], [], []>} : vector<11x16xf32>, vector<16x32xf32>, vector<11x32xf32> -> vector<11x32xf32>
    %157 = arith.addf %152, %156 : vector<11x32xf32>
    %c0_159 = arith.constant 0 : index
    %c0_160 = arith.constant 0 : index
    %158 = vector.load %arg6[%c0_159, %c0_160] : memref<1x32xf32, #tpu.memory_space<vmem>>, vector<1x32xf32>
    %159 = vector.broadcast %158 : vector<1x32xf32> to vector<11x32xf32>
    %160 = arith.addf %157, %159 : vector<11x32xf32>
    %cst_161 = arith.constant 0.000000e+00 : f32
    %161 = vector.broadcast %cst_161 : f32 to vector<11x32xf32>
    %162 = arith.maximumf %160, %161 : vector<11x32xf32>
    %c11 = arith.constant 11 : index
    %c0_162 = arith.constant 0 : index
    %163 = vector.load %arg18[%c11, %c0_162] : memref<22x32xf32, #tpu.memory_space<vmem>>, vector<11x32xf32>
    tpu.vector_store %arg18[%c11, %c0_162], %162 {strides = array<i32>} : memref<22x32xf32, #tpu.memory_space<vmem>>, vector<11x32xf32>,
    %cst_163 = arith.constant 0.000000e+00 : f32
    %164 = vector.broadcast %cst_163 : f32 to vector<1x64xf32>
    %c11_164 = arith.constant 11 : index
    %c0_165 = arith.constant 0 : index
    %165 = vector.load %arg18[%c11_164, %c0_165] : memref<22x32xf32, #tpu.memory_space<vmem>>, vector<1x32xf32>
    %c0_166 = arith.constant 0 : index
    %c0_167 = arith.constant 0 : index
    %c0_168 = arith.constant 0 : index
    %166 = vector.load %arg7[%c0_166, %c0_167, %c0_168] : memref<9x32x64xf32, #tpu.memory_space<vmem>>, vector<1x32x64xf32>
    %167 = vector.shape_cast %166 : vector<1x32x64xf32> to vector<32x64xf32>
    %cst_169 = arith.constant dense<0.000000e+00> : vector<1x64xf32>
    %168 = tpu.matmul %165, %167, %cst_169 {dimension_numbers = #tpu.dot_dimension_numbers<[1], [0], [0], [1], [0, 0, 1, 1], [], []>} : vector<1x32xf32>, vector<32x64xf32>, vector<1x64xf32> -> vector<1x64xf32>
    %169 = arith.addf %164, %168 : vector<1x64xf32>
    %c12 = arith.constant 12 : index
    %c0_170 = arith.constant 0 : index
    %170 = vector.load %arg18[%c12, %c0_170] : memref<22x32xf32, #tpu.memory_space<vmem>>, vector<1x32xf32>
    %c1_171 = arith.constant 1 : index
    %c0_172 = arith.constant 0 : index
    %c0_173 = arith.constant 0 : index
    %171 = vector.load %arg7[%c1_171, %c0_172, %c0_173] : memref<9x32x64xf32, #tpu.memory_space<vmem>>, vector<1x32x64xf32>
    %172 = vector.shape_cast %171 : vector<1x32x64xf32> to vector<32x64xf32>
    %cst_174 = arith.constant dense<0.000000e+00> : vector<1x64xf32>
    %173 = tpu.matmul %170, %172, %cst_174 {dimension_numbers = #tpu.dot_dimension_numbers<[1], [0], [0], [1], [0, 0, 1, 1], [], []>} : vector<1x32xf32>, vector<32x64xf32>, vector<1x64xf32> -> vector<1x64xf32>
    %174 = arith.addf %169, %173 : vector<1x64xf32>
    %c13 = arith.constant 13 : index
    %c0_175 = arith.constant 0 : index
    %175 = vector.load %arg18[%c13, %c0_175] : memref<22x32xf32, #tpu.memory_space<vmem>>, vector<1x32xf32>
    %c2_176 = arith.constant 2 : index
    %c0_177 = arith.constant 0 : index
    %c0_178 = arith.constant 0 : index
    %176 = vector.load %arg7[%c2_176, %c0_177, %c0_178] : memref<9x32x64xf32, #tpu.memory_space<vmem>>, vector<1x32x64xf32>
    %177 = vector.shape_cast %176 : vector<1x32x64xf32> to vector<32x64xf32>
    %cst_179 = arith.constant dense<0.000000e+00> : vector<1x64xf32>
    %178 = tpu.matmul %175, %177, %cst_179 {dimension_numbers = #tpu.dot_dimension_numbers<[1], [0], [0], [1], [0, 0, 1, 1], [], []>} : vector<1x32xf32>, vector<32x64xf32>, vector<1x64xf32> -> vector<1x64xf32>
    %179 = arith.addf %174, %178 : vector<1x64xf32>
    %c15 = arith.constant 15 : index
    %c0_180 = arith.constant 0 : index
    %180 = vector.load %arg18[%c15, %c0_180] : memref<22x32xf32, #tpu.memory_space<vmem>>, vector<1x32xf32>
    %c3_181 = arith.constant 3 : index
    %c0_182 = arith.constant 0 : index
    %c0_183 = arith.constant 0 : index
    %181 = vector.load %arg7[%c3_181, %c0_182, %c0_183] : memref<9x32x64xf32, #tpu.memory_space<vmem>>, vector<1x32x64xf32>
    %182 = vector.shape_cast %181 : vector<1x32x64xf32> to vector<32x64xf32>
    %cst_184 = arith.constant dense<0.000000e+00> : vector<1x64xf32>
    %183 = tpu.matmul %180, %182, %cst_184 {dimension_numbers = #tpu.dot_dimension_numbers<[1], [0], [0], [1], [0, 0, 1, 1], [], []>} : vector<1x32xf32>, vector<32x64xf32>, vector<1x64xf32> -> vector<1x64xf32>
    %184 = arith.addf %179, %183 : vector<1x64xf32>
    %c16_185 = arith.constant 16 : index
    %c0_186 = arith.constant 0 : index
    %185 = vector.load %arg18[%c16_185, %c0_186] : memref<22x32xf32, #tpu.memory_space<vmem>>, vector<1x32xf32>
    %c4_187 = arith.constant 4 : index
    %c0_188 = arith.constant 0 : index
    %c0_189 = arith.constant 0 : index
    %186 = vector.load %arg7[%c4_187, %c0_188, %c0_189] : memref<9x32x64xf32, #tpu.memory_space<vmem>>, vector<1x32x64xf32>
    %187 = vector.shape_cast %186 : vector<1x32x64xf32> to vector<32x64xf32>
    %cst_190 = arith.constant dense<0.000000e+00> : vector<1x64xf32>
    %188 = tpu.matmul %185, %187, %cst_190 {dimension_numbers = #tpu.dot_dimension_numbers<[1], [0], [0], [1], [0, 0, 1, 1], [], []>} : vector<1x32xf32>, vector<32x64xf32>, vector<1x64xf32> -> vector<1x64xf32>
    %189 = arith.addf %184, %188 : vector<1x64xf32>
    %c17 = arith.constant 17 : index
    %c0_191 = arith.constant 0 : index
    %190 = vector.load %arg18[%c17, %c0_191] : memref<22x32xf32, #tpu.memory_space<vmem>>, vector<1x32xf32>
    %c5_192 = arith.constant 5 : index
    %c0_193 = arith.constant 0 : index
    %c0_194 = arith.constant 0 : index
    %191 = vector.load %arg7[%c5_192, %c0_193, %c0_194] : memref<9x32x64xf32, #tpu.memory_space<vmem>>, vector<1x32x64xf32>
    %192 = vector.shape_cast %191 : vector<1x32x64xf32> to vector<32x64xf32>
    %cst_195 = arith.constant dense<0.000000e+00> : vector<1x64xf32>
    %193 = tpu.matmul %190, %192, %cst_195 {dimension_numbers = #tpu.dot_dimension_numbers<[1], [0], [0], [1], [0, 0, 1, 1], [], []>} : vector<1x32xf32>, vector<32x64xf32>, vector<1x64xf32> -> vector<1x64xf32>
    %194 = arith.addf %189, %193 : vector<1x64xf32>
    %c19 = arith.constant 19 : index
    %c0_196 = arith.constant 0 : index
    %195 = vector.load %arg18[%c19, %c0_196] : memref<22x32xf32, #tpu.memory_space<vmem>>, vector<1x32xf32>
    %c6_197 = arith.constant 6 : index
    %c0_198 = arith.constant 0 : index
    %c0_199 = arith.constant 0 : index
    %196 = vector.load %arg7[%c6_197, %c0_198, %c0_199] : memref<9x32x64xf32, #tpu.memory_space<vmem>>, vector<1x32x64xf32>
    %197 = vector.shape_cast %196 : vector<1x32x64xf32> to vector<32x64xf32>
    %cst_200 = arith.constant dense<0.000000e+00> : vector<1x64xf32>
    %198 = tpu.matmul %195, %197, %cst_200 {dimension_numbers = #tpu.dot_dimension_numbers<[1], [0], [0], [1], [0, 0, 1, 1], [], []>} : vector<1x32xf32>, vector<32x64xf32>, vector<1x64xf32> -> vector<1x64xf32>
    %199 = arith.addf %194, %198 : vector<1x64xf32>
    %c20_201 = arith.constant 20 : index
    %c0_202 = arith.constant 0 : index
    %200 = vector.load %arg18[%c20_201, %c0_202] : memref<22x32xf32, #tpu.memory_space<vmem>>, vector<1x32xf32>
    %c7_203 = arith.constant 7 : index
    %c0_204 = arith.constant 0 : index
    %c0_205 = arith.constant 0 : index
    %201 = vector.load %arg7[%c7_203, %c0_204, %c0_205] : memref<9x32x64xf32, #tpu.memory_space<vmem>>, vector<1x32x64xf32>
    %202 = vector.shape_cast %201 : vector<1x32x64xf32> to vector<32x64xf32>
    %cst_206 = arith.constant dense<0.000000e+00> : vector<1x64xf32>
    %203 = tpu.matmul %200, %202, %cst_206 {dimension_numbers = #tpu.dot_dimension_numbers<[1], [0], [0], [1], [0, 0, 1, 1], [], []>} : vector<1x32xf32>, vector<32x64xf32>, vector<1x64xf32> -> vector<1x64xf32>
    %204 = arith.addf %199, %203 : vector<1x64xf32>
    %c21 = arith.constant 21 : index
    %c0_207 = arith.constant 0 : index
    %205 = vector.load %arg18[%c21, %c0_207] : memref<22x32xf32, #tpu.memory_space<vmem>>, vector<1x32xf32>
    %c8_208 = arith.constant 8 : index
    %c0_209 = arith.constant 0 : index
    %c0_210 = arith.constant 0 : index
    %206 = vector.load %arg7[%c8_208, %c0_209, %c0_210] : memref<9x32x64xf32, #tpu.memory_space<vmem>>, vector<1x32x64xf32>
    %207 = vector.shape_cast %206 : vector<1x32x64xf32> to vector<32x64xf32>
    %cst_211 = arith.constant dense<0.000000e+00> : vector<1x64xf32>
    %208 = tpu.matmul %205, %207, %cst_211 {dimension_numbers = #tpu.dot_dimension_numbers<[1], [0], [0], [1], [0, 0, 1, 1], [], []>} : vector<1x32xf32>, vector<32x64xf32>, vector<1x64xf32> -> vector<1x64xf32>
    %209 = arith.addf %204, %208 : vector<1x64xf32>
    %c0_212 = arith.constant 0 : index
    %c0_213 = arith.constant 0 : index
    %210 = vector.load %arg8[%c0_212, %c0_213] : memref<1x64xf32, #tpu.memory_space<vmem>>, vector<1x64xf32>
    %211 = arith.addf %209, %210 : vector<1x64xf32>
    %cst_214 = arith.constant 0.000000e+00 : f32
    %212 = vector.broadcast %cst_214 : f32 to vector<1x64xf32>
    %213 = arith.maximumf %211, %212 : vector<1x64xf32>
    %c1_215 = arith.constant 1 : index
    %c0_216 = arith.constant 0 : index
    %214 = vector.load %arg19[%c1_215, %c0_216] : memref<2x64xf32, #tpu.memory_space<vmem>>, vector<1x64xf32>
    tpu.vector_store %arg19[%c1_215, %c0_216], %213 {strides = array<i32>} : memref<2x64xf32, #tpu.memory_space<vmem>>, vector<1x64xf32>,
    %c0_217 = arith.constant 0 : index
    %c0_218 = arith.constant 0 : index
    %215 = vector.load %arg2[%c0_217, %c0_218] : memref<2x8xf32, #tpu.memory_space<vmem>>, vector<2x8xf32>
    %c0_219 = arith.constant 0 : index
    %c0_220 = arith.constant 0 : index
    %216 = vector.load %arg19[%c0_219, %c0_220] : memref<2x64xf32, #tpu.memory_space<vmem>>, vector<2x64xf32>
    %c0_221 = arith.constant 0 : index
    %c0_222 = arith.constant 0 : index
    %217 = vector.load %arg9[%c0_221, %c0_222] : memref<8x64xf32, #tpu.memory_space<vmem>>, vector<8x64xf32>
    %cst_223 = arith.constant dense<0.000000e+00> : vector<2x64xf32>
    %218 = tpu.matmul %215, %217, %cst_223 {dimension_numbers = #tpu.dot_dimension_numbers<[1], [0], [0], [1], [0, 0, 1, 1], [], []>} : vector<2x8xf32>, vector<8x64xf32>, vector<2x64xf32> -> vector<2x64xf32>
    %c0_224 = arith.constant 0 : index
    %c0_225 = arith.constant 0 : index
    %219 = vector.load %arg10[%c0_224, %c0_225] : memref<64x64xf32, #tpu.memory_space<vmem>>, vector<64x64xf32>
    %cst_226 = arith.constant dense<0.000000e+00> : vector<2x64xf32>
    %220 = tpu.matmul %216, %219, %cst_226 {dimension_numbers = #tpu.dot_dimension_numbers<[1], [0], [0], [1], [0, 0, 1, 1], [], []>} : vector<2x64xf32>, vector<64x64xf32>, vector<2x64xf32> -> vector<2x64xf32>
    %221 = arith.addf %218, %220 : vector<2x64xf32>
    %c0_227 = arith.constant 0 : index
    %c0_228 = arith.constant 0 : index
    %222 = vector.load %arg11[%c0_227, %c0_228] : memref<1x64xf32, #tpu.memory_space<vmem>>, vector<1x64xf32>
    %223 = vector.broadcast %222 : vector<1x64xf32> to vector<2x64xf32>
    %224 = arith.addf %221, %223 : vector<2x64xf32>
    %cst_229 = arith.constant 0.000000e+00 : f32
    %225 = vector.broadcast %cst_229 : f32 to vector<2x64xf32>
    %226 = arith.maximumf %224, %225 : vector<2x64xf32>
    %c0_230 = arith.constant 0 : index
    %c0_231 = arith.constant 0 : index
    %227 = vector.load %arg12[%c0_230, %c0_231] : memref<64x64xf32, #tpu.memory_space<vmem>>, vector<64x64xf32>
    %cst_232 = arith.constant dense<0.000000e+00> : vector<2x64xf32>
    %228 = tpu.matmul %226, %227, %cst_232 {dimension_numbers = #tpu.dot_dimension_numbers<[1], [0], [0], [1], [0, 0, 1, 1], [], []>} : vector<2x64xf32>, vector<64x64xf32>, vector<2x64xf32> -> vector<2x64xf32>
    %c0_233 = arith.constant 0 : index
    %c0_234 = arith.constant 0 : index
    %229 = vector.load %arg13[%c0_233, %c0_234] : memref<1x64xf32, #tpu.memory_space<vmem>>, vector<1x64xf32>
    %230 = vector.broadcast %229 : vector<1x64xf32> to vector<2x64xf32>
    %231 = arith.addf %228, %230 : vector<2x64xf32>
    %232 = tpu.iota {dimensions = array<i32: 1>} : vector<2x64xi32>
    %c32_i32 = arith.constant 32 : i32
    %233 = vector.broadcast %c32_i32 : i32 to vector<2x64xi32>
    %234 = arith.cmpi slt, %232, %233 : vector<2x64xi32>
    %235 = math.tanh %231 : vector<2x64xf32>
    %cst_235 = arith.constant 0.000000e+00 : f32
    %236 = vector.broadcast %cst_235 : f32 to vector<2x64xf32>
    %237 = arith.maximumf %231, %236 : vector<2x64xf32>
    %238 = arith.select %234, %235, %237 : vector<2x64xi1>, vector<2x64xf32>
    %c0_236 = arith.constant 0 : index
    %c0_237 = arith.constant 0 : index
    %239 = vector.load %arg14[%c0_236, %c0_237] : memref<64x128xf32, #tpu.memory_space<vmem>>, vector<64x128xf32>
    %cst_238 = arith.constant dense<0.000000e+00> : vector<2x128xf32>
    %240 = tpu.matmul %238, %239, %cst_238 {dimension_numbers = #tpu.dot_dimension_numbers<[1], [0], [0], [1], [0, 0, 1, 1], [], []>} : vector<2x64xf32>, vector<64x128xf32>, vector<2x128xf32> -> vector<2x128xf32>
    %c0_239 = arith.constant 0 : index
    %c0_240 = arith.constant 0 : index
    %241 = vector.load %arg15[%c0_239, %c0_240] : memref<1x128xf32, #tpu.memory_space<vmem>>, vector<1x128xf32>
    %242 = vector.broadcast %241 : vector<1x128xf32> to vector<2x128xf32>
    %243 = arith.addf %240, %242 : vector<2x128xf32>
    %244 = tpu.iota {dimensions = array<i32: 1>} : vector<2x128xi32>
    %c6_i32 = arith.constant 6 : i32
    %245 = vector.broadcast %c6_i32 : i32 to vector<2x128xi32>
    %246 = arith.cmpi slt, %244, %245 : vector<2x128xi32>
    %cst_241 = arith.constant 0xFF800000 : f32
    %247 = vector.broadcast %cst_241 : f32 to vector<2x128xf32>
    %248 = arith.select %246, %243, %247 : vector<2x128xi1>, vector<2x128xf32>
    %cst_242 = arith.constant dense<0xFF800000> : vector<2xf32>
    %249 = vector.multi_reduction <maximumf>, %248, %cst_242 [1] : vector<2x128xf32> to vector<2xf32>
    %250 = vector.shape_cast %249 : vector<2xf32> to vector<2x1xf32>
    %251 = vector.broadcast %250 : vector<2x1xf32> to vector<2x128xf32>
    %252 = arith.subf %248, %251 : vector<2x128xf32>
    %253 = math.exp %252 : vector<2x128xf32>
    %cst_243 = arith.constant dense<0.000000e+00> : vector<2xf32>
    %254 = vector.multi_reduction <add>, %253, %cst_243 [1] : vector<2x128xf32> to vector<2xf32>
    %255 = vector.shape_cast %254 : vector<2xf32> to vector<2x1xf32>
    %256 = vector.broadcast %255 : vector<2x1xf32> to vector<2x128xf32>
    %257 = arith.divf %253, %256 : vector<2x128xf32>
    %c6_i32_244 = arith.constant 6 : i32
    %258 = vector.broadcast %c6_i32_244 : i32 to vector<2x128xi32>
    %259 = arith.cmpi eq, %244, %258 : vector<2x128xi32>
    %cst_245 = arith.constant 0.000000e+00 : f32
    %260 = vector.broadcast %cst_245 : f32 to vector<2x128xf32>
    %261 = arith.select %259, %243, %260 : vector<2x128xi1>, vector<2x128xf32>
    %262 = arith.select %246, %257, %261 : vector<2x128xi1>, vector<2x128xf32>
    %c0_246 = arith.constant 0 : index
    %c0_247 = arith.constant 0 : index
    %263 = vector.load %arg16[%c0_246, %c0_247] : memref<2x128xf32, #tpu.memory_space<vmem>>, vector<2x128xf32>
    tpu.vector_store %arg16[%c0_246, %c0_247], %262 {strides = array<i32>} : memref<2x128xf32, #tpu.memory_space<vmem>>, vector<2x128xf32>,
    return
  }
  func.func @transform_0(%arg0: i32) -> (i32, i32) {
    %c0_i32 = arith.constant 0 : i32
    %c0_i32_0 = arith.constant 0 : i32
    %c0_i32_1 = arith.constant 0 : i32
    return %c0_i32, %c0_i32_0 : i32, i32
  }
  func.func @transform_1(%arg0: i32) -> (i32, i32) {
    %c0_i32 = arith.constant 0 : i32
    %c0_i32_0 = arith.constant 0 : i32
    %c0_i32_1 = arith.constant 0 : i32
    return %c0_i32, %c0_i32_0 : i32, i32
  }
  func.func @transform_2(%arg0: i32) -> (i32, i32) {
    %c0_i32 = arith.constant 0 : i32
    %c0_i32_0 = arith.constant 0 : i32
    %c0_i32_1 = arith.constant 0 : i32
    return %c0_i32, %c0_i32_0 : i32, i32
  }
  func.func @transform_3(%arg0: i32) -> (i32, i32) {
    %c0_i32 = arith.constant 0 : i32
    %c0_i32_0 = arith.constant 0 : i32
    %c0_i32_1 = arith.constant 0 : i32
    return %c0_i32, %c0_i32_0 : i32, i32
  }
  func.func @transform_4(%arg0: i32) -> (i32, i32, i32) {
    %c0_i32 = arith.constant 0 : i32
    %c0_i32_0 = arith.constant 0 : i32
    %c0_i32_1 = arith.constant 0 : i32
    %c0_i32_2 = arith.constant 0 : i32
    return %c0_i32, %c0_i32_0, %c0_i32_1 : i32, i32, i32
  }
  func.func @transform_5(%arg0: i32) -> (i32, i32) {
    %c0_i32 = arith.constant 0 : i32
    %c0_i32_0 = arith.constant 0 : i32
    %c0_i32_1 = arith.constant 0 : i32
    return %c0_i32, %c0_i32_0 : i32, i32
  }
  func.func @transform_6(%arg0: i32) -> (i32, i32, i32) {
    %c0_i32 = arith.constant 0 : i32
    %c0_i32_0 = arith.constant 0 : i32
    %c0_i32_1 = arith.constant 0 : i32
    %c0_i32_2 = arith.constant 0 : i32
    return %c0_i32, %c0_i32_0, %c0_i32_1 : i32, i32, i32
  }
  func.func @transform_7(%arg0: i32) -> (i32, i32) {
    %c0_i32 = arith.constant 0 : i32
    %c0_i32_0 = arith.constant 0 : i32
    %c0_i32_1 = arith.constant 0 : i32
    return %c0_i32, %c0_i32_0 : i32, i32
  }
  func.func @transform_8(%arg0: i32) -> (i32, i32) {
    %c0_i32 = arith.constant 0 : i32
    %c0_i32_0 = arith.constant 0 : i32
    %c0_i32_1 = arith.constant 0 : i32
    return %c0_i32, %c0_i32_0 : i32, i32
  }
  func.func @transform_9(%arg0: i32) -> (i32, i32) {
    %c0_i32 = arith.constant 0 : i32
    %c0_i32_0 = arith.constant 0 : i32
    %c0_i32_1 = arith.constant 0 : i32
    return %c0_i32, %c0_i32_0 : i32, i32
  }
  func.func @transform_10(%arg0: i32) -> (i32, i32) {
    %c0_i32 = arith.constant 0 : i32
    %c0_i32_0 = arith.constant 0 : i32
    %c0_i32_1 = arith.constant 0 : i32
    return %c0_i32, %c0_i32_0 : i32, i32
  }
  func.func @transform_11(%arg0: i32) -> (i32, i32) {
    %c0_i32 = arith.constant 0 : i32
    %c0_i32_0 = arith.constant 0 : i32
    %c0_i32_1 = arith.constant 0 : i32
    return %c0_i32, %c0_i32_0 : i32, i32
  }
  func.func @transform_12(%arg0: i32) -> (i32, i32) {
    %c0_i32 = arith.constant 0 : i32
    %c0_i32_0 = arith.constant 0 : i32
    %c0_i32_1 = arith.constant 0 : i32
    return %c0_i32, %c0_i32_0 : i32, i32
  }
  func.func @transform_13(%arg0: i32) -> (i32, i32) {
    %c0_i32 = arith.constant 0 : i32
    %c0_i32_0 = arith.constant 0 : i32
    %c0_i32_1 = arith.constant 0 : i32
    return %c0_i32, %c0_i32_0 : i32, i32
  }
  func.func @transform_14(%arg0: i32) -> (i32, i32) {
    %c0_i32 = arith.constant 0 : i32
    %c0_i32_0 = arith.constant 0 : i32
    %c0_i32_1 = arith.constant 0 : i32
    return %c0_i32, %c0_i32_0 : i32, i32
  }
  func.func @transform_15(%arg0: i32) -> (i32, i32) {
    %c0_i32 = arith.constant 0 : i32
    %c0_i32_0 = arith.constant 0 : i32
    %c0_i32_1 = arith.constant 0 : i32
    return %c0_i32, %c0_i32_0 : i32, i32
  }
}

</mosaic_0001>

<llo_original>
// kernel: forward.1
$region0: #{forward.1}
  #allocation0 [shape = 'u32[]', space=smem, size = 0x4, offset = 0x4, fixed_abs, tag = 'smem constant byte address 0x4 - core index']
  #allocation1 [shape = 'u32[144,128]{1,0:T(1,128)}', space=vmem, size = 0x12000, scoped, tag = 'internal scratch']
  #allocation2 [shape = 'f32[128,16]{1,0:T(8,128)}', space=vmem, size = 0x10000, scoped, tag = 'scratch operand']
  #allocation3 [shape = 'f32[22,32]{1,0:T(8,128)}', space=vmem, size = 0x3000, scoped, tag = 'scratch operand']
  #allocation4 [shape = 'f32[2,64]{1,0:T(2,128)}', space=vmem, size = 0x400, scoped, tag = 'scratch operand']
  %s0 = inlined_call_operand.vmem [shape: f32[128,36], index: 0, kind: input, shape index: {}]
  %s1 = inlined_call_operand.vmem [shape: f32[2,8], index: 1, kind: input, shape index: {}]
  %s2 = inlined_call_operand.vmem [shape: f32[36,16], index: 2, kind: input, shape index: {}]
  %s3 = inlined_call_operand.vmem [shape: f32[1,16], index: 3, kind: input, shape index: {}]
  %s4 = inlined_call_operand.vmem [shape: f32[9,16,32], index: 4, kind: input, shape index: {}]
  %s5 = inlined_call_operand.vmem [shape: f32[1,32], index: 5, kind: input, shape index: {}]
  %s6 = inlined_call_operand.vmem [shape: f32[9,32,64], index: 6, kind: input, shape index: {}]
  %s7 = inlined_call_operand.vmem [shape: f32[1,64], index: 7, kind: input, shape index: {}]
  %s8 = inlined_call_operand.vmem [shape: f32[8,64], index: 8, kind: input, shape index: {}]
  %s9 = inlined_call_operand.vmem [shape: f32[64,64], index: 9, kind: input, shape index: {}]
  %s10 = inlined_call_operand.vmem [shape: f32[1,64], index: 10, kind: input, shape index: {}]
  %s11 = inlined_call_operand.vmem [shape: f32[64,64], index: 11, kind: input, shape index: {}]
  %s12 = inlined_call_operand.vmem [shape: f32[1,64], index: 12, kind: input, shape index: {}]
  %s13 = inlined_call_operand.vmem [shape: f32[64,128], index: 13, kind: input, shape index: {}]
  %s14 = inlined_call_operand.vmem [shape: f32[1,128], index: 14, kind: input, shape index: {}]
  %s15 = inlined_call_operand.vmem [shape: f32[2,128], index: 15, kind: output, shape index: {}]
  %s16 = sld [smem:[#allocation0]]
  $region70: #{forward.1} parent=0
    _
  %s18 = ssub.s32 1, %s16
  %s19 = scalar_select 0, %s18, %s16
  // Predicated region
  $region2: #{forward.1} parent=0 // pred_check
    _
  $region3: #{forward.1} parent=0 // pred_check_branch
    %21 = sbr.rel (0) target = $region5
  $region4: #{forward.1} parent=0 // pred_region
    _
  $region5: #{forward.1} parent=0 // pred_fallthru
    _
  // Predicated region
  $region6: #{forward.1} parent=0 // pred_check
    _
  $region7: #{forward.1} parent=0 // pred_check_branch
    %23 = sbr.rel (0) target = $region9
  $region8: #{forward.1} parent=0 // pred_region
    _
  $region9: #{forward.1} parent=0 // pred_fallthru
    _
  // Predicated region
  $region10: #{forward.1} parent=0 // pred_check
    _
  $region11: #{forward.1} parent=0 // pred_check_branch
    %25 = sbr.rel (0) target = $region13
  $region12: #{forward.1} parent=0 // pred_region
    _
  $region13: #{forward.1} parent=0 // pred_fallthru
    _
  // Predicated region
  $region14: #{forward.1} parent=0 // pred_check
    _
  $region15: #{forward.1} parent=0 // pred_check_branch
    %27 = sbr.rel (0) target = $region17
  $region16: #{forward.1} parent=0 // pred_region
    _
  $region17: #{forward.1} parent=0 // pred_fallthru
    _
  // Predicated region
  $region18: #{forward.1} parent=0 // pred_check
    _
  $region19: #{forward.1} parent=0 // pred_check_branch
    %29 = sbr.rel (0) target = $region21
  $region20: #{forward.1} parent=0 // pred_region
    _
  $region21: #{forward.1} parent=0 // pred_fallthru
    _
  // Predicated region
  $region22: #{forward.1} parent=0 // pred_check
    _
  $region23: #{forward.1} parent=0 // pred_check_branch
    %31 = sbr.rel (0) target = $region25
  $region24: #{forward.1} parent=0 // pred_region
    _
  $region25: #{forward.1} parent=0 // pred_fallthru
    _
  // Predicated region
  $region26: #{forward.1} parent=0 // pred_check
    _
  $region27: #{forward.1} parent=0 // pred_check_branch
    %33 = sbr.rel (0) target = $region29
  $region28: #{forward.1} parent=0 // pred_region
    _
  $region29: #{forward.1} parent=0 // pred_fallthru
    _
  // Predicated region
  $region30: #{forward.1} parent=0 // pred_check
    _
  $region31: #{forward.1} parent=0 // pred_check_branch
    %35 = sbr.rel (0) target = $region33
  $region32: #{forward.1} parent=0 // pred_region
    _
  $region33: #{forward.1} parent=0 // pred_fallthru
    _
  // Predicated region
  $region34: #{forward.1} parent=0 // pred_check
    _
  $region35: #{forward.1} parent=0 // pred_check_branch
    %37 = sbr.rel (0) target = $region37
  $region36: #{forward.1} parent=0 // pred_region
    _
  $region37: #{forward.1} parent=0 // pred_fallthru
    _
  // Predicated region
  $region38: #{forward.1} parent=0 // pred_check
    _
  $region39: #{forward.1} parent=0 // pred_check_branch
    %39 = sbr.rel (0) target = $region41
  $region40: #{forward.1} parent=0 // pred_region
    _
  $region41: #{forward.1} parent=0 // pred_fallthru
    _
  // Predicated region
  $region42: #{forward.1} parent=0 // pred_check
    _
  $region43: #{forward.1} parent=0 // pred_check_branch
    %41 = sbr.rel (0) target = $region45
  $region44: #{forward.1} parent=0 // pred_region
    _
  $region45: #{forward.1} parent=0 // pred_fallthru
    _
  // Predicated region
  $region46: #{forward.1} parent=0 // pred_check
    _
  $region47: #{forward.1} parent=0 // pred_check_branch
    %43 = sbr.rel (0) target = $region49
  $region48: #{forward.1} parent=0 // pred_region
    _
  $region49: #{forward.1} parent=0 // pred_fallthru
    _
  // Predicated region
  $region50: #{forward.1} parent=0 // pred_check
    _
  $region51: #{forward.1} parent=0 // pred_check_branch
    %45 = sbr.rel (0) target = $region53
  $region52: #{forward.1} parent=0 // pred_region
    _
  $region53: #{forward.1} parent=0 // pred_fallthru
    _
  // Predicated region
  $region54: #{forward.1} parent=0 // pred_check
    _
  $region55: #{forward.1} parent=0 // pred_check_branch
    %47 = sbr.rel (0) target = $region57
  $region56: #{forward.1} parent=0 // pred_region
    _
  $region57: #{forward.1} parent=0 // pred_fallthru
    _
  // Predicated region
  $region58: #{forward.1} parent=0 // pred_check
    _
  $region59: #{forward.1} parent=0 // pred_check_branch
    %49 = sbr.rel (0) target = $region61
  $region60: #{forward.1} parent=0 // pred_region
    _
  $region61: #{forward.1} parent=0 // pred_fallthru
    _
  %v50 = vld [vmem:[%s0] sm:$0xff]
  %v51 = vld [vmem:[%s0 + $0x8] sm:$0xff]
  %v52 = vld [vmem:[%s0 + $0x10] sm:$0xff]
  %v53 = vld [vmem:[%s0 + $0x18] sm:$0xff]
  %v54 = vld [vmem:[%s0 + $0x20] sm:$0xff]
  %v55 = vld [vmem:[%s0 + $0x28] sm:$0xff]
  %v56 = vld [vmem:[%s0 + $0x30] sm:$0xff]
  %v57 = vld [vmem:[%s0 + $0x38] sm:$0xff]
  %v58 = vld [vmem:[%s0 + $0x40] sm:$0xff]
  %v59 = vld [vmem:[%s0 + $0x48] sm:$0xff]
  %v60 = vld [vmem:[%s0 + $0x50] sm:$0xff]
  %v61 = vld [vmem:[%s0 + $0x58] sm:$0xff]
  %v62 = vld [vmem:[%s0 + $0x60] sm:$0xff]
  %v63 = vld [vmem:[%s0 + $0x68] sm:$0xff]
  %v64 = vld [vmem:[%s0 + $0x70] sm:$0xff]
  %v65 = vld [vmem:[%s0 + $0x78] sm:$0xff]
  %v66 = vld [vmem:[%s2] sm:$0xff]
  %v67 = vld [vmem:[%s2 + $0x8] sm:$0xff]
  %v68 = vld [vmem:[%s2 + $0x10] sm:$0xff]
  %v69 = vld [vmem:[%s2 + $0x18] sm:$0xff]
  %v70 = vld [vmem:[%s2 + $0x20] sm:$0xf]
  %v71 = vld [vmem:[%s3] sm:$0x1]
  %v73 = vlaneseq
  %v74 = vshrl.u32 %v73, 7
  %v75 = vsub.s32 0, %v74
  %v76 = vrot.slane %v71, %v75
  %vm78 = vcmask 293888
  %v80 = vsel %vm78, %v50, 0
  %v83 = vsel %vm78, %v51, 0
  %v86 = vsel %vm78, %v52, 0
  %v89 = vsel %vm78, %v53, 0
  %v92 = vsel %vm78, %v54, 0
  %v95 = vsel %vm78, %v55, 0
  %v98 = vsel %vm78, %v56, 0
  %v101 = vsel %vm78, %v57, 0
  %v104 = vsel %vm78, %v58, 0
  %v107 = vsel %vm78, %v59, 0
  %v110 = vsel %vm78, %v60, 0
  %v113 = vsel %vm78, %v61, 0
  %v116 = vsel %vm78, %v62, 0
  %v119 = vsel %vm78, %v63, 0
  %v122 = vsel %vm78, %v64, 0
  %v125 = vsel %vm78, %v65, 0
  %vm127 = vcmask 1043456
  %v129 = vsel %vm127, %v70, 0
  %131 = vmatprep.subr.mxu0 0.0
  %132 = vmatpush1.msra.mxu0 %v66
  %133 = vmatprep.subr.mxu0 0.0
  %134 = vmatpush1.msra.mxu0 %v67
  %135 = vmatprep.subr.mxu0 0.0
  %136 = vmatpush1.msra.mxu0 %v68
  %137 = vmatprep.subr.mxu0 0.0
  %138 = vmatpush1.msra.mxu0 %v69
  %139 = vmatprep.subr.mxu0 0.0
  %140 = vmatpush1.msra.mxu0 %v129
  %141 = vmatprep.subr.mxu0 0.0
  %142 = vmatpush1.msra.mxu0 0.0
  %143 = vmatprep.subr.mxu0 0.0
  %144 = vmatpush1.msra.mxu0 0.0
  %145 = vmatprep.subr.mxu0 0.0
  %146 = vmatpush1.msra.mxu0 0.0
  %147 = vmatprep.subr.mxu0 0.0
  %148 = vmatpush1.msra.mxu0 0.0
  %149 = vmatprep.subr.mxu0 0.0
  %150 = vmatpush1.msra.mxu0 0.0
  %151 = vmatprep.subr.mxu0 0.0
  %152 = vmatpush1.msra.mxu0 0.0
  %153 = vmatprep.subr.mxu0 0.0
  %154 = vmatpush1.msra.mxu0 0.0
  %155 = vmatprep.subr.mxu0 0.0
  %156 = vmatpush1.msra.mxu0 0.0
  %157 = vmatprep.subr.mxu0 0.0
  %158 = vmatpush1.msra.mxu0 0.0
  %159 = vmatprep.subr.mxu0 0.0
  %160 = vmatpush1.msra.mxu0 0.0
  %161 = vmatprep.subr.mxu0 0.0
  %162 = vmatpush1.msra.mxu0 0.0
  %163 = vmatprep.subr.mxu0 0.0
  %164 = vmatpush1.msra.mxu0 0.0
  %165 = vmatprep.subr.mxu0 0.0
  %166 = vmatpush1.msra.mxu0 0.0
  %167 = vmatprep.subr.mxu0 0.0
  %168 = vmatpush1.msra.mxu0 0.0
  %169 = vmatprep.subr.mxu0 0.0
  %170 = vmatpush1.msra.mxu0 0.0
  %171 = vmatprep.subr.mxu0 0.0
  %172 = vmatpush1.msra.mxu0 0.0
  %173 = vmatprep.subr.mxu0 0.0
  %174 = vmatpush1.msra.mxu0 0.0
  %175 = vmatprep.subr.mxu0 0.0
  %176 = vmatpush1.msra.mxu0 0.0
  %177 = vmatprep.subr.mxu0 0.0
  %178 = vmatpush1.msra.mxu0 0.0
  %179 = vmatprep.subr.mxu0 0.0
  %180 = vmatpush1.msra.mxu0 0.0
  %181 = vmatprep.subr.mxu0 0.0
  %182 = vmatpush1.msra.mxu0 0.0
  %183 = vmatprep.subr.mxu0 0.0
  %184 = vmatpush1.msra.mxu0 0.0
  %185 = vmatprep.subr.mxu0 0.0
  %186 = vmatpush1.msra.mxu0 0.0
  %187 = vmatprep.subr.mxu0 0.0
  %188 = vmatpush1.msra.mxu0 0.0
  %189 = vmatprep.subr.mxu0 0.0
  %190 = vmatpush1.msra.mxu0 0.0
  %191 = vmatprep.subr.mxu0 0.0
  %192 = vmatpush1.msra.mxu0 0.0
  %193 = vmatprep.subr.mxu0 0.0
  %194 = vmatpush1.msra.mxu0 0.0
  %195 = vmatprep.mubr.f32.mxu0 0.0
  %196 = vmatmul.mubr.f32.gmra.mrb[0].mxu0 %v80
  %v197 = vpop.f32.mrb[0].mxu0
  %v198 = vadd.f32 %v76, %v197
  %v199 = vpop.f32.mrb[0].mxu0
  %200 = vmatprep.mubr.f32.mxu0 0.0
  %201 = vmatmul.mubr.f32.gmra.mrb[0].mxu0 %v83
  %v202 = vpop.f32.mrb[0].mxu0
  %v203 = vadd.f32 %v76, %v202
  %v204 = vpop.f32.mrb[0].mxu0
  %205 = vmatprep.mubr.f32.mxu0 0.0
  %206 = vmatmul.mubr.f32.gmra.mrb[0].mxu0 %v86
  %v207 = vpop.f32.mrb[0].mxu0
  %v208 = vadd.f32 %v76, %v207
  %v209 = vpop.f32.mrb[0].mxu0
  %210 = vmatprep.mubr.f32.mxu0 0.0
  %211 = vmatmul.mubr.f32.gmra.mrb[0].mxu0 %v89
  %v212 = vpop.f32.mrb[0].mxu0
  %v213 = vadd.f32 %v76, %v212
  %v214 = vpop.f32.mrb[0].mxu0
  %215 = vmatprep.mubr.f32.mxu0 0.0
  %216 = vmatmul.mubr.f32.gmra.mrb[0].mxu0 %v92
  %v217 = vpop.f32.mrb[0].mxu0
  %v218 = vadd.f32 %v76, %v217
  %v219 = vpop.f32.mrb[0].mxu0
  %220 = vmatprep.mubr.f32.mxu0 0.0
  %221 = vmatmul.mubr.f32.gmra.mrb[0].mxu0 %v95
  %v222 = vpop.f32.mrb[0].mxu0
  %v223 = vadd.f32 %v76, %v222
  %v224 = vpop.f32.mrb[0].mxu0
  %225 = vmatprep.mubr.f32.mxu0 0.0
  %226 = vmatmul.mubr.f32.gmra.mrb[0].mxu0 %v98
  %v227 = vpop.f32.mrb[0].mxu0
  %v228 = vadd.f32 %v76, %v227
  %v229 = vpop.f32.mrb[0].mxu0
  %230 = vmatprep.mubr.f32.mxu0 0.0
  %231 = vmatmul.mubr.f32.gmra.mrb[0].mxu0 %v101
  %v232 = vpop.f32.mrb[0].mxu0
  %v233 = vadd.f32 %v76, %v232
  %v234 = vpop.f32.mrb[0].mxu0
  %235 = vmatprep.mubr.f32.mxu0 0.0
  %236 = vmatmul.mubr.f32.gmra.mrb[0].mxu0 %v104
  %v237 = vpop.f32.mrb[0].mxu0
  %v238 = vadd.f32 %v76, %v237
  %v239 = vpop.f32.mrb[0].mxu0
  %240 = vmatprep.mubr.f32.mxu0 0.0
  %241 = vmatmul.mubr.f32.gmra.mrb[0].mxu0 %v107
  %v242 = vpop.f32.mrb[0].mxu0
  %v243 = vadd.f32 %v76, %v242
  %v244 = vpop.f32.mrb[0].mxu0
  %245 = vmatprep.mubr.f32.mxu0 0.0
  %246 = vmatmul.mubr.f32.gmra.mrb[0].mxu0 %v110
  %v247 = vpop.f32.mrb[0].mxu0
  %v248 = vadd.f32 %v76, %v247
  %v249 = vpop.f32.mrb[0].mxu0
  %250 = vmatprep.mubr.f32.mxu0 0.0
  %251 = vmatmul.mubr.f32.gmra.mrb[0].mxu0 %v113
  %v252 = vpop.f32.mrb[0].mxu0
  %v253 = vadd.f32 %v76, %v252
  %v254 = vpop.f32.mrb[0].mxu0
  %255 = vmatprep.mubr.f32.mxu0 0.0
  %256 = vmatmul.mubr.f32.gmra.mrb[0].mxu0 %v116
  %v257 = vpop.f32.mrb[0].mxu0
  %v258 = vadd.f32 %v76, %v257
  %v259 = vpop.f32.mrb[0].mxu0
  %260 = vmatprep.mubr.f32.mxu0 0.0
  %261 = vmatmul.mubr.f32.gmra.mrb[0].mxu0 %v119
  %v262 = vpop.f32.mrb[0].mxu0
  %v263 = vadd.f32 %v76, %v262
  %v264 = vpop.f32.mrb[0].mxu0
  %265 = vmatprep.mubr.f32.mxu0 0.0
  %266 = vmatmul.mubr.f32.gmra.mrb[0].mxu0 %v122
  %v267 = vpop.f32.mrb[0].mxu0
  %v268 = vadd.f32 %v76, %v267
  %v269 = vpop.f32.mrb[0].mxu0
  %270 = vmatprep.mubr.f32.mxu0 0.0
  %271 = vmatmul.mubr.f32.gmra.mrb[0].mxu0 %v125
  %v272 = vpop.f32.mrb[0].mxu0
  %v273 = vadd.f32 %v76, %v272
  %v274 = vpop.f32.mrb[0].mxu0
  %275 = vdwg.mxu0
  %v276 = vmax.f32 %v198, 0.0
  %v277 = vmax.f32 %v203, 0.0
  %v278 = vmax.f32 %v208, 0.0
  %v279 = vmax.f32 %v213, 0.0
  %v280 = vmax.f32 %v218, 0.0
  %v281 = vmax.f32 %v223, 0.0
  %v282 = vmax.f32 %v228, 0.0
  %v283 = vmax.f32 %v233, 0.0
  %v284 = vmax.f32 %v238, 0.0
  %v285 = vmax.f32 %v243, 0.0
  %v286 = vmax.f32 %v248, 0.0
  %v287 = vmax.f32 %v253, 0.0
  %v288 = vmax.f32 %v258, 0.0
  %v289 = vmax.f32 %v263, 0.0
  %v290 = vmax.f32 %v268, 0.0
  %v291 = vmax.f32 %v273, 0.0
  %vm292 = vcmask 130048
  %293 = vst.msk [vmem:[#allocation2] sm:$0xff] %vm292, %v276
  %294 = vst.msk [vmem:[#allocation2 + $0x8] sm:$0xff] %vm292, %v277
  %295 = vst.msk [vmem:[#allocation2 + $0x10] sm:$0xff] %vm292, %v278
  %296 = vst.msk [vmem:[#allocation2 + $0x18] sm:$0xff] %vm292, %v279
  %297 = vst.msk [vmem:[#allocation2 + $0x20] sm:$0xff] %vm292, %v280
  %298 = vst.msk [vmem:[#allocation2 + $0x28] sm:$0xff] %vm292, %v281
  %299 = vst.msk [vmem:[#allocation2 + $0x30] sm:$0xff] %vm292, %v282
  %300 = vst.msk [vmem:[#allocation2 + $0x38] sm:$0xff] %vm292, %v283
  %301 = vst.msk [vmem:[#allocation2 + $0x40] sm:$0xff] %vm292, %v284
  %302 = vst.msk [vmem:[#allocation2 + $0x48] sm:$0xff] %vm292, %v285
  %303 = vst.msk [vmem:[#allocation2 + $0x50] sm:$0xff] %vm292, %v286
  %304 = vst.msk [vmem:[#allocation2 + $0x58] sm:$0xff] %vm292, %v287
  %305 = vst.msk [vmem:[#allocation2 + $0x60] sm:$0xff] %vm292, %v288
  %306 = vst.msk [vmem:[#allocation2 + $0x68] sm:$0xff] %vm292, %v289
  %307 = vst.msk [vmem:[#allocation2 + $0x70] sm:$0xff] %vm292, %v290
  %308 = vst.msk [vmem:[#allocation2 + $0x78] sm:$0xff] %vm292, %v291
  %v309 = vld [vmem:[#allocation2] sm:$0xff]
  %v310 = vld [vmem:[#allocation2 + $0x8] sm:$0x7]
  %v311 = vld [vmem:[%s4] sm:$0xff]
  %v312 = vld [vmem:[%s4 + $0x8] sm:$0xff]
  %v313 = vld [vmem:[#allocation2 + $0x10] sm:$0xff]
  %v314 = vld [vmem:[#allocation2 + $0x18] sm:$0x7]
  %s315 = scalar_lea.vmem %s4, 16
  %v316 = vld [vmem:[%s315] sm:$0xff]
  %v317 = vld [vmem:[%s315 + $0x8] sm:$0xff]
  %v319 = vsel %vm292, %v313, 0
  %v322 = vsel %vm292, %v314, 0
  %324 = vmatprep.subr.mxu0 0.0
  %325 = vmatpush1.msra.mxu0 %v316
  %326 = vmatprep.subr.mxu0 0.0
  %327 = vmatpush1.msra.mxu0 %v317
  %328 = vmatprep.subr.mxu0 0.0
  %329 = vmatpush1.msra.mxu0 0.0
  %330 = vmatprep.subr.mxu0 0.0
  %331 = vmatpush1.msra.mxu0 0.0
  %332 = vmatprep.subr.mxu0 0.0
  %333 = vmatpush1.msra.mxu0 0.0
  %334 = vmatprep.subr.mxu0 0.0
  %335 = vmatpush1.msra.mxu0 0.0
  %336 = vmatprep.subr.mxu0 0.0
  %337 = vmatpush1.msra.mxu0 0.0
  %338 = vmatprep.subr.mxu0 0.0
  %339 = vmatpush1.msra.mxu0 0.0
  %340 = vmatprep.subr.mxu0 0.0
  %341 = vmatpush1.msra.mxu0 0.0
  %342 = vmatprep.subr.mxu0 0.0
  %343 = vmatpush1.msra.mxu0 0.0
  %344 = vmatprep.subr.mxu0 0.0
  %345 = vmatpush1.msra.mxu0 0.0
  %346 = vmatprep.subr.mxu0 0.0
  %347 = vmatpush1.msra.mxu0 0.0
  %348 = vmatprep.subr.mxu0 0.0
  %349 = vmatpush1.msra.mxu0 0.0
  %350 = vmatprep.subr.mxu0 0.0
  %351 = vmatpush1.msra.mxu0 0.0
  %352 = vmatprep.subr.mxu0 0.0
  %353 = vmatpush1.msra.mxu0 0.0
  %354 = vmatprep.subr.mxu0 0.0
  %355 = vmatpush1.msra.mxu0 0.0
  %356 = vmatprep.subr.mxu0 0.0
  %357 = vmatpush1.msra.mxu0 0.0
  %358 = vmatprep.subr.mxu0 0.0
  %359 = vmatpush1.msra.mxu0 0.0
  %360 = vmatprep.subr.mxu0 0.0
  %361 = vmatpush1.msra.mxu0 0.0
  %362 = vmatprep.subr.mxu0 0.0
  %363 = vmatpush1.msra.mxu0 0.0
  %364 = vmatprep.subr.mxu0 0.0
  %365 = vmatpush1.msra.mxu0 0.0
  %366 = vmatprep.subr.mxu0 0.0
  %367 = vmatpush1.msra.mxu0 0.0
  %368 = vmatprep.subr.mxu0 0.0
  %369 = vmatpush1.msra.mxu0 0.0
  %370 = vmatprep.subr.mxu0 0.0
  %371 = vmatpush1.msra.mxu0 0.0
  %372 = vmatprep.subr.mxu0 0.0
  %373 = vmatpush1.msra.mxu0 0.0
  %374 = vmatprep.subr.mxu0 0.0
  %375 = vmatpush1.msra.mxu0 0.0
  %376 = vmatprep.subr.mxu0 0.0
  %377 = vmatpush1.msra.mxu0 0.0
  %378 = vmatprep.subr.mxu0 0.0
  %379 = vmatpush1.msra.mxu0 0.0
  %380 = vmatprep.subr.mxu0 0.0
  %381 = vmatpush1.msra.mxu0 0.0
  %382 = vmatprep.subr.mxu0 0.0
  %383 = vmatpush1.msra.mxu0 0.0
  %384 = vmatprep.subr.mxu0 0.0
  %385 = vmatpush1.msra.mxu0 0.0
  %386 = vmatprep.subr.mxu0 0.0
  %387 = vmatpush1.msra.mxu0 0.0
  %388 = vmatprep.mubr.f32.mxu0 0.0
  %389 = vmatmul.mubr.f32.gmra.mrb[0].mxu0 %v319
  %v390 = vpop.f32.mrb[0].mxu0
  %v391 = vadd.f32 0.0, %v390
  %v392 = vpop.f32.mrb[0].mxu0
  %393 = vmatprep.mubr.f32.mxu0 0.0
  %394 = vmatmul.mubr.f32.gmra.mrb[0].mxu0 %v322
  %v395 = vpop.f32.mrb[0].mxu0
  %v396 = vadd.f32 0.0, %v395
  %v397 = vpop.f32.mrb[0].mxu0
  %398 = vdwg.mxu0
  %v400 = vsel %vm292, %v309, 0
  %v403 = vsel %vm292, %v310, 0
  %405 = vmatprep.subr.mxu0 0.0
  %406 = vmatpush1.msra.mxu0 %v311
  %407 = vmatprep.subr.mxu0 0.0
  %408 = vmatpush1.msra.mxu0 %v312
  %409 = vmatprep.subr.mxu0 0.0
  %410 = vmatpush1.msra.mxu0 0.0
  %411 = vmatprep.subr.mxu0 0.0
  %412 = vmatpush1.msra.mxu0 0.0
  %413 = vmatprep.subr.mxu0 0.0
  %414 = vmatpush1.msra.mxu0 0.0
  %415 = vmatprep.subr.mxu0 0.0
  %416 = vmatpush1.msra.mxu0 0.0
  %417 = vmatprep.subr.mxu0 0.0
  %418 = vmatpush1.msra.mxu0 0.0
  %419 = vmatprep.subr.mxu0 0.0
  %420 = vmatpush1.msra.mxu0 0.0
  %421 = vmatprep.subr.mxu0 0.0
  %422 = vmatpush1.msra.mxu0 0.0
  %423 = vmatprep.subr.mxu0 0.0
  %424 = vmatpush1.msra.mxu0 0.0
  %425 = vmatprep.subr.mxu0 0.0
  %426 = vmatpush1.msra.mxu0 0.0
  %427 = vmatprep.subr.mxu0 0.0
  %428 = vmatpush1.msra.mxu0 0.0
  %429 = vmatprep.subr.mxu0 0.0
  %430 = vmatpush1.msra.mxu0 0.0
  %431 = vmatprep.subr.mxu0 0.0
  %432 = vmatpush1.msra.mxu0 0.0
  %433 = vmatprep.subr.mxu0 0.0
  %434 = vmatpush1.msra.mxu0 0.0
  %435 = vmatprep.subr.mxu0 0.0
  %436 = vmatpush1.msra.mxu0 0.0
  %437 = vmatprep.subr.mxu0 0.0
  %438 = vmatpush1.msra.mxu0 0.0
  %439 = vmatprep.subr.mxu0 0.0
  %440 = vmatpush1.msra.mxu0 0.0
  %441 = vmatprep.subr.mxu0 0.0
  %442 = vmatpush1.msra.mxu0 0.0
  %443 = vmatprep.subr.mxu0 0.0
  %444 = vmatpush1.msra.mxu0 0.0
  %445 = vmatprep.subr.mxu0 0.0
  %446 = vmatpush1.msra.mxu0 0.0
  %447 = vmatprep.subr.mxu0 0.0
  %448 = vmatpush1.msra.mxu0 0.0
  %449 = vmatprep.subr.mxu0 0.0
  %450 = vmatpush1.msra.mxu0 0.0
  %451 = vmatprep.subr.mxu0 0.0
  %452 = vmatpush1.msra.mxu0 0.0
  %453 = vmatprep.subr.mxu0 0.0
  %454 = vmatpush1.msra.mxu0 0.0
  %455 = vmatprep.subr.mxu0 0.0
  %456 = vmatpush1.msra.mxu0 0.0
  %457 = vmatprep.subr.mxu0 0.0
  %458 = vmatpush1.msra.mxu0 0.0
  %459 = vmatprep.subr.mxu0 0.0
  %460 = vmatpush1.msra.mxu0 0.0
  %461 = vmatprep.subr.mxu0 0.0
  %462 = vmatpush1.msra.mxu0 0.0
  %463 = vmatprep.subr.mxu0 0.0
  %464 = vmatpush1.msra.mxu0 0.0
  %465 = vmatprep.subr.mxu0 0.0
  %466 = vmatpush1.msra.mxu0 0.0
  %467 = vmatprep.subr.mxu0 0.0
  %468 = vmatpush1.msra.mxu0 0.0
  %469 = vmatprep.mubr.f32.mxu0 0.0
  %470 = vmatmul.mubr.f32.gmra.mrb[0].mxu0 %v400
  %v471 = vpop.f32.mrb[0].mxu0
  %v472 = vadd.f32 %v391, %v471
  %v473 = vpop.f32.mrb[0].mxu0
  %474 = vmatprep.mubr.f32.mxu0 0.0
  %475 = vmatmul.mubr.f32.gmra.mrb[0].mxu0 %v403
  %v476 = vpop.f32.mrb[0].mxu0
  %v477 = vadd.f32 %v396, %v476
  %v478 = vpop.f32.mrb[0].mxu0
  %479 = vdwg.mxu0
  %v480 = vld [vmem:[#allocation2 + $0x1] sm:$0xff]
  %v481 = vld [vmem:[#allocation2 + $0x9] sm:$0x7]
  %s482 = scalar_lea.vmem %s4, 32
  %v483 = vld [vmem:[%s482] sm:$0xff]
  %v484 = vld [vmem:[%s482 + $0x8] sm:$0xff]
  %v486 = vsel %vm292, %v480, 0
  %v489 = vsel %vm292, %v481, 0
  %491 = vmatprep.subr.mxu0 0.0
  %492 = vmatpush1.msra.mxu0 %v483
  %493 = vmatprep.subr.mxu0 0.0
  %494 = vmatpush1.msra.mxu0 %v484
  %495 = vmatprep.subr.mxu0 0.0
  %496 = vmatpush1.msra.mxu0 0.0
  %497 = vmatprep.subr.mxu0 0.0
  %498 = vmatpush1.msra.mxu0 0.0
  %499 = vmatprep.subr.mxu0 0.0
  %500 = vmatpush1.msra.mxu0 0.0
  %501 = vmatprep.subr.mxu0 0.0
  %502 = vmatpush1.msra.mxu0 0.0
  %503 = vmatprep.subr.mxu0 0.0
  %504 = vmatpush1.msra.mxu0 0.0
  %505 = vmatprep.subr.mxu0 0.0
  %506 = vmatpush1.msra.mxu0 0.0
  %507 = vmatprep.subr.mxu0 0.0
  %508 = vmatpush1.msra.mxu0 0.0
  %509 = vmatprep.subr.mxu0 0.0
  %510 = vmatpush1.msra.mxu0 0.0
  %511 = vmatprep.subr.mxu0 0.0
  %512 = vmatpush1.msra.mxu0 0.0
  %513 = vmatprep.subr.mxu0 0.0
  %514 = vmatpush1.msra.mxu0 0.0
  %515 = vmatprep.subr.mxu0 0.0
  %516 = vmatpush1.msra.mxu0 0.0
  %517 = vmatprep.subr.mxu0 0.0
  %518 = vmatpush1.msra.mxu0 0.0
  %519 = vmatprep.subr.mxu0 0.0
  %520 = vmatpush1.msra.mxu0 0.0
  %521 = vmatprep.subr.mxu0 0.0
  %522 = vmatpush1.msra.mxu0 0.0
  %523 = vmatprep.subr.mxu0 0.0
  %524 = vmatpush1.msra.mxu0 0.0
  %525 = vmatprep.subr.mxu0 0.0
  %526 = vmatpush1.msra.mxu0 0.0
  %527 = vmatprep.subr.mxu0 0.0
  %528 = vmatpush1.msra.mxu0 0.0
  %529 = vmatprep.subr.mxu0 0.0
  %530 = vmatpush1.msra.mxu0 0.0
  %531 = vmatprep.subr.mxu0 0.0
  %532 = vmatpush1.msra.mxu0 0.0
  %533 = vmatprep.subr.mxu0 0.0
  %534 = vmatpush1.msra.mxu0 0.0
  %535 = vmatprep.subr.mxu0 0.0
  %536 = vmatpush1.msra.mxu0 0.0
  %537 = vmatprep.subr.mxu0 0.0
  %538 = vmatpush1.msra.mxu0 0.0
  %539 = vmatprep.subr.mxu0 0.0
  %540 = vmatpush1.msra.mxu0 0.0
  %541 = vmatprep.subr.mxu0 0.0
  %542 = vmatpush1.msra.mxu0 0.0
  %543 = vmatprep.subr.mxu0 0.0
  %544 = vmatpush1.msra.mxu0 0.0
  %545 = vmatprep.subr.mxu0 0.0
  %546 = vmatpush1.msra.mxu0 0.0
  %547 = vmatprep.subr.mxu0 0.0
  %548 = vmatpush1.msra.mxu0 0.0
  %549 = vmatprep.subr.mxu0 0.0
  %550 = vmatpush1.msra.mxu0 0.0
  %551 = vmatprep.subr.mxu0 0.0
  %552 = vmatpush1.msra.mxu0 0.0
  %553 = vmatprep.subr.mxu0 0.0
  %554 = vmatpush1.msra.mxu0 0.0
  %555 = vmatprep.mubr.f32.mxu0 0.0
  %556 = vmatmul.mubr.f32.gmra.mrb[0].mxu0 %v486
  %v557 = vpop.f32.mrb[0].mxu0
  %v558 = vadd.f32 0.0, %v557
  %v559 = vpop.f32.mrb[0].mxu0
  %560 = vmatprep.mubr.f32.mxu0 0.0
  %561 = vmatmul.mubr.f32.gmra.mrb[0].mxu0 %v489
  %v562 = vpop.f32.mrb[0].mxu0
  %v563 = vadd.f32 0.0, %v562
  %v564 = vpop.f32.mrb[0].mxu0
  %565 = vdwg.mxu0
  %v566 = vadd.f32 %v472, %v558
  %v567 = vadd.f32 %v477, %v563
  %v568 = vld [vmem:[#allocation2 + $0x20] sm:$0xff]
  %v569 = vld [vmem:[#allocation2 + $0x28] sm:$0x7]
  %s570 = scalar_lea.vmem %s4, 48
  %v571 = vld [vmem:[%s570] sm:$0xff]
  %v572 = vld [vmem:[%s570 + $0x8] sm:$0xff]
  %v574 = vsel %vm292, %v568, 0
  %v577 = vsel %vm292, %v569, 0
  %579 = vmatprep.subr.mxu0 0.0
  %580 = vmatpush1.msra.mxu0 %v571
  %581 = vmatprep.subr.mxu0 0.0
  %582 = vmatpush1.msra.mxu0 %v572
  %583 = vmatprep.subr.mxu0 0.0
  %584 = vmatpush1.msra.mxu0 0.0
  %585 = vmatprep.subr.mxu0 0.0
  %586 = vmatpush1.msra.mxu0 0.0
  %587 = vmatprep.subr.mxu0 0.0
  %588 = vmatpush1.msra.mxu0 0.0
  %589 = vmatprep.subr.mxu0 0.0
  %590 = vmatpush1.msra.mxu0 0.0
  %591 = vmatprep.subr.mxu0 0.0
  %592 = vmatpush1.msra.mxu0 0.0
  %593 = vmatprep.subr.mxu0 0.0
  %594 = vmatpush1.msra.mxu0 0.0
  %595 = vmatprep.subr.mxu0 0.0
  %596 = vmatpush1.msra.mxu0 0.0
  %597 = vmatprep.subr.mxu0 0.0
  %598 = vmatpush1.msra.mxu0 0.0
  %599 = vmatprep.subr.mxu0 0.0
  %600 = vmatpush1.msra.mxu0 0.0
  %601 = vmatprep.subr.mxu0 0.0
  %602 = vmatpush1.msra.mxu0 0.0
  %603 = vmatprep.subr.mxu0 0.0
  %604 = vmatpush1.msra.mxu0 0.0
  %605 = vmatprep.subr.mxu0 0.0
  %606 = vmatpush1.msra.mxu0 0.0
  %607 = vmatprep.subr.mxu0 0.0
  %608 = vmatpush1.msra.mxu0 0.0
  %609 = vmatprep.subr.mxu0 0.0
  %610 = vmatpush1.msra.mxu0 0.0
  %611 = vmatprep.subr.mxu0 0.0
  %612 = vmatpush1.msra.mxu0 0.0
  %613 = vmatprep.subr.mxu0 0.0
  %614 = vmatpush1.msra.mxu0 0.0
  %615 = vmatprep.subr.mxu0 0.0
  %616 = vmatpush1.msra.mxu0 0.0
  %617 = vmatprep.subr.mxu0 0.0
  %618 = vmatpush1.msra.mxu0 0.0
  %619 = vmatprep.subr.mxu0 0.0
  %620 = vmatpush1.msra.mxu0 0.0
  %621 = vmatprep.subr.mxu0 0.0
  %622 = vmatpush1.msra.mxu0 0.0
  %623 = vmatprep.subr.mxu0 0.0
  %624 = vmatpush1.msra.mxu0 0.0
  %625 = vmatprep.subr.mxu0 0.0
  %626 = vmatpush1.msra.mxu0 0.0
  %627 = vmatprep.subr.mxu0 0.0
  %628 = vmatpush1.msra.mxu0 0.0
  %629 = vmatprep.subr.mxu0 0.0
  %630 = vmatpush1.msra.mxu0 0.0
  %631 = vmatprep.subr.mxu0 0.0
  %632 = vmatpush1.msra.mxu0 0.0
  %633 = vmatprep.subr.mxu0 0.0
  %634 = vmatpush1.msra.mxu0 0.0
  %635 = vmatprep.subr.mxu0 0.0
  %636 = vmatpush1.msra.mxu0 0.0
  %637 = vmatprep.subr.mxu0 0.0
  %638 = vmatpush1.msra.mxu0 0.0
  %639 = vmatprep.subr.mxu0 0.0
  %640 = vmatpush1.msra.mxu0 0.0
  %641 = vmatprep.subr.mxu0 0.0
  %642 = vmatpush1.msra.mxu0 0.0
  %643 = vmatprep.mubr.f32.mxu0 0.0
  %644 = vmatmul.mubr.f32.gmra.mrb[0].mxu0 %v574
  %v645 = vpop.f32.mrb[0].mxu0
  %v646 = vadd.f32 0.0, %v645
  %v647 = vpop.f32.mrb[0].mxu0
  %648 = vmatprep.mubr.f32.mxu0 0.0
  %649 = vmatmul.mubr.f32.gmra.mrb[0].mxu0 %v577
  %v650 = vpop.f32.mrb[0].mxu0
  %v651 = vadd.f32 0.0, %v650
  %v652 = vpop.f32.mrb[0].mxu0
  %653 = vdwg.mxu0
  %v654 = vadd.f32 %v566, %v646
  %v655 = vadd.f32 %v567, %v651
  %v656 = vld [vmem:[#allocation2 + $0x30] sm:$0xff]
  %v657 = vld [vmem:[#allocation2 + $0x38] sm:$0x7]
  %s658 = scalar_lea.vmem %s4, 64
  %v659 = vld [vmem:[%s658] sm:$0xff]
  %v660 = vld [vmem:[%s658 + $0x8] sm:$0xff]
  %v662 = vsel %vm292, %v656, 0
  %v665 = vsel %vm292, %v657, 0
  %667 = vmatprep.subr.mxu0 0.0
  %668 = vmatpush1.msra.mxu0 %v659
  %669 = vmatprep.subr.mxu0 0.0
  %670 = vmatpush1.msra.mxu0 %v660
  %671 = vmatprep.subr.mxu0 0.0
  %672 = vmatpush1.msra.mxu0 0.0
  %673 = vmatprep.subr.mxu0 0.0
  %674 = vmatpush1.msra.mxu0 0.0
  %675 = vmatprep.subr.mxu0 0.0
  %676 = vmatpush1.msra.mxu0 0.0
  %677 = vmatprep.subr.mxu0 0.0
  %678 = vmatpush1.msra.mxu0 0.0
  %679 = vmatprep.subr.mxu0 0.0
  %680 = vmatpush1.msra.mxu0 0.0
  %681 = vmatprep.subr.mxu0 0.0
  %682 = vmatpush1.msra.mxu0 0.0
  %683 = vmatprep.subr.mxu0 0.0
  %684 = vmatpush1.msra.mxu0 0.0
  %685 = vmatprep.subr.mxu0 0.0
  %686 = vmatpush1.msra.mxu0 0.0
  %687 = vmatprep.subr.mxu0 0.0
  %688 = vmatpush1.msra.mxu0 0.0
  %689 = vmatprep.subr.mxu0 0.0
  %690 = vmatpush1.msra.mxu0 0.0
  %691 = vmatprep.subr.mxu0 0.0
  %692 = vmatpush1.msra.mxu0 0.0
  %693 = vmatprep.subr.mxu0 0.0
  %694 = vmatpush1.msra.mxu0 0.0
  %695 = vmatprep.subr.mxu0 0.0
  %696 = vmatpush1.msra.mxu0 0.0
  %697 = vmatprep.subr.mxu0 0.0
  %698 = vmatpush1.msra.mxu0 0.0
  %699 = vmatprep.subr.mxu0 0.0
  %700 = vmatpush1.msra.mxu0 0.0
  %701 = vmatprep.subr.mxu0 0.0
  %702 = vmatpush1.msra.mxu0 0.0
  %703 = vmatprep.subr.mxu0 0.0
  %704 = vmatpush1.msra.mxu0 0.0
  %705 = vmatprep.subr.mxu0 0.0
  %706 = vmatpush1.msra.mxu0 0.0
  %707 = vmatprep.subr.mxu0 0.0
  %708 = vmatpush1.msra.mxu0 0.0
  %709 = vmatprep.subr.mxu0 0.0
  %710 = vmatpush1.msra.mxu0 0.0
  %711 = vmatprep.subr.mxu0 0.0
  %712 = vmatpush1.msra.mxu0 0.0
  %713 = vmatprep.subr.mxu0 0.0
  %714 = vmatpush1.msra.mxu0 0.0
  %715 = vmatprep.subr.mxu0 0.0
  %716 = vmatpush1.msra.mxu0 0.0
  %717 = vmatprep.subr.mxu0 0.0
  %718 = vmatpush1.msra.mxu0 0.0
  %719 = vmatprep.subr.mxu0 0.0
  %720 = vmatpush1.msra.mxu0 0.0
  %721 = vmatprep.subr.mxu0 0.0
  %722 = vmatpush1.msra.mxu0 0.0
  %723 = vmatprep.subr.mxu0 0.0
  %724 = vmatpush1.msra.mxu0 0.0
  %725 = vmatprep.subr.mxu0 0.0
  %726 = vmatpush1.msra.mxu0 0.0
  %727 = vmatprep.subr.mxu0 0.0
  %728 = vmatpush1.msra.mxu0 0.0
  %729 = vmatprep.subr.mxu0 0.0
  %730 = vmatpush1.msra.mxu0 0.0
  %731 = vmatprep.mubr.f32.mxu0 0.0
  %732 = vmatmul.mubr.f32.gmra.mrb[0].mxu0 %v662
  %v733 = vpop.f32.mrb[0].mxu0
  %v734 = vadd.f32 0.0, %v733
  %v735 = vpop.f32.mrb[0].mxu0
  %736 = vmatprep.mubr.f32.mxu0 0.0
  %737 = vmatmul.mubr.f32.gmra.mrb[0].mxu0 %v665
  %v738 = vpop.f32.mrb[0].mxu0
  %v739 = vadd.f32 0.0, %v738
  %v740 = vpop.f32.mrb[0].mxu0
  %741 = vdwg.mxu0
  %v742 = vadd.f32 %v654, %v734
  %v743 = vadd.f32 %v655, %v739
  %v744 = vld [vmem:[#allocation2 + $0x21] sm:$0xff]
  %v745 = vld [vmem:[#allocation2 + $0x29] sm:$0x7]
  %s746 = scalar_lea.vmem %s4, 80
  %v747 = vld [vmem:[%s746] sm:$0xff]
  %v748 = vld [vmem:[%s746 + $0x8] sm:$0xff]
  %v750 = vsel %vm292, %v744, 0
  %v753 = vsel %vm292, %v745, 0
  %755 = vmatprep.subr.mxu0 0.0
  %756 = vmatpush1.msra.mxu0 %v747
  %757 = vmatprep.subr.mxu0 0.0
  %758 = vmatpush1.msra.mxu0 %v748
  %759 = vmatprep.subr.mxu0 0.0
  %760 = vmatpush1.msra.mxu0 0.0
  %761 = vmatprep.subr.mxu0 0.0
  %762 = vmatpush1.msra.mxu0 0.0
  %763 = vmatprep.subr.mxu0 0.0
  %764 = vmatpush1.msra.mxu0 0.0
  %765 = vmatprep.subr.mxu0 0.0
  %766 = vmatpush1.msra.mxu0 0.0
  %767 = vmatprep.subr.mxu0 0.0
  %768 = vmatpush1.msra.mxu0 0.0
  %769 = vmatprep.subr.mxu0 0.0
  %770 = vmatpush1.msra.mxu0 0.0
  %771 = vmatprep.subr.mxu0 0.0
  %772 = vmatpush1.msra.mxu0 0.0
  %773 = vmatprep.subr.mxu0 0.0
  %774 = vmatpush1.msra.mxu0 0.0
  %775 = vmatprep.subr.mxu0 0.0
  %776 = vmatpush1.msra.mxu0 0.0
  %777 = vmatprep.subr.mxu0 0.0
  %778 = vmatpush1.msra.mxu0 0.0
  %779 = vmatprep.subr.mxu0 0.0
  %780 = vmatpush1.msra.mxu0 0.0
  %781 = vmatprep.subr.mxu0 0.0
  %782 = vmatpush1.msra.mxu0 0.0
  %783 = vmatprep.subr.mxu0 0.0
  %784 = vmatpush1.msra.mxu0 0.0
  %785 = vmatprep.subr.mxu0 0.0
  %786 = vmatpush1.msra.mxu0 0.0
  %787 = vmatprep.subr.mxu0 0.0
  %788 = vmatpush1.msra.mxu0 0.0
  %789 = vmatprep.subr.mxu0 0.0
  %790 = vmatpush1.msra.mxu0 0.0
  %791 = vmatprep.subr.mxu0 0.0
  %792 = vmatpush1.msra.mxu0 0.0
  %793 = vmatprep.subr.mxu0 0.0
  %794 = vmatpush1.msra.mxu0 0.0
  %795 = vmatprep.subr.mxu0 0.0
  %796 = vmatpush1.msra.mxu0 0.0
  %797 = vmatprep.subr.mxu0 0.0
  %798 = vmatpush1.msra.mxu0 0.0
  %799 = vmatprep.subr.mxu0 0.0
  %800 = vmatpush1.msra.mxu0 0.0
  %801 = vmatprep.subr.mxu0 0.0
  %802 = vmatpush1.msra.mxu0 0.0
  %803 = vmatprep.subr.mxu0 0.0
  %804 = vmatpush1.msra.mxu0 0.0
  %805 = vmatprep.subr.mxu0 0.0
  %806 = vmatpush1.msra.mxu0 0.0
  %807 = vmatprep.subr.mxu0 0.0
  %808 = vmatpush1.msra.mxu0 0.0
  %809 = vmatprep.subr.mxu0 0.0
  %810 = vmatpush1.msra.mxu0 0.0
  %811 = vmatprep.subr.mxu0 0.0
  %812 = vmatpush1.msra.mxu0 0.0
  %813 = vmatprep.subr.mxu0 0.0
  %814 = vmatpush1.msra.mxu0 0.0
  %815 = vmatprep.subr.mxu0 0.0
  %816 = vmatpush1.msra.mxu0 0.0
  %817 = vmatprep.subr.mxu0 0.0
  %818 = vmatpush1.msra.mxu0 0.0
  %819 = vmatprep.mubr.f32.mxu0 0.0
  %820 = vmatmul.mubr.f32.gmra.mrb[0].mxu0 %v750
  %v821 = vpop.f32.mrb[0].mxu0
  %v822 = vadd.f32 0.0, %v821
  %v823 = vpop.f32.mrb[0].mxu0
  %824 = vmatprep.mubr.f32.mxu0 0.0
  %825 = vmatmul.mubr.f32.gmra.mrb[0].mxu0 %v753
  %v826 = vpop.f32.mrb[0].mxu0
  %v827 = vadd.f32 0.0, %v826
  %v828 = vpop.f32.mrb[0].mxu0
  %829 = vdwg.mxu0
  %v830 = vadd.f32 %v742, %v822
  %v831 = vadd.f32 %v743, %v827
  %v832 = vld [vmem:[#allocation2 + $0x4] sm:$0xff]
  %v833 = vld [vmem:[#allocation2 + $0xc] sm:$0x7]
  %s834 = scalar_lea.vmem %s4, 96
  %v835 = vld [vmem:[%s834] sm:$0xff]
  %v836 = vld [vmem:[%s834 + $0x8] sm:$0xff]
  %v838 = vsel %vm292, %v832, 0
  %v841 = vsel %vm292, %v833, 0
  %843 = vmatprep.subr.mxu0 0.0
  %844 = vmatpush1.msra.mxu0 %v835
  %845 = vmatprep.subr.mxu0 0.0
  %846 = vmatpush1.msra.mxu0 %v836
  %847 = vmatprep.subr.mxu0 0.0
  %848 = vmatpush1.msra.mxu0 0.0
  %849 = vmatprep.subr.mxu0 0.0
  %850 = vmatpush1.msra.mxu0 0.0
  %851 = vmatprep.subr.mxu0 0.0
  %852 = vmatpush1.msra.mxu0 0.0
  %853 = vmatprep.subr.mxu0 0.0
  %854 = vmatpush1.msra.mxu0 0.0
  %855 = vmatprep.subr.mxu0 0.0
  %856 = vmatpush1.msra.mxu0 0.0
  %857 = vmatprep.subr.mxu0 0.0
  %858 = vmatpush1.msra.mxu0 0.0
  %859 = vmatprep.subr.mxu0 0.0
  %860 = vmatpush1.msra.mxu0 0.0
  %861 = vmatprep.subr.mxu0 0.0
  %862 = vmatpush1.msra.mxu0 0.0
  %863 = vmatprep.subr.mxu0 0.0
  %864 = vmatpush1.msra.mxu0 0.0
  %865 = vmatprep.subr.mxu0 0.0
  %866 = vmatpush1.msra.mxu0 0.0
  %867 = vmatprep.subr.mxu0 0.0
  %868 = vmatpush1.msra.mxu0 0.0
  %869 = vmatprep.subr.mxu0 0.0
  %870 = vmatpush1.msra.mxu0 0.0
  %871 = vmatprep.subr.mxu0 0.0
  %872 = vmatpush1.msra.mxu0 0.0
  %873 = vmatprep.subr.mxu0 0.0
  %874 = vmatpush1.msra.mxu0 0.0
  %875 = vmatprep.subr.mxu0 0.0
  %876 = vmatpush1.msra.mxu0 0.0
  %877 = vmatprep.subr.mxu0 0.0
  %878 = vmatpush1.msra.mxu0 0.0
  %879 = vmatprep.subr.mxu0 0.0
  %880 = vmatpush1.msra.mxu0 0.0
  %881 = vmatprep.subr.mxu0 0.0
  %882 = vmatpush1.msra.mxu0 0.0
  %883 = vmatprep.subr.mxu0 0.0
  %884 = vmatpush1.msra.mxu0 0.0
  %885 = vmatprep.subr.mxu0 0.0
  %886 = vmatpush1.msra.mxu0 0.0
  %887 = vmatprep.subr.mxu0 0.0
  %888 = vmatpush1.msra.mxu0 0.0
  %889 = vmatprep.subr.mxu0 0.0
  %890 = vmatpush1.msra.mxu0 0.0
  %891 = vmatprep.subr.mxu0 0.0
  %892 = vmatpush1.msra.mxu0 0.0
  %893 = vmatprep.subr.mxu0 0.0
  %894 = vmatpush1.msra.mxu0 0.0
  %895 = vmatprep.subr.mxu0 0.0
  %896 = vmatpush1.msra.mxu0 0.0
  %897 = vmatprep.subr.mxu0 0.0
  %898 = vmatpush1.msra.mxu0 0.0
  %899 = vmatprep.subr.mxu0 0.0
  %900 = vmatpush1.msra.mxu0 0.0
  %901 = vmatprep.subr.mxu0 0.0
  %902 = vmatpush1.msra.mxu0 0.0
  %903 = vmatprep.subr.mxu0 0.0
  %904 = vmatpush1.msra.mxu0 0.0
  %905 = vmatprep.subr.mxu0 0.0
  %906 = vmatpush1.msra.mxu0 0.0
  %907 = vmatprep.mubr.f32.mxu0 0.0
  %908 = vmatmul.mubr.f32.gmra.mrb[0].mxu0 %v838
  %v909 = vpop.f32.mrb[0].mxu0
  %v910 = vadd.f32 0.0, %v909
  %v911 = vpop.f32.mrb[0].mxu0
  %912 = vmatprep.mubr.f32.mxu0 0.0
  %913 = vmatmul.mubr.f32.gmra.mrb[0].mxu0 %v841
  %v914 = vpop.f32.mrb[0].mxu0
  %v915 = vadd.f32 0.0, %v914
  %v916 = vpop.f32.mrb[0].mxu0
  %917 = vdwg.mxu0
  %v918 = vadd.f32 %v830, %v910
  %v919 = vadd.f32 %v831, %v915
  %v920 = vld [vmem:[#allocation2 + $0x14] sm:$0xff]
  %v921 = vld [vmem:[#allocation2 + $0x1c] sm:$0x7]
  %s922 = scalar_lea.vmem %s4, 112
  %v923 = vld [vmem:[%s922] sm:$0xff]
  %v924 = vld [vmem:[%s922 + $0x8] sm:$0xff]
  %v926 = vsel %vm292, %v920, 0
  %v929 = vsel %vm292, %v921, 0
  %931 = vmatprep.subr.mxu0 0.0
  %932 = vmatpush1.msra.mxu0 %v923
  %933 = vmatprep.subr.mxu0 0.0
  %934 = vmatpush1.msra.mxu0 %v924
  %935 = vmatprep.subr.mxu0 0.0
  %936 = vmatpush1.msra.mxu0 0.0
  %937 = vmatprep.subr.mxu0 0.0
  %938 = vmatpush1.msra.mxu0 0.0
  %939 = vmatprep.subr.mxu0 0.0
  %940 = vmatpush1.msra.mxu0 0.0
  %941 = vmatprep.subr.mxu0 0.0
  %942 = vmatpush1.msra.mxu0 0.0
  %943 = vmatprep.subr.mxu0 0.0
  %944 = vmatpush1.msra.mxu0 0.0
  %945 = vmatprep.subr.mxu0 0.0
  %946 = vmatpush1.msra.mxu0 0.0
  %947 = vmatprep.subr.mxu0 0.0
  %948 = vmatpush1.msra.mxu0 0.0
  %949 = vmatprep.subr.mxu0 0.0
  %950 = vmatpush1.msra.mxu0 0.0
  %951 = vmatprep.subr.mxu0 0.0
  %952 = vmatpush1.msra.mxu0 0.0
  %953 = vmatprep.subr.mxu0 0.0
  %954 = vmatpush1.msra.mxu0 0.0
  %955 = vmatprep.subr.mxu0 0.0
  %956 = vmatpush1.msra.mxu0 0.0
  %957 = vmatprep.subr.mxu0 0.0
  %958 = vmatpush1.msra.mxu0 0.0
  %959 = vmatprep.subr.mxu0 0.0
  %960 = vmatpush1.msra.mxu0 0.0
  %961 = vmatprep.subr.mxu0 0.0
  %962 = vmatpush1.msra.mxu0 0.0
  %963 = vmatprep.subr.mxu0 0.0
  %964 = vmatpush1.msra.mxu0 0.0
  %965 = vmatprep.subr.mxu0 0.0
  %966 = vmatpush1.msra.mxu0 0.0
  %967 = vmatprep.subr.mxu0 0.0
  %968 = vmatpush1.msra.mxu0 0.0
  %969 = vmatprep.subr.mxu0 0.0
  %970 = vmatpush1.msra.mxu0 0.0
  %971 = vmatprep.subr.mxu0 0.0
  %972 = vmatpush1.msra.mxu0 0.0
  %973 = vmatprep.subr.mxu0 0.0
  %974 = vmatpush1.msra.mxu0 0.0
  %975 = vmatprep.subr.mxu0 0.0
  %976 = vmatpush1.msra.mxu0 0.0
  %977 = vmatprep.subr.mxu0 0.0
  %978 = vmatpush1.msra.mxu0 0.0
  %979 = vmatprep.subr.mxu0 0.0
  %980 = vmatpush1.msra.mxu0 0.0
  %981 = vmatprep.subr.mxu0 0.0
  %982 = vmatpush1.msra.mxu0 0.0
  %983 = vmatprep.subr.mxu0 0.0
  %984 = vmatpush1.msra.mxu0 0.0
  %985 = vmatprep.subr.mxu0 0.0
  %986 = vmatpush1.msra.mxu0 0.0
  %987 = vmatprep.subr.mxu0 0.0
  %988 = vmatpush1.msra.mxu0 0.0
  %989 = vmatprep.subr.mxu0 0.0
  %990 = vmatpush1.msra.mxu0 0.0
  %991 = vmatprep.subr.mxu0 0.0
  %992 = vmatpush1.msra.mxu0 0.0
  %993 = vmatprep.subr.mxu0 0.0
  %994 = vmatpush1.msra.mxu0 0.0
  %995 = vmatprep.mubr.f32.mxu0 0.0
  %996 = vmatmul.mubr.f32.gmra.mrb[0].mxu0 %v926
  %v997 = vpop.f32.mrb[0].mxu0
  %v998 = vadd.f32 0.0, %v997
  %v999 = vpop.f32.mrb[0].mxu0
  %1000 = vmatprep.mubr.f32.mxu0 0.0
  %1001 = vmatmul.mubr.f32.gmra.mrb[0].mxu0 %v929
  %v1002 = vpop.f32.mrb[0].mxu0
  %v1003 = vadd.f32 0.0, %v1002
  %v1004 = vpop.f32.mrb[0].mxu0
  %1005 = vdwg.mxu0
  %v1006 = vadd.f32 %v918, %v998
  %v1007 = vadd.f32 %v919, %v1003
  %v1008 = vld [vmem:[#allocation2 + $0x5] sm:$0xff]
  %v1009 = vld [vmem:[#allocation2 + $0xd] sm:$0x7]
  %s1010 = scalar_lea.vmem %s4, 128
  %v1011 = vld [vmem:[%s1010] sm:$0xff]
  %v1012 = vld [vmem:[%s1010 + $0x8] sm:$0xff]
  %v1014 = vsel %vm292, %v1008, 0
  %v1017 = vsel %vm292, %v1009, 0
  %1019 = vmatprep.subr.mxu0 0.0
  %1020 = vmatpush1.msra.mxu0 %v1011
  %1021 = vmatprep.subr.mxu0 0.0
  %1022 = vmatpush1.msra.mxu0 %v1012
  %1023 = vmatprep.subr.mxu0 0.0
  %1024 = vmatpush1.msra.mxu0 0.0
  %1025 = vmatprep.subr.mxu0 0.0
  %1026 = vmatpush1.msra.mxu0 0.0
  %1027 = vmatprep.subr.mxu0 0.0
  %1028 = vmatpush1.msra.mxu0 0.0
  %1029 = vmatprep.subr.mxu0 0.0
  %1030 = vmatpush1.msra.mxu0 0.0
  %1031 = vmatprep.subr.mxu0 0.0
  %1032 = vmatpush1.msra.mxu0 0.0
  %1033 = vmatprep.subr.mxu0 0.0
  %1034 = vmatpush1.msra.mxu0 0.0
  %1035 = vmatprep.subr.mxu0 0.0
  %1036 = vmatpush1.msra.mxu0 0.0
  %1037 = vmatprep.subr.mxu0 0.0
  %1038 = vmatpush1.msra.mxu0 0.0
  %1039 = vmatprep.subr.mxu0 0.0
  %1040 = vmatpush1.msra.mxu0 0.0
  %1041 = vmatprep.subr.mxu0 0.0
  %1042 = vmatpush1.msra.mxu0 0.0
  %1043 = vmatprep.subr.mxu0 0.0
  %1044 = vmatpush1.msra.mxu0 0.0
  %1045 = vmatprep.subr.mxu0 0.0
  %1046 = vmatpush1.msra.mxu0 0.0
  %1047 = vmatprep.subr.mxu0 0.0
  %1048 = vmatpush1.msra.mxu0 0.0
  %1049 = vmatprep.subr.mxu0 0.0
  %1050 = vmatpush1.msra.mxu0 0.0
  %1051 = vmatprep.subr.mxu0 0.0
  %1052 = vmatpush1.msra.mxu0 0.0
  %1053 = vmatprep.subr.mxu0 0.0
  %1054 = vmatpush1.msra.mxu0 0.0
  %1055 = vmatprep.subr.mxu0 0.0
  %1056 = vmatpush1.msra.mxu0 0.0
  %1057 = vmatprep.subr.mxu0 0.0
  %1058 = vmatpush1.msra.mxu0 0.0
  %1059 = vmatprep.subr.mxu0 0.0
  %1060 = vmatpush1.msra.mxu0 0.0
  %1061 = vmatprep.subr.mxu0 0.0
  %1062 = vmatpush1.msra.mxu0 0.0
  %1063 = vmatprep.subr.mxu0 0.0
  %1064 = vmatpush1.msra.mxu0 0.0
  %1065 = vmatprep.subr.mxu0 0.0
  %1066 = vmatpush1.msra.mxu0 0.0
  %1067 = vmatprep.subr.mxu0 0.0
  %1068 = vmatpush1.msra.mxu0 0.0
  %1069 = vmatprep.subr.mxu0 0.0
  %1070 = vmatpush1.msra.mxu0 0.0
  %1071 = vmatprep.subr.mxu0 0.0
  %1072 = vmatpush1.msra.mxu0 0.0
  %1073 = vmatprep.subr.mxu0 0.0
  %1074 = vmatpush1.msra.mxu0 0.0
  %1075 = vmatprep.subr.mxu0 0.0
  %1076 = vmatpush1.msra.mxu0 0.0
  %1077 = vmatprep.subr.mxu0 0.0
  %1078 = vmatpush1.msra.mxu0 0.0
  %1079 = vmatprep.subr.mxu0 0.0
  %1080 = vmatpush1.msra.mxu0 0.0
  %1081 = vmatprep.subr.mxu0 0.0
  %1082 = vmatpush1.msra.mxu0 0.0
  %1083 = vmatprep.mubr.f32.mxu0 0.0
  %1084 = vmatmul.mubr.f32.gmra.mrb[0].mxu0 %v1014
  %v1085 = vpop.f32.mrb[0].mxu0
  %v1086 = vadd.f32 0.0, %v1085
  %v1087 = vpop.f32.mrb[0].mxu0
  %1088 = vmatprep.mubr.f32.mxu0 0.0
  %1089 = vmatmul.mubr.f32.gmra.mrb[0].mxu0 %v1017
  %v1090 = vpop.f32.mrb[0].mxu0
  %v1091 = vadd.f32 0.0, %v1090
  %v1092 = vpop.f32.mrb[0].mxu0
  %1093 = vdwg.mxu0
  %v1094 = vadd.f32 %v1006, %v1086
  %v1095 = vadd.f32 %v1007, %v1091
  %v1096 = vld [vmem:[%s5] sm:$0x1]
  %v1098 = vlaneseq
  %v1099 = vshrl.u32 %v1098, 7
  %v1100 = vsub.s32 0, %v1099
  %v1101 = vrot.slane %v1096, %v1100
  %v1103 = vadd.f32 %v1094, %v1101
  %v1104 = vadd.f32 %v1095, %v1101
  %v1105 = vmax.f32 %v1103, 0.0
  %v1106 = vmax.f32 %v1104, 0.0
  %vm1107 = vcmask 261120
  %1108 = vst.msk [vmem:[#allocation3] sm:$0xff] %vm1107, %v1105
  %vm1109 = vcmask 256000
  %1110 = vst.msk [vmem:[#allocation3 + $0x8] sm:$0x7] %vm1109, %v1106
  %v1111 = vld [vmem:[#allocation3] sm:$0x1]
  %v1112 = vld [vmem:[%s6] sm:$0xff]
  %v1113 = vld [vmem:[%s6 + $0x8] sm:$0xff]
  %v1114 = vld [vmem:[%s6 + $0x10] sm:$0xff]
  %v1115 = vld [vmem:[%s6 + $0x18] sm:$0xff]
  %v1116 = vld [vmem:[#allocation3 + $0x1] sm:$0x1]
  %s1117 = scalar_lea.vmem %s6, 32
  %v1118 = vld [vmem:[%s1117] sm:$0xff]
  %v1119 = vld [vmem:[%s1117 + $0x8] sm:$0xff]
  %v1120 = vld [vmem:[%s1117 + $0x10] sm:$0xff]
  %v1121 = vld [vmem:[%s1117 + $0x18] sm:$0xff]
  %v1123 = vsel %vm1107, %v1116, 0
  %1125 = vmatprep.subr.mxu0 0.0
  %1126 = vmatpush1.msra.mxu0 %v1118
  %1127 = vmatprep.subr.mxu0 0.0
  %1128 = vmatpush1.msra.mxu0 %v1119
  %1129 = vmatprep.subr.mxu0 0.0
  %1130 = vmatpush1.msra.mxu0 %v1120
  %1131 = vmatprep.subr.mxu0 0.0
  %1132 = vmatpush1.msra.mxu0 %v1121
  %1133 = vmatprep.subr.mxu0 0.0
  %1134 = vmatpush1.msra.mxu0 0.0
  %1135 = vmatprep.subr.mxu0 0.0
  %1136 = vmatpush1.msra.mxu0 0.0
  %1137 = vmatprep.subr.mxu0 0.0
  %1138 = vmatpush1.msra.mxu0 0.0
  %1139 = vmatprep.subr.mxu0 0.0
  %1140 = vmatpush1.msra.mxu0 0.0
  %1141 = vmatprep.subr.mxu0 0.0
  %1142 = vmatpush1.msra.mxu0 0.0
  %1143 = vmatprep.subr.mxu0 0.0
  %1144 = vmatpush1.msra.mxu0 0.0
  %1145 = vmatprep.subr.mxu0 0.0
  %1146 = vmatpush1.msra.mxu0 0.0
  %1147 = vmatprep.subr.mxu0 0.0
  %1148 = vmatpush1.msra.mxu0 0.0
  %1149 = vmatprep.subr.mxu0 0.0
  %1150 = vmatpush1.msra.mxu0 0.0
  %1151 = vmatprep.subr.mxu0 0.0
  %1152 = vmatpush1.msra.mxu0 0.0
  %1153 = vmatprep.subr.mxu0 0.0
  %1154 = vmatpush1.msra.mxu0 0.0
  %1155 = vmatprep.subr.mxu0 0.0
  %1156 = vmatpush1.msra.mxu0 0.0
  %1157 = vmatprep.subr.mxu0 0.0
  %1158 = vmatpush1.msra.mxu0 0.0
  %1159 = vmatprep.subr.mxu0 0.0
  %1160 = vmatpush1.msra.mxu0 0.0
  %1161 = vmatprep.subr.mxu0 0.0
  %1162 = vmatpush1.msra.mxu0 0.0
  %1163 = vmatprep.subr.mxu0 0.0
  %1164 = vmatpush1.msra.mxu0 0.0
  %1165 = vmatprep.subr.mxu0 0.0
  %1166 = vmatpush1.msra.mxu0 0.0
  %1167 = vmatprep.subr.mxu0 0.0
  %1168 = vmatpush1.msra.mxu0 0.0
  %1169 = vmatprep.subr.mxu0 0.0
  %1170 = vmatpush1.msra.mxu0 0.0
  %1171 = vmatprep.subr.mxu0 0.0
  %1172 = vmatpush1.msra.mxu0 0.0
  %1173 = vmatprep.subr.mxu0 0.0
  %1174 = vmatpush1.msra.mxu0 0.0
  %1175 = vmatprep.subr.mxu0 0.0
  %1176 = vmatpush1.msra.mxu0 0.0
  %1177 = vmatprep.subr.mxu0 0.0
  %1178 = vmatpush1.msra.mxu0 0.0
  %1179 = vmatprep.subr.mxu0 0.0
  %1180 = vmatpush1.msra.mxu0 0.0
  %1181 = vmatprep.subr.mxu0 0.0
  %1182 = vmatpush1.msra.mxu0 0.0
  %1183 = vmatprep.subr.mxu0 0.0
  %1184 = vmatpush1.msra.mxu0 0.0
  %1185 = vmatprep.subr.mxu0 0.0
  %1186 = vmatpush1.msra.mxu0 0.0
  %1187 = vmatprep.subr.mxu0 0.0
  %1188 = vmatpush1.msra.mxu0 0.0
  %1189 = vmatprep.mubr.f32.mxu0 0.0
  %1190 = vmatmul.mubr.f32.gmra.mrb[0].mxu0 %v1123
  %v1191 = vpop.f32.mrb[0].mxu0
  %v1192 = vadd.f32 0.0, %v1191
  %v1193 = vpop.f32.mrb[0].mxu0
  %1194 = vdwg.mxu0
  %v1196 = vsel %vm1107, %v1111, 0
  %1198 = vmatprep.subr.mxu0 0.0
  %1199 = vmatpush1.msra.mxu0 %v1112
  %1200 = vmatprep.subr.mxu0 0.0
  %1201 = vmatpush1.msra.mxu0 %v1113
  %1202 = vmatprep.subr.mxu0 0.0
  %1203 = vmatpush1.msra.mxu0 %v1114
  %1204 = vmatprep.subr.mxu0 0.0
  %1205 = vmatpush1.msra.mxu0 %v1115
  %1206 = vmatprep.subr.mxu0 0.0
  %1207 = vmatpush1.msra.mxu0 0.0
  %1208 = vmatprep.subr.mxu0 0.0
  %1209 = vmatpush1.msra.mxu0 0.0
  %1210 = vmatprep.subr.mxu0 0.0
  %1211 = vmatpush1.msra.mxu0 0.0
  %1212 = vmatprep.subr.mxu0 0.0
  %1213 = vmatpush1.msra.mxu0 0.0
  %1214 = vmatprep.subr.mxu0 0.0
  %1215 = vmatpush1.msra.mxu0 0.0
  %1216 = vmatprep.subr.mxu0 0.0
  %1217 = vmatpush1.msra.mxu0 0.0
  %1218 = vmatprep.subr.mxu0 0.0
  %1219 = vmatpush1.msra.mxu0 0.0
  %1220 = vmatprep.subr.mxu0 0.0
  %1221 = vmatpush1.msra.mxu0 0.0
  %1222 = vmatprep.subr.mxu0 0.0
  %1223 = vmatpush1.msra.mxu0 0.0
  %1224 = vmatprep.subr.mxu0 0.0
  %1225 = vmatpush1.msra.mxu0 0.0
  %1226 = vmatprep.subr.mxu0 0.0
  %1227 = vmatpush1.msra.mxu0 0.0
  %1228 = vmatprep.subr.mxu0 0.0
  %1229 = vmatpush1.msra.mxu0 0.0
  %1230 = vmatprep.subr.mxu0 0.0
  %1231 = vmatpush1.msra.mxu0 0.0
  %1232 = vmatprep.subr.mxu0 0.0
  %1233 = vmatpush1.msra.mxu0 0.0
  %1234 = vmatprep.subr.mxu0 0.0
  %1235 = vmatpush1.msra.mxu0 0.0
  %1236 = vmatprep.subr.mxu0 0.0
  %1237 = vmatpush1.msra.mxu0 0.0
  %1238 = vmatprep.subr.mxu0 0.0
  %1239 = vmatpush1.msra.mxu0 0.0
  %1240 = vmatprep.subr.mxu0 0.0
  %1241 = vmatpush1.msra.mxu0 0.0
  %1242 = vmatprep.subr.mxu0 0.0
  %1243 = vmatpush1.msra.mxu0 0.0
  %1244 = vmatprep.subr.mxu0 0.0
  %1245 = vmatpush1.msra.mxu0 0.0
  %1246 = vmatprep.subr.mxu0 0.0
  %1247 = vmatpush1.msra.mxu0 0.0
  %1248 = vmatprep.subr.mxu0 0.0
  %1249 = vmatpush1.msra.mxu0 0.0
  %1250 = vmatprep.subr.mxu0 0.0
  %1251 = vmatpush1.msra.mxu0 0.0
  %1252 = vmatprep.subr.mxu0 0.0
  %1253 = vmatpush1.msra.mxu0 0.0
  %1254 = vmatprep.subr.mxu0 0.0
  %1255 = vmatpush1.msra.mxu0 0.0
  %1256 = vmatprep.subr.mxu0 0.0
  %1257 = vmatpush1.msra.mxu0 0.0
  %1258 = vmatprep.subr.mxu0 0.0
  %1259 = vmatpush1.msra.mxu0 0.0
  %1260 = vmatprep.subr.mxu0 0.0
  %1261 = vmatpush1.msra.mxu0 0.0
  %1262 = vmatprep.mubr.f32.mxu0 0.0
  %1263 = vmatmul.mubr.f32.gmra.mrb[0].mxu0 %v1196
  %v1264 = vpop.f32.mrb[0].mxu0
  %v1265 = vadd.f32 %v1192, %v1264
  %v1266 = vpop.f32.mrb[0].mxu0
  %1267 = vdwg.mxu0
  %v1268 = vld [vmem:[#allocation3 + $0x2] sm:$0x1]
  %s1269 = scalar_lea.vmem %s6, 64
  %v1270 = vld [vmem:[%s1269] sm:$0xff]
  %v1271 = vld [vmem:[%s1269 + $0x8] sm:$0xff]
  %v1272 = vld [vmem:[%s1269 + $0x10] sm:$0xff]
  %v1273 = vld [vmem:[%s1269 + $0x18] sm:$0xff]
  %v1275 = vsel %vm1107, %v1268, 0
  %1277 = vmatprep.subr.mxu0 0.0
  %1278 = vmatpush1.msra.mxu0 %v1270
  %1279 = vmatprep.subr.mxu0 0.0
  %1280 = vmatpush1.msra.mxu0 %v1271
  %1281 = vmatprep.subr.mxu0 0.0
  %1282 = vmatpush1.msra.mxu0 %v1272
  %1283 = vmatprep.subr.mxu0 0.0
  %1284 = vmatpush1.msra.mxu0 %v1273
  %1285 = vmatprep.subr.mxu0 0.0
  %1286 = vmatpush1.msra.mxu0 0.0
  %1287 = vmatprep.subr.mxu0 0.0
  %1288 = vmatpush1.msra.mxu0 0.0
  %1289 = vmatprep.subr.mxu0 0.0
  %1290 = vmatpush1.msra.mxu0 0.0
  %1291 = vmatprep.subr.mxu0 0.0
  %1292 = vmatpush1.msra.mxu0 0.0
  %1293 = vmatprep.subr.mxu0 0.0
  %1294 = vmatpush1.msra.mxu0 0.0
  %1295 = vmatprep.subr.mxu0 0.0
  %1296 = vmatpush1.msra.mxu0 0.0
  %1297 = vmatprep.subr.mxu0 0.0
  %1298 = vmatpush1.msra.mxu0 0.0
  %1299 = vmatprep.subr.mxu0 0.0
  %1300 = vmatpush1.msra.mxu0 0.0
  %1301 = vmatprep.subr.mxu0 0.0
  %1302 = vmatpush1.msra.mxu0 0.0
  %1303 = vmatprep.subr.mxu0 0.0
  %1304 = vmatpush1.msra.mxu0 0.0
  %1305 = vmatprep.subr.mxu0 0.0
  %1306 = vmatpush1.msra.mxu0 0.0
  %1307 = vmatprep.subr.mxu0 0.0
  %1308 = vmatpush1.msra.mxu0 0.0
  %1309 = vmatprep.subr.mxu0 0.0
  %1310 = vmatpush1.msra.mxu0 0.0
  %1311 = vmatprep.subr.mxu0 0.0
  %1312 = vmatpush1.msra.mxu0 0.0
  %1313 = vmatprep.subr.mxu0 0.0
  %1314 = vmatpush1.msra.mxu0 0.0
  %1315 = vmatprep.subr.mxu0 0.0
  %1316 = vmatpush1.msra.mxu0 0.0
  %1317 = vmatprep.subr.mxu0 0.0
  %1318 = vmatpush1.msra.mxu0 0.0
  %1319 = vmatprep.subr.mxu0 0.0
  %1320 = vmatpush1.msra.mxu0 0.0
  %1321 = vmatprep.subr.mxu0 0.0
  %1322 = vmatpush1.msra.mxu0 0.0
  %1323 = vmatprep.subr.mxu0 0.0
  %1324 = vmatpush1.msra.mxu0 0.0
  %1325 = vmatprep.subr.mxu0 0.0
  %1326 = vmatpush1.msra.mxu0 0.0
  %1327 = vmatprep.subr.mxu0 0.0
  %1328 = vmatpush1.msra.mxu0 0.0
  %1329 = vmatprep.subr.mxu0 0.0
  %1330 = vmatpush1.msra.mxu0 0.0
  %1331 = vmatprep.subr.mxu0 0.0
  %1332 = vmatpush1.msra.mxu0 0.0
  %1333 = vmatprep.subr.mxu0 0.0
  %1334 = vmatpush1.msra.mxu0 0.0
  %1335 = vmatprep.subr.mxu0 0.0
  %1336 = vmatpush1.msra.mxu0 0.0
  %1337 = vmatprep.subr.mxu0 0.0
  %1338 = vmatpush1.msra.mxu0 0.0
  %1339 = vmatprep.subr.mxu0 0.0
  %1340 = vmatpush1.msra.mxu0 0.0
  %1341 = vmatprep.mubr.f32.mxu0 0.0
  %1342 = vmatmul.mubr.f32.gmra.mrb[0].mxu0 %v1275
  %v1343 = vpop.f32.mrb[0].mxu0
  %v1344 = vadd.f32 0.0, %v1343
  %v1345 = vpop.f32.mrb[0].mxu0
  %1346 = vdwg.mxu0
  %v1347 = vadd.f32 %v1265, %v1344
  %v1348 = vld [vmem:[#allocation3 + $0x4] sm:$0x1]
  %s1349 = scalar_lea.vmem %s6, 96
  %v1350 = vld [vmem:[%s1349] sm:$0xff]
  %v1351 = vld [vmem:[%s1349 + $0x8] sm:$0xff]
  %v1352 = vld [vmem:[%s1349 + $0x10] sm:$0xff]
  %v1353 = vld [vmem:[%s1349 + $0x18] sm:$0xff]
  %v1355 = vsel %vm1107, %v1348, 0
  %1357 = vmatprep.subr.mxu0 0.0
  %1358 = vmatpush1.msra.mxu0 %v1350
  %1359 = vmatprep.subr.mxu0 0.0
  %1360 = vmatpush1.msra.mxu0 %v1351
  %1361 = vmatprep.subr.mxu0 0.0
  %1362 = vmatpush1.msra.mxu0 %v1352
  %1363 = vmatprep.subr.mxu0 0.0
  %1364 = vmatpush1.msra.mxu0 %v1353
  %1365 = vmatprep.subr.mxu0 0.0
  %1366 = vmatpush1.msra.mxu0 0.0
  %1367 = vmatprep.subr.mxu0 0.0
  %1368 = vmatpush1.msra.mxu0 0.0
  %1369 = vmatprep.subr.mxu0 0.0
  %1370 = vmatpush1.msra.mxu0 0.0
  %1371 = vmatprep.subr.mxu0 0.0
  %1372 = vmatpush1.msra.mxu0 0.0
  %1373 = vmatprep.subr.mxu0 0.0
  %1374 = vmatpush1.msra.mxu0 0.0
  %1375 = vmatprep.subr.mxu0 0.0
  %1376 = vmatpush1.msra.mxu0 0.0
  %1377 = vmatprep.subr.mxu0 0.0
  %1378 = vmatpush1.msra.mxu0 0.0
  %1379 = vmatprep.subr.mxu0 0.0
  %1380 = vmatpush1.msra.mxu0 0.0
  %1381 = vmatprep.subr.mxu0 0.0
  %1382 = vmatpush1.msra.mxu0 0.0
  %1383 = vmatprep.subr.mxu0 0.0
  %1384 = vmatpush1.msra.mxu0 0.0
  %1385 = vmatprep.subr.mxu0 0.0
  %1386 = vmatpush1.msra.mxu0 0.0
  %1387 = vmatprep.subr.mxu0 0.0
  %1388 = vmatpush1.msra.mxu0 0.0
  %1389 = vmatprep.subr.mxu0 0.0
  %1390 = vmatpush1.msra.mxu0 0.0
  %1391 = vmatprep.subr.mxu0 0.0
  %1392 = vmatpush1.msra.mxu0 0.0
  %1393 = vmatprep.subr.mxu0 0.0
  %1394 = vmatpush1.msra.mxu0 0.0
  %1395 = vmatprep.subr.mxu0 0.0
  %1396 = vmatpush1.msra.mxu0 0.0
  %1397 = vmatprep.subr.mxu0 0.0
  %1398 = vmatpush1.msra.mxu0 0.0
  %1399 = vmatprep.subr.mxu0 0.0
  %1400 = vmatpush1.msra.mxu0 0.0
  %1401 = vmatprep.subr.mxu0 0.0
  %1402 = vmatpush1.msra.mxu0 0.0
  %1403 = vmatprep.subr.mxu0 0.0
  %1404 = vmatpush1.msra.mxu0 0.0
  %1405 = vmatprep.subr.mxu0 0.0
  %1406 = vmatpush1.msra.mxu0 0.0
  %1407 = vmatprep.subr.mxu0 0.0
  %1408 = vmatpush1.msra.mxu0 0.0
  %1409 = vmatprep.subr.mxu0 0.0
  %1410 = vmatpush1.msra.mxu0 0.0
  %1411 = vmatprep.subr.mxu0 0.0
  %1412 = vmatpush1.msra.mxu0 0.0
  %1413 = vmatprep.subr.mxu0 0.0
  %1414 = vmatpush1.msra.mxu0 0.0
  %1415 = vmatprep.subr.mxu0 0.0
  %1416 = vmatpush1.msra.mxu0 0.0
  %1417 = vmatprep.subr.mxu0 0.0
  %1418 = vmatpush1.msra.mxu0 0.0
  %1419 = vmatprep.subr.mxu0 0.0
  %1420 = vmatpush1.msra.mxu0 0.0
  %1421 = vmatprep.mubr.f32.mxu0 0.0
  %1422 = vmatmul.mubr.f32.gmra.mrb[0].mxu0 %v1355
  %v1423 = vpop.f32.mrb[0].mxu0
  %v1424 = vadd.f32 0.0, %v1423
  %v1425 = vpop.f32.mrb[0].mxu0
  %1426 = vdwg.mxu0
  %v1427 = vadd.f32 %v1347, %v1424
  %v1428 = vld [vmem:[#allocation3 + $0x5] sm:$0x1]
  %s1429 = scalar_lea.vmem %s6, 128
  %v1430 = vld [vmem:[%s1429] sm:$0xff]
  %v1431 = vld [vmem:[%s1429 + $0x8] sm:$0xff]
  %v1432 = vld [vmem:[%s1429 + $0x10] sm:$0xff]
  %v1433 = vld [vmem:[%s1429 + $0x18] sm:$0xff]
  %v1435 = vsel %vm1107, %v1428, 0
  %1437 = vmatprep.subr.mxu0 0.0
  %1438 = vmatpush1.msra.mxu0 %v1430
  %1439 = vmatprep.subr.mxu0 0.0
  %1440 = vmatpush1.msra.mxu0 %v1431
  %1441 = vmatprep.subr.mxu0 0.0
  %1442 = vmatpush1.msra.mxu0 %v1432
  %1443 = vmatprep.subr.mxu0 0.0
  %1444 = vmatpush1.msra.mxu0 %v1433
  %1445 = vmatprep.subr.mxu0 0.0
  %1446 = vmatpush1.msra.mxu0 0.0
  %1447 = vmatprep.subr.mxu0 0.0
  %1448 = vmatpush1.msra.mxu0 0.0
  %1449 = vmatprep.subr.mxu0 0.0
  %1450 = vmatpush1.msra.mxu0 0.0
  %1451 = vmatprep.subr.mxu0 0.0
  %1452 = vmatpush1.msra.mxu0 0.0
  %1453 = vmatprep.subr.mxu0 0.0
  %1454 = vmatpush1.msra.mxu0 0.0
  %1455 = vmatprep.subr.mxu0 0.0
  %1456 = vmatpush1.msra.mxu0 0.0
  %1457 = vmatprep.subr.mxu0 0.0
  %1458 = vmatpush1.msra.mxu0 0.0
  %1459 = vmatprep.subr.mxu0 0.0
  %1460 = vmatpush1.msra.mxu0 0.0
  %1461 = vmatprep.subr.mxu0 0.0
  %1462 = vmatpush1.msra.mxu0 0.0
  %1463 = vmatprep.subr.mxu0 0.0
  %1464 = vmatpush1.msra.mxu0 0.0
  %1465 = vmatprep.subr.mxu0 0.0
  %1466 = vmatpush1.msra.mxu0 0.0
  %1467 = vmatprep.subr.mxu0 0.0
  %1468 = vmatpush1.msra.mxu0 0.0
  %1469 = vmatprep.subr.mxu0 0.0
  %1470 = vmatpush1.msra.mxu0 0.0
  %1471 = vmatprep.subr.mxu0 0.0
  %1472 = vmatpush1.msra.mxu0 0.0
  %1473 = vmatprep.subr.mxu0 0.0
  %1474 = vmatpush1.msra.mxu0 0.0
  %1475 = vmatprep.subr.mxu0 0.0
  %1476 = vmatpush1.msra.mxu0 0.0
  %1477 = vmatprep.subr.mxu0 0.0
  %1478 = vmatpush1.msra.mxu0 0.0
  %1479 = vmatprep.subr.mxu0 0.0
  %1480 = vmatpush1.msra.mxu0 0.0
  %1481 = vmatprep.subr.mxu0 0.0
  %1482 = vmatpush1.msra.mxu0 0.0
  %1483 = vmatprep.subr.mxu0 0.0
  %1484 = vmatpush1.msra.mxu0 0.0
  %1485 = vmatprep.subr.mxu0 0.0
  %1486 = vmatpush1.msra.mxu0 0.0
  %1487 = vmatprep.subr.mxu0 0.0
  %1488 = vmatpush1.msra.mxu0 0.0
  %1489 = vmatprep.subr.mxu0 0.0
  %1490 = vmatpush1.msra.mxu0 0.0
  %1491 = vmatprep.subr.mxu0 0.0
  %1492 = vmatpush1.msra.mxu0 0.0
  %1493 = vmatprep.subr.mxu0 0.0
  %1494 = vmatpush1.msra.mxu0 0.0
  %1495 = vmatprep.subr.mxu0 0.0
  %1496 = vmatpush1.msra.mxu0 0.0
  %1497 = vmatprep.subr.mxu0 0.0
  %1498 = vmatpush1.msra.mxu0 0.0
  %1499 = vmatprep.subr.mxu0 0.0
  %1500 = vmatpush1.msra.mxu0 0.0
  %1501 = vmatprep.mubr.f32.mxu0 0.0
  %1502 = vmatmul.mubr.f32.gmra.mrb[0].mxu0 %v1435
  %v1503 = vpop.f32.mrb[0].mxu0
  %v1504 = vadd.f32 0.0, %v1503
  %v1505 = vpop.f32.mrb[0].mxu0
  %1506 = vdwg.mxu0
  %v1507 = vadd.f32 %v1427, %v1504
  %v1508 = vld [vmem:[#allocation3 + $0x6] sm:$0x1]
  %s1509 = scalar_lea.vmem %s6, 160
  %v1510 = vld [vmem:[%s1509] sm:$0xff]
  %v1511 = vld [vmem:[%s1509 + $0x8] sm:$0xff]
  %v1512 = vld [vmem:[%s1509 + $0x10] sm:$0xff]
  %v1513 = vld [vmem:[%s1509 + $0x18] sm:$0xff]
  %v1515 = vsel %vm1107, %v1508, 0
  %1517 = vmatprep.subr.mxu0 0.0
  %1518 = vmatpush1.msra.mxu0 %v1510
  %1519 = vmatprep.subr.mxu0 0.0
  %1520 = vmatpush1.msra.mxu0 %v1511
  %1521 = vmatprep.subr.mxu0 0.0
  %1522 = vmatpush1.msra.mxu0 %v1512
  %1523 = vmatprep.subr.mxu0 0.0
  %1524 = vmatpush1.msra.mxu0 %v1513
  %1525 = vmatprep.subr.mxu0 0.0
  %1526 = vmatpush1.msra.mxu0 0.0
  %1527 = vmatprep.subr.mxu0 0.0
  %1528 = vmatpush1.msra.mxu0 0.0
  %1529 = vmatprep.subr.mxu0 0.0
  %1530 = vmatpush1.msra.mxu0 0.0
  %1531 = vmatprep.subr.mxu0 0.0
  %1532 = vmatpush1.msra.mxu0 0.0
  %1533 = vmatprep.subr.mxu0 0.0
  %1534 = vmatpush1.msra.mxu0 0.0
  %1535 = vmatprep.subr.mxu0 0.0
  %1536 = vmatpush1.msra.mxu0 0.0
  %1537 = vmatprep.subr.mxu0 0.0
  %1538 = vmatpush1.msra.mxu0 0.0
  %1539 = vmatprep.subr.mxu0 0.0
  %1540 = vmatpush1.msra.mxu0 0.0
  %1541 = vmatprep.subr.mxu0 0.0
  %1542 = vmatpush1.msra.mxu0 0.0
  %1543 = vmatprep.subr.mxu0 0.0
  %1544 = vmatpush1.msra.mxu0 0.0
  %1545 = vmatprep.subr.mxu0 0.0
  %1546 = vmatpush1.msra.mxu0 0.0
  %1547 = vmatprep.subr.mxu0 0.0
  %1548 = vmatpush1.msra.mxu0 0.0
  %1549 = vmatprep.subr.mxu0 0.0
  %1550 = vmatpush1.msra.mxu0 0.0
  %1551 = vmatprep.subr.mxu0 0.0
  %1552 = vmatpush1.msra.mxu0 0.0
  %1553 = vmatprep.subr.mxu0 0.0
  %1554 = vmatpush1.msra.mxu0 0.0
  %1555 = vmatprep.subr.mxu0 0.0
  %1556 = vmatpush1.msra.mxu0 0.0
  %1557 = vmatprep.subr.mxu0 0.0
  %1558 = vmatpush1.msra.mxu0 0.0
  %1559 = vmatprep.subr.mxu0 0.0
  %1560 = vmatpush1.msra.mxu0 0.0
  %1561 = vmatprep.subr.mxu0 0.0
  %1562 = vmatpush1.msra.mxu0 0.0
  %1563 = vmatprep.subr.mxu0 0.0
  %1564 = vmatpush1.msra.mxu0 0.0
  %1565 = vmatprep.subr.mxu0 0.0
  %1566 = vmatpush1.msra.mxu0 0.0
  %1567 = vmatprep.subr.mxu0 0.0
  %1568 = vmatpush1.msra.mxu0 0.0
  %1569 = vmatprep.subr.mxu0 0.0
  %1570 = vmatpush1.msra.mxu0 0.0
  %1571 = vmatprep.subr.mxu0 0.0
  %1572 = vmatpush1.msra.mxu0 0.0
  %1573 = vmatprep.subr.mxu0 0.0
  %1574 = vmatpush1.msra.mxu0 0.0
  %1575 = vmatprep.subr.mxu0 0.0
  %1576 = vmatpush1.msra.mxu0 0.0
  %1577 = vmatprep.subr.mxu0 0.0
  %1578 = vmatpush1.msra.mxu0 0.0
  %1579 = vmatprep.subr.mxu0 0.0
  %1580 = vmatpush1.msra.mxu0 0.0
  %1581 = vmatprep.mubr.f32.mxu0 0.0
  %1582 = vmatmul.mubr.f32.gmra.mrb[0].mxu0 %v1515
  %v1583 = vpop.f32.mrb[0].mxu0
  %v1584 = vadd.f32 0.0, %v1583
  %v1585 = vpop.f32.mrb[0].mxu0
  %1586 = vdwg.mxu0
  %v1587 = vadd.f32 %v1507, %v1584
  %v1588 = vld [vmem:[#allocation3 + $0x8] sm:$0x1]
  %s1589 = scalar_lea.vmem %s6, 192
  %v1590 = vld [vmem:[%s1589] sm:$0xff]
  %v1591 = vld [vmem:[%s1589 + $0x8] sm:$0xff]
  %v1592 = vld [vmem:[%s1589 + $0x10] sm:$0xff]
  %v1593 = vld [vmem:[%s1589 + $0x18] sm:$0xff]
  %v1595 = vsel %vm1107, %v1588, 0
  %1597 = vmatprep.subr.mxu0 0.0
  %1598 = vmatpush1.msra.mxu0 %v1590
  %1599 = vmatprep.subr.mxu0 0.0
  %1600 = vmatpush1.msra.mxu0 %v1591
  %1601 = vmatprep.subr.mxu0 0.0
  %1602 = vmatpush1.msra.mxu0 %v1592
  %1603 = vmatprep.subr.mxu0 0.0
  %1604 = vmatpush1.msra.mxu0 %v1593
  %1605 = vmatprep.subr.mxu0 0.0
  %1606 = vmatpush1.msra.mxu0 0.0
  %1607 = vmatprep.subr.mxu0 0.0
  %1608 = vmatpush1.msra.mxu0 0.0
  %1609 = vmatprep.subr.mxu0 0.0
  %1610 = vmatpush1.msra.mxu0 0.0
  %1611 = vmatprep.subr.mxu0 0.0
  %1612 = vmatpush1.msra.mxu0 0.0
  %1613 = vmatprep.subr.mxu0 0.0
  %1614 = vmatpush1.msra.mxu0 0.0
  %1615 = vmatprep.subr.mxu0 0.0
  %1616 = vmatpush1.msra.mxu0 0.0
  %1617 = vmatprep.subr.mxu0 0.0
  %1618 = vmatpush1.msra.mxu0 0.0
  %1619 = vmatprep.subr.mxu0 0.0
  %1620 = vmatpush1.msra.mxu0 0.0
  %1621 = vmatprep.subr.mxu0 0.0
  %1622 = vmatpush1.msra.mxu0 0.0
  %1623 = vmatprep.subr.mxu0 0.0
  %1624 = vmatpush1.msra.mxu0 0.0
  %1625 = vmatprep.subr.mxu0 0.0
  %1626 = vmatpush1.msra.mxu0 0.0
  %1627 = vmatprep.subr.mxu0 0.0
  %1628 = vmatpush1.msra.mxu0 0.0
  %1629 = vmatprep.subr.mxu0 0.0
  %1630 = vmatpush1.msra.mxu0 0.0
  %1631 = vmatprep.subr.mxu0 0.0
  %1632 = vmatpush1.msra.mxu0 0.0
  %1633 = vmatprep.subr.mxu0 0.0
  %1634 = vmatpush1.msra.mxu0 0.0
  %1635 = vmatprep.subr.mxu0 0.0
  %1636 = vmatpush1.msra.mxu0 0.0
  %1637 = vmatprep.subr.mxu0 0.0
  %1638 = vmatpush1.msra.mxu0 0.0
  %1639 = vmatprep.subr.mxu0 0.0
  %1640 = vmatpush1.msra.mxu0 0.0
  %1641 = vmatprep.subr.mxu0 0.0
  %1642 = vmatpush1.msra.mxu0 0.0
  %1643 = vmatprep.subr.mxu0 0.0
  %1644 = vmatpush1.msra.mxu0 0.0
  %1645 = vmatprep.subr.mxu0 0.0
  %1646 = vmatpush1.msra.mxu0 0.0
  %1647 = vmatprep.subr.mxu0 0.0
  %1648 = vmatpush1.msra.mxu0 0.0
  %1649 = vmatprep.subr.mxu0 0.0
  %1650 = vmatpush1.msra.mxu0 0.0
  %1651 = vmatprep.subr.mxu0 0.0
  %1652 = vmatpush1.msra.mxu0 0.0
  %1653 = vmatprep.subr.mxu0 0.0
  %1654 = vmatpush1.msra.mxu0 0.0
  %1655 = vmatprep.subr.mxu0 0.0
  %1656 = vmatpush1.msra.mxu0 0.0
  %1657 = vmatprep.subr.mxu0 0.0
  %1658 = vmatpush1.msra.mxu0 0.0
  %1659 = vmatprep.subr.mxu0 0.0
  %1660 = vmatpush1.msra.mxu0 0.0
  %1661 = vmatprep.mubr.f32.mxu0 0.0
  %1662 = vmatmul.mubr.f32.gmra.mrb[0].mxu0 %v1595
  %v1663 = vpop.f32.mrb[0].mxu0
  %v1664 = vadd.f32 0.0, %v1663
  %v1665 = vpop.f32.mrb[0].mxu0
  %1666 = vdwg.mxu0
  %v1667 = vadd.f32 %v1587, %v1664
  %v1668 = vld [vmem:[#allocation3 + $0x9] sm:$0x1]
  %s1669 = scalar_lea.vmem %s6, 224
  %v1670 = vld [vmem:[%s1669] sm:$0xff]
  %v1671 = vld [vmem:[%s1669 + $0x8] sm:$0xff]
  %v1672 = vld [vmem:[%s1669 + $0x10] sm:$0xff]
  %v1673 = vld [vmem:[%s1669 + $0x18] sm:$0xff]
  %v1675 = vsel %vm1107, %v1668, 0
  %1677 = vmatprep.subr.mxu0 0.0
  %1678 = vmatpush1.msra.mxu0 %v1670
  %1679 = vmatprep.subr.mxu0 0.0
  %1680 = vmatpush1.msra.mxu0 %v1671
  %1681 = vmatprep.subr.mxu0 0.0
  %1682 = vmatpush1.msra.mxu0 %v1672
  %1683 = vmatprep.subr.mxu0 0.0
  %1684 = vmatpush1.msra.mxu0 %v1673
  %1685 = vmatprep.subr.mxu0 0.0
  %1686 = vmatpush1.msra.mxu0 0.0
  %1687 = vmatprep.subr.mxu0 0.0
  %1688 = vmatpush1.msra.mxu0 0.0
  %1689 = vmatprep.subr.mxu0 0.0
  %1690 = vmatpush1.msra.mxu0 0.0
  %1691 = vmatprep.subr.mxu0 0.0
  %1692 = vmatpush1.msra.mxu0 0.0
  %1693 = vmatprep.subr.mxu0 0.0
  %1694 = vmatpush1.msra.mxu0 0.0
  %1695 = vmatprep.subr.mxu0 0.0
  %1696 = vmatpush1.msra.mxu0 0.0
  %1697 = vmatprep.subr.mxu0 0.0
  %1698 = vmatpush1.msra.mxu0 0.0
  %1699 = vmatprep.subr.mxu0 0.0
  %1700 = vmatpush1.msra.mxu0 0.0
  %1701 = vmatprep.subr.mxu0 0.0
  %1702 = vmatpush1.msra.mxu0 0.0
  %1703 = vmatprep.subr.mxu0 0.0
  %1704 = vmatpush1.msra.mxu0 0.0
  %1705 = vmatprep.subr.mxu0 0.0
  %1706 = vmatpush1.msra.mxu0 0.0
  %1707 = vmatprep.subr.mxu0 0.0
  %1708 = vmatpush1.msra.mxu0 0.0
  %1709 = vmatprep.subr.mxu0 0.0
  %1710 = vmatpush1.msra.mxu0 0.0
  %1711 = vmatprep.subr.mxu0 0.0
  %1712 = vmatpush1.msra.mxu0 0.0
  %1713 = vmatprep.subr.mxu0 0.0
  %1714 = vmatpush1.msra.mxu0 0.0
  %1715 = vmatprep.subr.mxu0 0.0
  %1716 = vmatpush1.msra.mxu0 0.0
  %1717 = vmatprep.subr.mxu0 0.0
  %1718 = vmatpush1.msra.mxu0 0.0
  %1719 = vmatprep.subr.mxu0 0.0
  %1720 = vmatpush1.msra.mxu0 0.0
  %1721 = vmatprep.subr.mxu0 0.0
  %1722 = vmatpush1.msra.mxu0 0.0
  %1723 = vmatprep.subr.mxu0 0.0
  %1724 = vmatpush1.msra.mxu0 0.0
  %1725 = vmatprep.subr.mxu0 0.0
  %1726 = vmatpush1.msra.mxu0 0.0
  %1727 = vmatprep.subr.mxu0 0.0
  %1728 = vmatpush1.msra.mxu0 0.0
  %1729 = vmatprep.subr.mxu0 0.0
  %1730 = vmatpush1.msra.mxu0 0.0
  %1731 = vmatprep.subr.mxu0 0.0
  %1732 = vmatpush1.msra.mxu0 0.0
  %1733 = vmatprep.subr.mxu0 0.0
  %1734 = vmatpush1.msra.mxu0 0.0
  %1735 = vmatprep.subr.mxu0 0.0
  %1736 = vmatpush1.msra.mxu0 0.0
  %1737 = vmatprep.subr.mxu0 0.0
  %1738 = vmatpush1.msra.mxu0 0.0
  %1739 = vmatprep.subr.mxu0 0.0
  %1740 = vmatpush1.msra.mxu0 0.0
  %1741 = vmatprep.mubr.f32.mxu0 0.0
  %1742 = vmatmul.mubr.f32.gmra.mrb[0].mxu0 %v1675
  %v1743 = vpop.f32.mrb[0].mxu0
  %v1744 = vadd.f32 0.0, %v1743
  %v1745 = vpop.f32.mrb[0].mxu0
  %1746 = vdwg.mxu0
  %v1747 = vadd.f32 %v1667, %v1744
  %v1748 = vld [vmem:[#allocation3 + $0xa] sm:$0x1]
  %s1749 = scalar_lea.vmem %s6, 256
  %v1750 = vld [vmem:[%s1749] sm:$0xff]
  %v1751 = vld [vmem:[%s1749 + $0x8] sm:$0xff]
  %v1752 = vld [vmem:[%s1749 + $0x10] sm:$0xff]
  %v1753 = vld [vmem:[%s1749 + $0x18] sm:$0xff]
  %v1755 = vsel %vm1107, %v1748, 0
  %1757 = vmatprep.subr.mxu0 0.0
  %1758 = vmatpush1.msra.mxu0 %v1750
  %1759 = vmatprep.subr.mxu0 0.0
  %1760 = vmatpush1.msra.mxu0 %v1751
  %1761 = vmatprep.subr.mxu0 0.0
  %1762 = vmatpush1.msra.mxu0 %v1752
  %1763 = vmatprep.subr.mxu0 0.0
  %1764 = vmatpush1.msra.mxu0 %v1753
  %1765 = vmatprep.subr.mxu0 0.0
  %1766 = vmatpush1.msra.mxu0 0.0
  %1767 = vmatprep.subr.mxu0 0.0
  %1768 = vmatpush1.msra.mxu0 0.0
  %1769 = vmatprep.subr.mxu0 0.0
  %1770 = vmatpush1.msra.mxu0 0.0
  %1771 = vmatprep.subr.mxu0 0.0
  %1772 = vmatpush1.msra.mxu0 0.0
  %1773 = vmatprep.subr.mxu0 0.0
  %1774 = vmatpush1.msra.mxu0 0.0
  %1775 = vmatprep.subr.mxu0 0.0
  %1776 = vmatpush1.msra.mxu0 0.0
  %1777 = vmatprep.subr.mxu0 0.0
  %1778 = vmatpush1.msra.mxu0 0.0
  %1779 = vmatprep.subr.mxu0 0.0
  %1780 = vmatpush1.msra.mxu0 0.0
  %1781 = vmatprep.subr.mxu0 0.0
  %1782 = vmatpush1.msra.mxu0 0.0
  %1783 = vmatprep.subr.mxu0 0.0
  %1784 = vmatpush1.msra.mxu0 0.0
  %1785 = vmatprep.subr.mxu0 0.0
  %1786 = vmatpush1.msra.mxu0 0.0
  %1787 = vmatprep.subr.mxu0 0.0
  %1788 = vmatpush1.msra.mxu0 0.0
  %1789 = vmatprep.subr.mxu0 0.0
  %1790 = vmatpush1.msra.mxu0 0.0
  %1791 = vmatprep.subr.mxu0 0.0
  %1792 = vmatpush1.msra.mxu0 0.0
  %1793 = vmatprep.subr.mxu0 0.0
  %1794 = vmatpush1.msra.mxu0 0.0
  %1795 = vmatprep.subr.mxu0 0.0
  %1796 = vmatpush1.msra.mxu0 0.0
  %1797 = vmatprep.subr.mxu0 0.0
  %1798 = vmatpush1.msra.mxu0 0.0
  %1799 = vmatprep.subr.mxu0 0.0
  %1800 = vmatpush1.msra.mxu0 0.0
  %1801 = vmatprep.subr.mxu0 0.0
  %1802 = vmatpush1.msra.mxu0 0.0
  %1803 = vmatprep.subr.mxu0 0.0
  %1804 = vmatpush1.msra.mxu0 0.0
  %1805 = vmatprep.subr.mxu0 0.0
  %1806 = vmatpush1.msra.mxu0 0.0
  %1807 = vmatprep.subr.mxu0 0.0
  %1808 = vmatpush1.msra.mxu0 0.0
  %1809 = vmatprep.subr.mxu0 0.0
  %1810 = vmatpush1.msra.mxu0 0.0
  %1811 = vmatprep.subr.mxu0 0.0
  %1812 = vmatpush1.msra.mxu0 0.0
  %1813 = vmatprep.subr.mxu0 0.0
  %1814 = vmatpush1.msra.mxu0 0.0
  %1815 = vmatprep.subr.mxu0 0.0
  %1816 = vmatpush1.msra.mxu0 0.0
  %1817 = vmatprep.subr.mxu0 0.0
  %1818 = vmatpush1.msra.mxu0 0.0
  %1819 = vmatprep.subr.mxu0 0.0
  %1820 = vmatpush1.msra.mxu0 0.0
  %1821 = vmatprep.mubr.f32.mxu0 0.0
  %1822 = vmatmul.mubr.f32.gmra.mrb[0].mxu0 %v1755
  %v1823 = vpop.f32.mrb[0].mxu0
  %v1824 = vadd.f32 0.0, %v1823
  %v1825 = vpop.f32.mrb[0].mxu0
  %1826 = vdwg.mxu0
  %v1827 = vadd.f32 %v1747, %v1824
  %v1828 = vld [vmem:[%s7] sm:$0x1]
  %v1829 = vadd.f32 %v1827, %v1828
  %v1830 = vmax.f32 %v1829, 0.0
  %vm1831 = vcmask 516096
  %1832 = vst.msk [vmem:[#allocation4] sm:$0x1] %vm1831, %v1830
  %v1833 = vld [vmem:[#allocation2 + $0x40] sm:$0xff]
  %v1834 = vld [vmem:[#allocation2 + $0x48] sm:$0x7]
  %v1835 = vld [vmem:[%s4] sm:$0xff]
  %v1836 = vld [vmem:[%s4 + $0x8] sm:$0xff]
  %v1837 = vld [vmem:[#allocation2 + $0x50] sm:$0xff]
  %v1838 = vld [vmem:[#allocation2 + $0x58] sm:$0x7]
  %v1839 = vld [vmem:[%s315] sm:$0xff]
  %v1840 = vld [vmem:[%s315 + $0x8] sm:$0xff]
  %v1842 = vsel %vm292, %v1837, 0
  %v1845 = vsel %vm292, %v1838, 0
  %1847 = vmatprep.subr.mxu0 0.0
  %1848 = vmatpush1.msra.mxu0 %v1839
  %1849 = vmatprep.subr.mxu0 0.0
  %1850 = vmatpush1.msra.mxu0 %v1840
  %1851 = vmatprep.subr.mxu0 0.0
  %1852 = vmatpush1.msra.mxu0 0.0
  %1853 = vmatprep.subr.mxu0 0.0
  %1854 = vmatpush1.msra.mxu0 0.0
  %1855 = vmatprep.subr.mxu0 0.0
  %1856 = vmatpush1.msra.mxu0 0.0
  %1857 = vmatprep.subr.mxu0 0.0
  %1858 = vmatpush1.msra.mxu0 0.0
  %1859 = vmatprep.subr.mxu0 0.0
  %1860 = vmatpush1.msra.mxu0 0.0
  %1861 = vmatprep.subr.mxu0 0.0
  %1862 = vmatpush1.msra.mxu0 0.0
  %1863 = vmatprep.subr.mxu0 0.0
  %1864 = vmatpush1.msra.mxu0 0.0
  %1865 = vmatprep.subr.mxu0 0.0
  %1866 = vmatpush1.msra.mxu0 0.0
  %1867 = vmatprep.subr.mxu0 0.0
  %1868 = vmatpush1.msra.mxu0 0.0
  %1869 = vmatprep.subr.mxu0 0.0
  %1870 = vmatpush1.msra.mxu0 0.0
  %1871 = vmatprep.subr.mxu0 0.0
  %1872 = vmatpush1.msra.mxu0 0.0
  %1873 = vmatprep.subr.mxu0 0.0
  %1874 = vmatpush1.msra.mxu0 0.0
  %1875 = vmatprep.subr.mxu0 0.0
  %1876 = vmatpush1.msra.mxu0 0.0
  %1877 = vmatprep.subr.mxu0 0.0
  %1878 = vmatpush1.msra.mxu0 0.0
  %1879 = vmatprep.subr.mxu0 0.0
  %1880 = vmatpush1.msra.mxu0 0.0
  %1881 = vmatprep.subr.mxu0 0.0
  %1882 = vmatpush1.msra.mxu0 0.0
  %1883 = vmatprep.subr.mxu0 0.0
  %1884 = vmatpush1.msra.mxu0 0.0
  %1885 = vmatprep.subr.mxu0 0.0
  %1886 = vmatpush1.msra.mxu0 0.0
  %1887 = vmatprep.subr.mxu0 0.0
  %1888 = vmatpush1.msra.mxu0 0.0
  %1889 = vmatprep.subr.mxu0 0.0
  %1890 = vmatpush1.msra.mxu0 0.0
  %1891 = vmatprep.subr.mxu0 0.0
  %1892 = vmatpush1.msra.mxu0 0.0
  %1893 = vmatprep.subr.mxu0 0.0
  %1894 = vmatpush1.msra.mxu0 0.0
  %1895 = vmatprep.subr.mxu0 0.0
  %1896 = vmatpush1.msra.mxu0 0.0
  %1897 = vmatprep.subr.mxu0 0.0
  %1898 = vmatpush1.msra.mxu0 0.0
  %1899 = vmatprep.subr.mxu0 0.0
  %1900 = vmatpush1.msra.mxu0 0.0
  %1901 = vmatprep.subr.mxu0 0.0
  %1902 = vmatpush1.msra.mxu0 0.0
  %1903 = vmatprep.subr.mxu0 0.0
  %1904 = vmatpush1.msra.mxu0 0.0
  %1905 = vmatprep.subr.mxu0 0.0
  %1906 = vmatpush1.msra.mxu0 0.0
  %1907 = vmatprep.subr.mxu0 0.0
  %1908 = vmatpush1.msra.mxu0 0.0
  %1909 = vmatprep.subr.mxu0 0.0
  %1910 = vmatpush1.msra.mxu0 0.0
  %1911 = vmatprep.mubr.f32.mxu0 0.0
  %1912 = vmatmul.mubr.f32.gmra.mrb[0].mxu0 %v1842
  %v1913 = vpop.f32.mrb[0].mxu0
  %v1914 = vadd.f32 0.0, %v1913
  %v1915 = vpop.f32.mrb[0].mxu0
  %1916 = vmatprep.mubr.f32.mxu0 0.0
  %1917 = vmatmul.mubr.f32.gmra.mrb[0].mxu0 %v1845
  %v1918 = vpop.f32.mrb[0].mxu0
  %v1919 = vadd.f32 0.0, %v1918
  %v1920 = vpop.f32.mrb[0].mxu0
  %1921 = vdwg.mxu0
  %v1923 = vsel %vm292, %v1833, 0
  %v1926 = vsel %vm292, %v1834, 0
  %1928 = vmatprep.subr.mxu0 0.0
  %1929 = vmatpush1.msra.mxu0 %v1835
  %1930 = vmatprep.subr.mxu0 0.0
  %1931 = vmatpush1.msra.mxu0 %v1836
  %1932 = vmatprep.subr.mxu0 0.0
  %1933 = vmatpush1.msra.mxu0 0.0
  %1934 = vmatprep.subr.mxu0 0.0
  %1935 = vmatpush1.msra.mxu0 0.0
  %1936 = vmatprep.subr.mxu0 0.0
  %1937 = vmatpush1.msra.mxu0 0.0
  %1938 = vmatprep.subr.mxu0 0.0
  %1939 = vmatpush1.msra.mxu0 0.0
  %1940 = vmatprep.subr.mxu0 0.0
  %1941 = vmatpush1.msra.mxu0 0.0
  %1942 = vmatprep.subr.mxu0 0.0
  %1943 = vmatpush1.msra.mxu0 0.0
  %1944 = vmatprep.subr.mxu0 0.0
  %1945 = vmatpush1.msra.mxu0 0.0
  %1946 = vmatprep.subr.mxu0 0.0
  %1947 = vmatpush1.msra.mxu0 0.0
  %1948 = vmatprep.subr.mxu0 0.0
  %1949 = vmatpush1.msra.mxu0 0.0
  %1950 = vmatprep.subr.mxu0 0.0
  %1951 = vmatpush1.msra.mxu0 0.0
  %1952 = vmatprep.subr.mxu0 0.0
  %1953 = vmatpush1.msra.mxu0 0.0
  %1954 = vmatprep.subr.mxu0 0.0
  %1955 = vmatpush1.msra.mxu0 0.0
  %1956 = vmatprep.subr.mxu0 0.0
  %1957 = vmatpush1.msra.mxu0 0.0
  %1958 = vmatprep.subr.mxu0 0.0
  %1959 = vmatpush1.msra.mxu0 0.0
  %1960 = vmatprep.subr.mxu0 0.0
  %1961 = vmatpush1.msra.mxu0 0.0
  %1962 = vmatprep.subr.mxu0 0.0
  %1963 = vmatpush1.msra.mxu0 0.0
  %1964 = vmatprep.subr.mxu0 0.0
  %1965 = vmatpush1.msra.mxu0 0.0
  %1966 = vmatprep.subr.mxu0 0.0
  %1967 = vmatpush1.msra.mxu0 0.0
  %1968 = vmatprep.subr.mxu0 0.0
  %1969 = vmatpush1.msra.mxu0 0.0
  %1970 = vmatprep.subr.mxu0 0.0
  %1971 = vmatpush1.msra.mxu0 0.0
  %1972 = vmatprep.subr.mxu0 0.0
  %1973 = vmatpush1.msra.mxu0 0.0
  %1974 = vmatprep.subr.mxu0 0.0
  %1975 = vmatpush1.msra.mxu0 0.0
  %1976 = vmatprep.subr.mxu0 0.0
  %1977 = vmatpush1.msra.mxu0 0.0
  %1978 = vmatprep.subr.mxu0 0.0
  %1979 = vmatpush1.msra.mxu0 0.0
  %1980 = vmatprep.subr.mxu0 0.0
  %1981 = vmatpush1.msra.mxu0 0.0
  %1982 = vmatprep.subr.mxu0 0.0
  %1983 = vmatpush1.msra.mxu0 0.0
  %1984 = vmatprep.subr.mxu0 0.0
  %1985 = vmatpush1.msra.mxu0 0.0
  %1986 = vmatprep.subr.mxu0 0.0
  %1987 = vmatpush1.msra.mxu0 0.0
  %1988 = vmatprep.subr.mxu0 0.0
  %1989 = vmatpush1.msra.mxu0 0.0
  %1990 = vmatprep.subr.mxu0 0.0
  %1991 = vmatpush1.msra.mxu0 0.0
  %1992 = vmatprep.mubr.f32.mxu0 0.0
  %1993 = vmatmul.mubr.f32.gmra.mrb[0].mxu0 %v1923
  %v1994 = vpop.f32.mrb[0].mxu0
  %v1995 = vadd.f32 %v1914, %v1994
  %v1996 = vpop.f32.mrb[0].mxu0
  %1997 = vmatprep.mubr.f32.mxu0 0.0
  %1998 = vmatmul.mubr.f32.gmra.mrb[0].mxu0 %v1926
  %v1999 = vpop.f32.mrb[0].mxu0
  %v2000 = vadd.f32 %v1919, %v1999
  %v2001 = vpop.f32.mrb[0].mxu0
  %2002 = vdwg.mxu0
  %v2003 = vld [vmem:[#allocation2 + $0x41] sm:$0xff]
  %v2004 = vld [vmem:[#allocation2 + $0x49] sm:$0x7]
  %v2005 = vld [vmem:[%s482] sm:$0xff]
  %v2006 = vld [vmem:[%s482 + $0x8] sm:$0xff]
  %v2008 = vsel %vm292, %v2003, 0
  %v2011 = vsel %vm292, %v2004, 0
  %2013 = vmatprep.subr.mxu0 0.0
  %2014 = vmatpush1.msra.mxu0 %v2005
  %2015 = vmatprep.subr.mxu0 0.0
  %2016 = vmatpush1.msra.mxu0 %v2006
  %2017 = vmatprep.subr.mxu0 0.0
  %2018 = vmatpush1.msra.mxu0 0.0
  %2019 = vmatprep.subr.mxu0 0.0
  %2020 = vmatpush1.msra.mxu0 0.0
  %2021 = vmatprep.subr.mxu0 0.0
  %2022 = vmatpush1.msra.mxu0 0.0
  %2023 = vmatprep.subr.mxu0 0.0
  %2024 = vmatpush1.msra.mxu0 0.0
  %2025 = vmatprep.subr.mxu0 0.0
  %2026 = vmatpush1.msra.mxu0 0.0
  %2027 = vmatprep.subr.mxu0 0.0
  %2028 = vmatpush1.msra.mxu0 0.0
  %2029 = vmatprep.subr.mxu0 0.0
  %2030 = vmatpush1.msra.mxu0 0.0
  %2031 = vmatprep.subr.mxu0 0.0
  %2032 = vmatpush1.msra.mxu0 0.0
  %2033 = vmatprep.subr.mxu0 0.0
  %2034 = vmatpush1.msra.mxu0 0.0
  %2035 = vmatprep.subr.mxu0 0.0
  %2036 = vmatpush1.msra.mxu0 0.0
  %2037 = vmatprep.subr.mxu0 0.0
  %2038 = vmatpush1.msra.mxu0 0.0
  %2039 = vmatprep.subr.mxu0 0.0
  %2040 = vmatpush1.msra.mxu0 0.0
  %2041 = vmatprep.subr.mxu0 0.0
  %2042 = vmatpush1.msra.mxu0 0.0
  %2043 = vmatprep.subr.mxu0 0.0
  %2044 = vmatpush1.msra.mxu0 0.0
  %2045 = vmatprep.subr.mxu0 0.0
  %2046 = vmatpush1.msra.mxu0 0.0
  %2047 = vmatprep.subr.mxu0 0.0
  %2048 = vmatpush1.msra.mxu0 0.0
  %2049 = vmatprep.subr.mxu0 0.0
  %2050 = vmatpush1.msra.mxu0 0.0
  %2051 = vmatprep.subr.mxu0 0.0
  %2052 = vmatpush1.msra.mxu0 0.0
  %2053 = vmatprep.subr.mxu0 0.0
  %2054 = vmatpush1.msra.mxu0 0.0
  %2055 = vmatprep.subr.mxu0 0.0
  %2056 = vmatpush1.msra.mxu0 0.0
  %2057 = vmatprep.subr.mxu0 0.0
  %2058 = vmatpush1.msra.mxu0 0.0
  %2059 = vmatprep.subr.mxu0 0.0
  %2060 = vmatpush1.msra.mxu0 0.0
  %2061 = vmatprep.subr.mxu0 0.0
  %2062 = vmatpush1.msra.mxu0 0.0
  %2063 = vmatprep.subr.mxu0 0.0
  %2064 = vmatpush1.msra.mxu0 0.0
  %2065 = vmatprep.subr.mxu0 0.0
  %2066 = vmatpush1.msra.mxu0 0.0
  %2067 = vmatprep.subr.mxu0 0.0
  %2068 = vmatpush1.msra.mxu0 0.0
  %2069 = vmatprep.subr.mxu0 0.0
  %2070 = vmatpush1.msra.mxu0 0.0
  %2071 = vmatprep.subr.mxu0 0.0
  %2072 = vmatpush1.msra.mxu0 0.0
  %2073 = vmatprep.subr.mxu0 0.0
  %2074 = vmatpush1.msra.mxu0 0.0
  %2075 = vmatprep.subr.mxu0 0.0
  %2076 = vmatpush1.msra.mxu0 0.0
  %2077 = vmatprep.mubr.f32.mxu0 0.0
  %2078 = vmatmul.mubr.f32.gmra.mrb[0].mxu0 %v2008
  %v2079 = vpop.f32.mrb[0].mxu0
  %v2080 = vadd.f32 0.0, %v2079
  %v2081 = vpop.f32.mrb[0].mxu0
  %2082 = vmatprep.mubr.f32.mxu0 0.0
  %2083 = vmatmul.mubr.f32.gmra.mrb[0].mxu0 %v2011
  %v2084 = vpop.f32.mrb[0].mxu0
  %v2085 = vadd.f32 0.0, %v2084
  %v2086 = vpop.f32.mrb[0].mxu0
  %2087 = vdwg.mxu0
  %v2088 = vadd.f32 %v1995, %v2080
  %v2089 = vadd.f32 %v2000, %v2085
  %v2090 = vld [vmem:[#allocation2 + $0x60] sm:$0xff]
  %v2091 = vld [vmem:[#allocation2 + $0x68] sm:$0x7]
  %v2092 = vld [vmem:[%s570] sm:$0xff]
  %v2093 = vld [vmem:[%s570 + $0x8] sm:$0xff]
  %v2095 = vsel %vm292, %v2090, 0
  %v2098 = vsel %vm292, %v2091, 0
  %2100 = vmatprep.subr.mxu0 0.0
  %2101 = vmatpush1.msra.mxu0 %v2092
  %2102 = vmatprep.subr.mxu0 0.0
  %2103 = vmatpush1.msra.mxu0 %v2093
  %2104 = vmatprep.subr.mxu0 0.0
  %2105 = vmatpush1.msra.mxu0 0.0
  %2106 = vmatprep.subr.mxu0 0.0
  %2107 = vmatpush1.msra.mxu0 0.0
  %2108 = vmatprep.subr.mxu0 0.0
  %2109 = vmatpush1.msra.mxu0 0.0
  %2110 = vmatprep.subr.mxu0 0.0
  %2111 = vmatpush1.msra.mxu0 0.0
  %2112 = vmatprep.subr.mxu0 0.0
  %2113 = vmatpush1.msra.mxu0 0.0
  %2114 = vmatprep.subr.mxu0 0.0
  %2115 = vmatpush1.msra.mxu0 0.0
  %2116 = vmatprep.subr.mxu0 0.0
  %2117 = vmatpush1.msra.mxu0 0.0
  %2118 = vmatprep.subr.mxu0 0.0
  %2119 = vmatpush1.msra.mxu0 0.0
  %2120 = vmatprep.subr.mxu0 0.0
  %2121 = vmatpush1.msra.mxu0 0.0
  %2122 = vmatprep.subr.mxu0 0.0
  %2123 = vmatpush1.msra.mxu0 0.0
  %2124 = vmatprep.subr.mxu0 0.0
  %2125 = vmatpush1.msra.mxu0 0.0
  %2126 = vmatprep.subr.mxu0 0.0
  %2127 = vmatpush1.msra.mxu0 0.0
  %2128 = vmatprep.subr.mxu0 0.0
  %2129 = vmatpush1.msra.mxu0 0.0
  %2130 = vmatprep.subr.mxu0 0.0
  %2131 = vmatpush1.msra.mxu0 0.0
  %2132 = vmatprep.subr.mxu0 0.0
  %2133 = vmatpush1.msra.mxu0 0.0
  %2134 = vmatprep.subr.mxu0 0.0
  %2135 = vmatpush1.msra.mxu0 0.0
  %2136 = vmatprep.subr.mxu0 0.0
  %2137 = vmatpush1.msra.mxu0 0.0
  %2138 = vmatprep.subr.mxu0 0.0
  %2139 = vmatpush1.msra.mxu0 0.0
  %2140 = vmatprep.subr.mxu0 0.0
  %2141 = vmatpush1.msra.mxu0 0.0
  %2142 = vmatprep.subr.mxu0 0.0
  %2143 = vmatpush1.msra.mxu0 0.0
  %2144 = vmatprep.subr.mxu0 0.0
  %2145 = vmatpush1.msra.mxu0 0.0
  %2146 = vmatprep.subr.mxu0 0.0
  %2147 = vmatpush1.msra.mxu0 0.0
  %2148 = vmatprep.subr.mxu0 0.0
  %2149 = vmatpush1.msra.mxu0 0.0
  %2150 = vmatprep.subr.mxu0 0.0
  %2151 = vmatpush1.msra.mxu0 0.0
  %2152 = vmatprep.subr.mxu0 0.0
  %2153 = vmatpush1.msra.mxu0 0.0
  %2154 = vmatprep.subr.mxu0 0.0
  %2155 = vmatpush1.msra.mxu0 0.0
  %2156 = vmatprep.subr.mxu0 0.0
  %2157 = vmatpush1.msra.mxu0 0.0
  %2158 = vmatprep.subr.mxu0 0.0
  %2159 = vmatpush1.msra.mxu0 0.0
  %2160 = vmatprep.subr.mxu0 0.0
  %2161 = vmatpush1.msra.mxu0 0.0
  %2162 = vmatprep.subr.mxu0 0.0
  %2163 = vmatpush1.msra.mxu0 0.0
  %2164 = vmatprep.mubr.f32.mxu0 0.0
  %2165 = vmatmul.mubr.f32.gmra.mrb[0].mxu0 %v2095
  %v2166 = vpop.f32.mrb[0].mxu0
  %v2167 = vadd.f32 0.0, %v2166
  %v2168 = vpop.f32.mrb[0].mxu0
  %2169 = vmatprep.mubr.f32.mxu0 0.0
  %2170 = vmatmul.mubr.f32.gmra.mrb[0].mxu0 %v2098
  %v2171 = vpop.f32.mrb[0].mxu0
  %v2172 = vadd.f32 0.0, %v2171
  %v2173 = vpop.f32.mrb[0].mxu0
  %2174 = vdwg.mxu0
  %v2175 = vadd.f32 %v2088, %v2167
  %v2176 = vadd.f32 %v2089, %v2172
  %v2177 = vld [vmem:[#allocation2 + $0x70] sm:$0xff]
  %v2178 = vld [vmem:[#allocation2 + $0x78] sm:$0x7]
  %v2179 = vld [vmem:[%s658] sm:$0xff]
  %v2180 = vld [vmem:[%s658 + $0x8] sm:$0xff]
  %v2182 = vsel %vm292, %v2177, 0
  %v2185 = vsel %vm292, %v2178, 0
  %2187 = vmatprep.subr.mxu0 0.0
  %2188 = vmatpush1.msra.mxu0 %v2179
  %2189 = vmatprep.subr.mxu0 0.0
  %2190 = vmatpush1.msra.mxu0 %v2180
  %2191 = vmatprep.subr.mxu0 0.0
  %2192 = vmatpush1.msra.mxu0 0.0
  %2193 = vmatprep.subr.mxu0 0.0
  %2194 = vmatpush1.msra.mxu0 0.0
  %2195 = vmatprep.subr.mxu0 0.0
  %2196 = vmatpush1.msra.mxu0 0.0
  %2197 = vmatprep.subr.mxu0 0.0
  %2198 = vmatpush1.msra.mxu0 0.0
  %2199 = vmatprep.subr.mxu0 0.0
  %2200 = vmatpush1.msra.mxu0 0.0
  %2201 = vmatprep.subr.mxu0 0.0
  %2202 = vmatpush1.msra.mxu0 0.0
  %2203 = vmatprep.subr.mxu0 0.0
  %2204 = vmatpush1.msra.mxu0 0.0
  %2205 = vmatprep.subr.mxu0 0.0
  %2206 = vmatpush1.msra.mxu0 0.0
  %2207 = vmatprep.subr.mxu0 0.0
  %2208 = vmatpush1.msra.mxu0 0.0
  %2209 = vmatprep.subr.mxu0 0.0
  %2210 = vmatpush1.msra.mxu0 0.0
  %2211 = vmatprep.subr.mxu0 0.0
  %2212 = vmatpush1.msra.mxu0 0.0
  %2213 = vmatprep.subr.mxu0 0.0
  %2214 = vmatpush1.msra.mxu0 0.0
  %2215 = vmatprep.subr.mxu0 0.0
  %2216 = vmatpush1.msra.mxu0 0.0
  %2217 = vmatprep.subr.mxu0 0.0
  %2218 = vmatpush1.msra.mxu0 0.0
  %2219 = vmatprep.subr.mxu0 0.0
  %2220 = vmatpush1.msra.mxu0 0.0
  %2221 = vmatprep.subr.mxu0 0.0
  %2222 = vmatpush1.msra.mxu0 0.0
  %2223 = vmatprep.subr.mxu0 0.0
  %2224 = vmatpush1.msra.mxu0 0.0
  %2225 = vmatprep.subr.mxu0 0.0
  %2226 = vmatpush1.msra.mxu0 0.0
  %2227 = vmatprep.subr.mxu0 0.0
  %2228 = vmatpush1.msra.mxu0 0.0
  %2229 = vmatprep.subr.mxu0 0.0
  %2230 = vmatpush1.msra.mxu0 0.0
  %2231 = vmatprep.subr.mxu0 0.0
  %2232 = vmatpush1.msra.mxu0 0.0
  %2233 = vmatprep.subr.mxu0 0.0
  %2234 = vmatpush1.msra.mxu0 0.0
  %2235 = vmatprep.subr.mxu0 0.0
  %2236 = vmatpush1.msra.mxu0 0.0
  %2237 = vmatprep.subr.mxu0 0.0
  %2238 = vmatpush1.msra.mxu0 0.0
  %2239 = vmatprep.subr.mxu0 0.0
  %2240 = vmatpush1.msra.mxu0 0.0
  %2241 = vmatprep.subr.mxu0 0.0
  %2242 = vmatpush1.msra.mxu0 0.0
  %2243 = vmatprep.subr.mxu0 0.0
  %2244 = vmatpush1.msra.mxu0 0.0
  %2245 = vmatprep.subr.mxu0 0.0
  %2246 = vmatpush1.msra.mxu0 0.0
  %2247 = vmatprep.subr.mxu0 0.0
  %2248 = vmatpush1.msra.mxu0 0.0
  %2249 = vmatprep.subr.mxu0 0.0
  %2250 = vmatpush1.msra.mxu0 0.0
  %2251 = vmatprep.mubr.f32.mxu0 0.0
  %2252 = vmatmul.mubr.f32.gmra.mrb[0].mxu0 %v2182
  %v2253 = vpop.f32.mrb[0].mxu0
  %v2254 = vadd.f32 0.0, %v2253
  %v2255 = vpop.f32.mrb[0].mxu0
  %2256 = vmatprep.mubr.f32.mxu0 0.0
  %2257 = vmatmul.mubr.f32.gmra.mrb[0].mxu0 %v2185
  %v2258 = vpop.f32.mrb[0].mxu0
  %v2259 = vadd.f32 0.0, %v2258
  %v2260 = vpop.f32.mrb[0].mxu0
  %2261 = vdwg.mxu0
  %v2262 = vadd.f32 %v2175, %v2254
  %v2263 = vadd.f32 %v2176, %v2259
  %v2264 = vld [vmem:[#allocation2 + $0x61] sm:$0xff]
  %v2265 = vld [vmem:[#allocation2 + $0x69] sm:$0x7]
  %v2266 = vld [vmem:[%s746] sm:$0xff]
  %v2267 = vld [vmem:[%s746 + $0x8] sm:$0xff]
  %v2269 = vsel %vm292, %v2264, 0
  %v2272 = vsel %vm292, %v2265, 0
  %2274 = vmatprep.subr.mxu0 0.0
  %2275 = vmatpush1.msra.mxu0 %v2266
  %2276 = vmatprep.subr.mxu0 0.0
  %2277 = vmatpush1.msra.mxu0 %v2267
  %2278 = vmatprep.subr.mxu0 0.0
  %2279 = vmatpush1.msra.mxu0 0.0
  %2280 = vmatprep.subr.mxu0 0.0
  %2281 = vmatpush1.msra.mxu0 0.0
  %2282 = vmatprep.subr.mxu0 0.0
  %2283 = vmatpush1.msra.mxu0 0.0
  %2284 = vmatprep.subr.mxu0 0.0
  %2285 = vmatpush1.msra.mxu0 0.0
  %2286 = vmatprep.subr.mxu0 0.0
  %2287 = vmatpush1.msra.mxu0 0.0
  %2288 = vmatprep.subr.mxu0 0.0
  %2289 = vmatpush1.msra.mxu0 0.0
  %2290 = vmatprep.subr.mxu0 0.0
  %2291 = vmatpush1.msra.mxu0 0.0
  %2292 = vmatprep.subr.mxu0 0.0
  %2293 = vmatpush1.msra.mxu0 0.0
  %2294 = vmatprep.subr.mxu0 0.0
  %2295 = vmatpush1.msra.mxu0 0.0
  %2296 = vmatprep.subr.mxu0 0.0
  %2297 = vmatpush1.msra.mxu0 0.0
  %2298 = vmatprep.subr.mxu0 0.0
  %2299 = vmatpush1.msra.mxu0 0.0
  %2300 = vmatprep.subr.mxu0 0.0
  %2301 = vmatpush1.msra.mxu0 0.0
  %2302 = vmatprep.subr.mxu0 0.0
  %2303 = vmatpush1.msra.mxu0 0.0
  %2304 = vmatprep.subr.mxu0 0.0
  %2305 = vmatpush1.msra.mxu0 0.0
  %2306 = vmatprep.subr.mxu0 0.0
  %2307 = vmatpush1.msra.mxu0 0.0
  %2308 = vmatprep.subr.mxu0 0.0
  %2309 = vmatpush1.msra.mxu0 0.0
  %2310 = vmatprep.subr.mxu0 0.0
  %2311 = vmatpush1.msra.mxu0 0.0
  %2312 = vmatprep.subr.mxu0 0.0
  %2313 = vmatpush1.msra.mxu0 0.0
  %2314 = vmatprep.subr.mxu0 0.0
  %2315 = vmatpush1.msra.mxu0 0.0
  %2316 = vmatprep.subr.mxu0 0.0
  %2317 = vmatpush1.msra.mxu0 0.0
  %2318 = vmatprep.subr.mxu0 0.0
  %2319 = vmatpush1.msra.mxu0 0.0
  %2320 = vmatprep.subr.mxu0 0.0
  %2321 = vmatpush1.msra.mxu0 0.0
  %2322 = vmatprep.subr.mxu0 0.0
  %2323 = vmatpush1.msra.mxu0 0.0
  %2324 = vmatprep.subr.mxu0 0.0
  %2325 = vmatpush1.msra.mxu0 0.0
  %2326 = vmatprep.subr.mxu0 0.0
  %2327 = vmatpush1.msra.mxu0 0.0
  %2328 = vmatprep.subr.mxu0 0.0
  %2329 = vmatpush1.msra.mxu0 0.0
  %2330 = vmatprep.subr.mxu0 0.0
  %2331 = vmatpush1.msra.mxu0 0.0
  %2332 = vmatprep.subr.mxu0 0.0
  %2333 = vmatpush1.msra.mxu0 0.0
  %2334 = vmatprep.subr.mxu0 0.0
  %2335 = vmatpush1.msra.mxu0 0.0
  %2336 = vmatprep.subr.mxu0 0.0
  %2337 = vmatpush1.msra.mxu0 0.0
  %2338 = vmatprep.mubr.f32.mxu0 0.0
  %2339 = vmatmul.mubr.f32.gmra.mrb[0].mxu0 %v2269
  %v2340 = vpop.f32.mrb[0].mxu0
  %v2341 = vadd.f32 0.0, %v2340
  %v2342 = vpop.f32.mrb[0].mxu0
  %2343 = vmatprep.mubr.f32.mxu0 0.0
  %2344 = vmatmul.mubr.f32.gmra.mrb[0].mxu0 %v2272
  %v2345 = vpop.f32.mrb[0].mxu0
  %v2346 = vadd.f32 0.0, %v2345
  %v2347 = vpop.f32.mrb[0].mxu0
  %2348 = vdwg.mxu0
  %v2349 = vadd.f32 %v2262, %v2341
  %v2350 = vadd.f32 %v2263, %v2346
  %v2351 = vld [vmem:[#allocation2 + $0x44] sm:$0xff]
  %v2352 = vld [vmem:[#allocation2 + $0x4c] sm:$0x7]
  %v2353 = vld [vmem:[%s834] sm:$0xff]
  %v2354 = vld [vmem:[%s834 + $0x8] sm:$0xff]
  %v2356 = vsel %vm292, %v2351, 0
  %v2359 = vsel %vm292, %v2352, 0
  %2361 = vmatprep.subr.mxu0 0.0
  %2362 = vmatpush1.msra.mxu0 %v2353
  %2363 = vmatprep.subr.mxu0 0.0
  %2364 = vmatpush1.msra.mxu0 %v2354
  %2365 = vmatprep.subr.mxu0 0.0
  %2366 = vmatpush1.msra.mxu0 0.0
  %2367 = vmatprep.subr.mxu0 0.0
  %2368 = vmatpush1.msra.mxu0 0.0
  %2369 = vmatprep.subr.mxu0 0.0
  %2370 = vmatpush1.msra.mxu0 0.0
  %2371 = vmatprep.subr.mxu0 0.0
  %2372 = vmatpush1.msra.mxu0 0.0
  %2373 = vmatprep.subr.mxu0 0.0
  %2374 = vmatpush1.msra.mxu0 0.0
  %2375 = vmatprep.subr.mxu0 0.0
  %2376 = vmatpush1.msra.mxu0 0.0
  %2377 = vmatprep.subr.mxu0 0.0
  %2378 = vmatpush1.msra.mxu0 0.0
  %2379 = vmatprep.subr.mxu0 0.0
  %2380 = vmatpush1.msra.mxu0 0.0
  %2381 = vmatprep.subr.mxu0 0.0
  %2382 = vmatpush1.msra.mxu0 0.0
  %2383 = vmatprep.subr.mxu0 0.0
  %2384 = vmatpush1.msra.mxu0 0.0
  %2385 = vmatprep.subr.mxu0 0.0
  %2386 = vmatpush1.msra.mxu0 0.0
  %2387 = vmatprep.subr.mxu0 0.0
  %2388 = vmatpush1.msra.mxu0 0.0
  %2389 = vmatprep.subr.mxu0 0.0
  %2390 = vmatpush1.msra.mxu0 0.0
  %2391 = vmatprep.subr.mxu0 0.0
  %2392 = vmatpush1.msra.mxu0 0.0
  %2393 = vmatprep.subr.mxu0 0.0
  %2394 = vmatpush1.msra.mxu0 0.0
  %2395 = vmatprep.subr.mxu0 0.0
  %2396 = vmatpush1.msra.mxu0 0.0
  %2397 = vmatprep.subr.mxu0 0.0
  %2398 = vmatpush1.msra.mxu0 0.0
  %2399 = vmatprep.subr.mxu0 0.0
  %2400 = vmatpush1.msra.mxu0 0.0
  %2401 = vmatprep.subr.mxu0 0.0
  %2402 = vmatpush1.msra.mxu0 0.0
  %2403 = vmatprep.subr.mxu0 0.0
  %2404 = vmatpush1.msra.mxu0 0.0
  %2405 = vmatprep.subr.mxu0 0.0
  %2406 = vmatpush1.msra.mxu0 0.0
  %2407 = vmatprep.subr.mxu0 0.0
  %2408 = vmatpush1.msra.mxu0 0.0
  %2409 = vmatprep.subr.mxu0 0.0
  %2410 = vmatpush1.msra.mxu0 0.0
  %2411 = vmatprep.subr.mxu0 0.0
  %2412 = vmatpush1.msra.mxu0 0.0
  %2413 = vmatprep.subr.mxu0 0.0
  %2414 = vmatpush1.msra.mxu0 0.0
  %2415 = vmatprep.subr.mxu0 0.0
  %2416 = vmatpush1.msra.mxu0 0.0
  %2417 = vmatprep.subr.mxu0 0.0
  %2418 = vmatpush1.msra.mxu0 0.0
  %2419 = vmatprep.subr.mxu0 0.0
  %2420 = vmatpush1.msra.mxu0 0.0
  %2421 = vmatprep.subr.mxu0 0.0
  %2422 = vmatpush1.msra.mxu0 0.0
  %2423 = vmatprep.subr.mxu0 0.0
  %2424 = vmatpush1.msra.mxu0 0.0
  %2425 = vmatprep.mubr.f32.mxu0 0.0
  %2426 = vmatmul.mubr.f32.gmra.mrb[0].mxu0 %v2356
  %v2427 = vpop.f32.mrb[0].mxu0
  %v2428 = vadd.f32 0.0, %v2427
  %v2429 = vpop.f32.mrb[0].mxu0
  %2430 = vmatprep.mubr.f32.mxu0 0.0
  %2431 = vmatmul.mubr.f32.gmra.mrb[0].mxu0 %v2359
  %v2432 = vpop.f32.mrb[0].mxu0
  %v2433 = vadd.f32 0.0, %v2432
  %v2434 = vpop.f32.mrb[0].mxu0
  %2435 = vdwg.mxu0
  %v2436 = vadd.f32 %v2349, %v2428
  %v2437 = vadd.f32 %v2350, %v2433
  %v2438 = vld [vmem:[#allocation2 + $0x54] sm:$0xff]
  %v2439 = vld [vmem:[#allocation2 + $0x5c] sm:$0x7]
  %v2440 = vld [vmem:[%s922] sm:$0xff]
  %v2441 = vld [vmem:[%s922 + $0x8] sm:$0xff]
  %v2443 = vsel %vm292, %v2438, 0
  %v2446 = vsel %vm292, %v2439, 0
  %2448 = vmatprep.subr.mxu0 0.0
  %2449 = vmatpush1.msra.mxu0 %v2440
  %2450 = vmatprep.subr.mxu0 0.0
  %2451 = vmatpush1.msra.mxu0 %v2441
  %2452 = vmatprep.subr.mxu0 0.0
  %2453 = vmatpush1.msra.mxu0 0.0
  %2454 = vmatprep.subr.mxu0 0.0
  %2455 = vmatpush1.msra.mxu0 0.0
  %2456 = vmatprep.subr.mxu0 0.0
  %2457 = vmatpush1.msra.mxu0 0.0
  %2458 = vmatprep.subr.mxu0 0.0
  %2459 = vmatpush1.msra.mxu0 0.0
  %2460 = vmatprep.subr.mxu0 0.0
  %2461 = vmatpush1.msra.mxu0 0.0
  %2462 = vmatprep.subr.mxu0 0.0
  %2463 = vmatpush1.msra.mxu0 0.0
  %2464 = vmatprep.subr.mxu0 0.0
  %2465 = vmatpush1.msra.mxu0 0.0
  %2466 = vmatprep.subr.mxu0 0.0
  %2467 = vmatpush1.msra.mxu0 0.0
  %2468 = vmatprep.subr.mxu0 0.0
  %2469 = vmatpush1.msra.mxu0 0.0
  %2470 = vmatprep.subr.mxu0 0.0
  %2471 = vmatpush1.msra.mxu0 0.0
  %2472 = vmatprep.subr.mxu0 0.0
  %2473 = vmatpush1.msra.mxu0 0.0
  %2474 = vmatprep.subr.mxu0 0.0
  %2475 = vmatpush1.msra.mxu0 0.0
  %2476 = vmatprep.subr.mxu0 0.0
  %2477 = vmatpush1.msra.mxu0 0.0
  %2478 = vmatprep.subr.mxu0 0.0
  %2479 = vmatpush1.msra.mxu0 0.0
  %2480 = vmatprep.subr.mxu0 0.0
  %2481 = vmatpush1.msra.mxu0 0.0
  %2482 = vmatprep.subr.mxu0 0.0
  %2483 = vmatpush1.msra.mxu0 0.0
  %2484 = vmatprep.subr.mxu0 0.0
  %2485 = vmatpush1.msra.mxu0 0.0
  %2486 = vmatprep.subr.mxu0 0.0
  %2487 = vmatpush1.msra.mxu0 0.0
  %2488 = vmatprep.subr.mxu0 0.0
  %2489 = vmatpush1.msra.mxu0 0.0
  %2490 = vmatprep.subr.mxu0 0.0
  %2491 = vmatpush1.msra.mxu0 0.0
  %2492 = vmatprep.subr.mxu0 0.0
  %2493 = vmatpush1.msra.mxu0 0.0
  %2494 = vmatprep.subr.mxu0 0.0
  %2495 = vmatpush1.msra.mxu0 0.0
  %2496 = vmatprep.subr.mxu0 0.0
  %2497 = vmatpush1.msra.mxu0 0.0
  %2498 = vmatprep.subr.mxu0 0.0
  %2499 = vmatpush1.msra.mxu0 0.0
  %2500 = vmatprep.subr.mxu0 0.0
  %2501 = vmatpush1.msra.mxu0 0.0
  %2502 = vmatprep.subr.mxu0 0.0
  %2503 = vmatpush1.msra.mxu0 0.0
  %2504 = vmatprep.subr.mxu0 0.0
  %2505 = vmatpush1.msra.mxu0 0.0
  %2506 = vmatprep.subr.mxu0 0.0
  %2507 = vmatpush1.msra.mxu0 0.0
  %2508 = vmatprep.subr.mxu0 0.0
  %2509 = vmatpush1.msra.mxu0 0.0
  %2510 = vmatprep.subr.mxu0 0.0
  %2511 = vmatpush1.msra.mxu0 0.0
  %2512 = vmatprep.mubr.f32.mxu0 0.0
  %2513 = vmatmul.mubr.f32.gmra.mrb[0].mxu0 %v2443
  %v2514 = vpop.f32.mrb[0].mxu0
  %v2515 = vadd.f32 0.0, %v2514
  %v2516 = vpop.f32.mrb[0].mxu0
  %2517 = vmatprep.mubr.f32.mxu0 0.0
  %2518 = vmatmul.mubr.f32.gmra.mrb[0].mxu0 %v2446
  %v2519 = vpop.f32.mrb[0].mxu0
  %v2520 = vadd.f32 0.0, %v2519
  %v2521 = vpop.f32.mrb[0].mxu0
  %2522 = vdwg.mxu0
  %v2523 = vadd.f32 %v2436, %v2515
  %v2524 = vadd.f32 %v2437, %v2520
  %v2525 = vld [vmem:[#allocation2 + $0x45] sm:$0xff]
  %v2526 = vld [vmem:[#allocation2 + $0x4d] sm:$0x7]
  %v2527 = vld [vmem:[%s1010] sm:$0xff]
  %v2528 = vld [vmem:[%s1010 + $0x8] sm:$0xff]
  %v2530 = vsel %vm292, %v2525, 0
  %v2533 = vsel %vm292, %v2526, 0
  %2535 = vmatprep.subr.mxu0 0.0
  %2536 = vmatpush1.msra.mxu0 %v2527
  %2537 = vmatprep.subr.mxu0 0.0
  %2538 = vmatpush1.msra.mxu0 %v2528
  %2539 = vmatprep.subr.mxu0 0.0
  %2540 = vmatpush1.msra.mxu0 0.0
  %2541 = vmatprep.subr.mxu0 0.0
  %2542 = vmatpush1.msra.mxu0 0.0
  %2543 = vmatprep.subr.mxu0 0.0
  %2544 = vmatpush1.msra.mxu0 0.0
  %2545 = vmatprep.subr.mxu0 0.0
  %2546 = vmatpush1.msra.mxu0 0.0
  %2547 = vmatprep.subr.mxu0 0.0
  %2548 = vmatpush1.msra.mxu0 0.0
  %2549 = vmatprep.subr.mxu0 0.0
  %2550 = vmatpush1.msra.mxu0 0.0
  %2551 = vmatprep.subr.mxu0 0.0
  %2552 = vmatpush1.msra.mxu0 0.0
  %2553 = vmatprep.subr.mxu0 0.0
  %2554 = vmatpush1.msra.mxu0 0.0
  %2555 = vmatprep.subr.mxu0 0.0
  %2556 = vmatpush1.msra.mxu0 0.0
  %2557 = vmatprep.subr.mxu0 0.0
  %2558 = vmatpush1.msra.mxu0 0.0
  %2559 = vmatprep.subr.mxu0 0.0
  %2560 = vmatpush1.msra.mxu0 0.0
  %2561 = vmatprep.subr.mxu0 0.0
  %2562 = vmatpush1.msra.mxu0 0.0
  %2563 = vmatprep.subr.mxu0 0.0
  %2564 = vmatpush1.msra.mxu0 0.0
  %2565 = vmatprep.subr.mxu0 0.0
  %2566 = vmatpush1.msra.mxu0 0.0
  %2567 = vmatprep.subr.mxu0 0.0
  %2568 = vmatpush1.msra.mxu0 0.0
  %2569 = vmatprep.subr.mxu0 0.0
  %2570 = vmatpush1.msra.mxu0 0.0
  %2571 = vmatprep.subr.mxu0 0.0
  %2572 = vmatpush1.msra.mxu0 0.0
  %2573 = vmatprep.subr.mxu0 0.0
  %2574 = vmatpush1.msra.mxu0 0.0
  %2575 = vmatprep.subr.mxu0 0.0
  %2576 = vmatpush1.msra.mxu0 0.0
  %2577 = vmatprep.subr.mxu0 0.0
  %2578 = vmatpush1.msra.mxu0 0.0
  %2579 = vmatprep.subr.mxu0 0.0
  %2580 = vmatpush1.msra.mxu0 0.0
  %2581 = vmatprep.subr.mxu0 0.0
  %2582 = vmatpush1.msra.mxu0 0.0
  %2583 = vmatprep.subr.mxu0 0.0
  %2584 = vmatpush1.msra.mxu0 0.0
  %2585 = vmatprep.subr.mxu0 0.0
  %2586 = vmatpush1.msra.mxu0 0.0
  %2587 = vmatprep.subr.mxu0 0.0
  %2588 = vmatpush1.msra.mxu0 0.0
  %2589 = vmatprep.subr.mxu0 0.0
  %2590 = vmatpush1.msra.mxu0 0.0
  %2591 = vmatprep.subr.mxu0 0.0
  %2592 = vmatpush1.msra.mxu0 0.0
  %2593 = vmatprep.subr.mxu0 0.0
  %2594 = vmatpush1.msra.mxu0 0.0
  %2595 = vmatprep.subr.mxu0 0.0
  %2596 = vmatpush1.msra.mxu0 0.0
  %2597 = vmatprep.subr.mxu0 0.0
  %2598 = vmatpush1.msra.mxu0 0.0
  %2599 = vmatprep.mubr.f32.mxu0 0.0
  %2600 = vmatmul.mubr.f32.gmra.mrb[0].mxu0 %v2530
  %v2601 = vpop.f32.mrb[0].mxu0
  %v2602 = vadd.f32 0.0, %v2601
  %v2603 = vpop.f32.mrb[0].mxu0
  %2604 = vmatprep.mubr.f32.mxu0 0.0
  %2605 = vmatmul.mubr.f32.gmra.mrb[0].mxu0 %v2533
  %v2606 = vpop.f32.mrb[0].mxu0
  %v2607 = vadd.f32 0.0, %v2606
  %v2608 = vpop.f32.mrb[0].mxu0
  %2609 = vdwg.mxu0
  %v2610 = vadd.f32 %v2523, %v2602
  %v2611 = vadd.f32 %v2524, %v2607
  %v2612 = vld [vmem:[%s5] sm:$0x1]
  %v2614 = vlaneseq
  %v2615 = vshrl.u32 %v2614, 7
  %v2616 = vsub.s32 0, %v2615
  %v2617 = vrot.slane %v2612, %v2616
  %v2619 = vadd.f32 %v2610, %v2617
  %v2620 = vadd.f32 %v2611, %v2617
  %v2621 = vmax.f32 %v2619, 0.0
  %v2622 = vmax.f32 %v2620, 0.0
  %2623 = vst.msk [vmem:[#allocation3 + $0xb] sm:$0xff] %vm1107, %v2621
  %2624 = vst.msk [vmem:[#allocation3 + $0x13] sm:$0x7] %vm1109, %v2622
  %v2625 = vld [vmem:[#allocation3 + $0xb] sm:$0x1]
  %v2626 = vld [vmem:[%s6] sm:$0xff]
  %v2627 = vld [vmem:[%s6 + $0x8] sm:$0xff]
  %v2628 = vld [vmem:[%s6 + $0x10] sm:$0xff]
  %v2629 = vld [vmem:[%s6 + $0x18] sm:$0xff]
  %v2630 = vld [vmem:[#allocation3 + $0xc] sm:$0x1]
  %v2631 = vld [vmem:[%s1117] sm:$0xff]
  %v2632 = vld [vmem:[%s1117 + $0x8] sm:$0xff]
  %v2633 = vld [vmem:[%s1117 + $0x10] sm:$0xff]
  %v2634 = vld [vmem:[%s1117 + $0x18] sm:$0xff]
  %v2636 = vsel %vm1107, %v2630, 0
  %2638 = vmatprep.subr.mxu0 0.0
  %2639 = vmatpush1.msra.mxu0 %v2631
  %2640 = vmatprep.subr.mxu0 0.0
  %2641 = vmatpush1.msra.mxu0 %v2632
  %2642 = vmatprep.subr.mxu0 0.0
  %2643 = vmatpush1.msra.mxu0 %v2633
  %2644 = vmatprep.subr.mxu0 0.0
  %2645 = vmatpush1.msra.mxu0 %v2634
  %2646 = vmatprep.subr.mxu0 0.0
  %2647 = vmatpush1.msra.mxu0 0.0
  %2648 = vmatprep.subr.mxu0 0.0
  %2649 = vmatpush1.msra.mxu0 0.0
  %2650 = vmatprep.subr.mxu0 0.0
  %2651 = vmatpush1.msra.mxu0 0.0
  %2652 = vmatprep.subr.mxu0 0.0
  %2653 = vmatpush1.msra.mxu0 0.0
  %2654 = vmatprep.subr.mxu0 0.0
  %2655 = vmatpush1.msra.mxu0 0.0
  %2656 = vmatprep.subr.mxu0 0.0
  %2657 = vmatpush1.msra.mxu0 0.0
  %2658 = vmatprep.subr.mxu0 0.0
  %2659 = vmatpush1.msra.mxu0 0.0
  %2660 = vmatprep.subr.mxu0 0.0
  %2661 = vmatpush1.msra.mxu0 0.0
  %2662 = vmatprep.subr.mxu0 0.0
  %2663 = vmatpush1.msra.mxu0 0.0
  %2664 = vmatprep.subr.mxu0 0.0
  %2665 = vmatpush1.msra.mxu0 0.0
  %2666 = vmatprep.subr.mxu0 0.0
  %2667 = vmatpush1.msra.mxu0 0.0
  %2668 = vmatprep.subr.mxu0 0.0
  %2669 = vmatpush1.msra.mxu0 0.0
  %2670 = vmatprep.subr.mxu0 0.0
  %2671 = vmatpush1.msra.mxu0 0.0
  %2672 = vmatprep.subr.mxu0 0.0
  %2673 = vmatpush1.msra.mxu0 0.0
  %2674 = vmatprep.subr.mxu0 0.0
  %2675 = vmatpush1.msra.mxu0 0.0
  %2676 = vmatprep.subr.mxu0 0.0
  %2677 = vmatpush1.msra.mxu0 0.0
  %2678 = vmatprep.subr.mxu0 0.0
  %2679 = vmatpush1.msra.mxu0 0.0
  %2680 = vmatprep.subr.mxu0 0.0
  %2681 = vmatpush1.msra.mxu0 0.0
  %2682 = vmatprep.subr.mxu0 0.0
  %2683 = vmatpush1.msra.mxu0 0.0
  %2684 = vmatprep.subr.mxu0 0.0
  %2685 = vmatpush1.msra.mxu0 0.0
  %2686 = vmatprep.subr.mxu0 0.0
  %2687 = vmatpush1.msra.mxu0 0.0
  %2688 = vmatprep.subr.mxu0 0.0
  %2689 = vmatpush1.msra.mxu0 0.0
  %2690 = vmatprep.subr.mxu0 0.0
  %2691 = vmatpush1.msra.mxu0 0.0
  %2692 = vmatprep.subr.mxu0 0.0
  %2693 = vmatpush1.msra.mxu0 0.0
  %2694 = vmatprep.subr.mxu0 0.0
  %2695 = vmatpush1.msra.mxu0 0.0
  %2696 = vmatprep.subr.mxu0 0.0
  %2697 = vmatpush1.msra.mxu0 0.0
  %2698 = vmatprep.subr.mxu0 0.0
  %2699 = vmatpush1.msra.mxu0 0.0
  %2700 = vmatprep.subr.mxu0 0.0
  %2701 = vmatpush1.msra.mxu0 0.0
  %2702 = vmatprep.mubr.f32.mxu0 0.0
  %2703 = vmatmul.mubr.f32.gmra.mrb[0].mxu0 %v2636
  %v2704 = vpop.f32.mrb[0].mxu0
  %v2705 = vadd.f32 0.0, %v2704
  %v2706 = vpop.f32.mrb[0].mxu0
  %2707 = vdwg.mxu0
  %v2709 = vsel %vm1107, %v2625, 0
  %2711 = vmatprep.subr.mxu0 0.0
  %2712 = vmatpush1.msra.mxu0 %v2626
  %2713 = vmatprep.subr.mxu0 0.0
  %2714 = vmatpush1.msra.mxu0 %v2627
  %2715 = vmatprep.subr.mxu0 0.0
  %2716 = vmatpush1.msra.mxu0 %v2628
  %2717 = vmatprep.subr.mxu0 0.0
  %2718 = vmatpush1.msra.mxu0 %v2629
  %2719 = vmatprep.subr.mxu0 0.0
  %2720 = vmatpush1.msra.mxu0 0.0
  %2721 = vmatprep.subr.mxu0 0.0
  %2722 = vmatpush1.msra.mxu0 0.0
  %2723 = vmatprep.subr.mxu0 0.0
  %2724 = vmatpush1.msra.mxu0 0.0
  %2725 = vmatprep.subr.mxu0 0.0
  %2726 = vmatpush1.msra.mxu0 0.0
  %2727 = vmatprep.subr.mxu0 0.0
  %2728 = vmatpush1.msra.mxu0 0.0
  %2729 = vmatprep.subr.mxu0 0.0
  %2730 = vmatpush1.msra.mxu0 0.0
  %2731 = vmatprep.subr.mxu0 0.0
  %2732 = vmatpush1.msra.mxu0 0.0
  %2733 = vmatprep.subr.mxu0 0.0
  %2734 = vmatpush1.msra.mxu0 0.0
  %2735 = vmatprep.subr.mxu0 0.0
  %2736 = vmatpush1.msra.mxu0 0.0
  %2737 = vmatprep.subr.mxu0 0.0
  %2738 = vmatpush1.msra.mxu0 0.0
  %2739 = vmatprep.subr.mxu0 0.0
  %2740 = vmatpush1.msra.mxu0 0.0
  %2741 = vmatprep.subr.mxu0 0.0
  %2742 = vmatpush1.msra.mxu0 0.0
  %2743 = vmatprep.subr.mxu0 0.0
  %2744 = vmatpush1.msra.mxu0 0.0
  %2745 = vmatprep.subr.mxu0 0.0
  %2746 = vmatpush1.msra.mxu0 0.0
  %2747 = vmatprep.subr.mxu0 0.0
  %2748 = vmatpush1.msra.mxu0 0.0
  %2749 = vmatprep.subr.mxu0 0.0
  %2750 = vmatpush1.msra.mxu0 0.0
  %2751 = vmatprep.subr.mxu0 0.0
  %2752 = vmatpush1.msra.mxu0 0.0
  %2753 = vmatprep.subr.mxu0 0.0
  %2754 = vmatpush1.msra.mxu0 0.0
  %2755 = vmatprep.subr.mxu0 0.0
  %2756 = vmatpush1.msra.mxu0 0.0
  %2757 = vmatprep.subr.mxu0 0.0
  %2758 = vmatpush1.msra.mxu0 0.0
  %2759 = vmatprep.subr.mxu0 0.0
  %2760 = vmatpush1.msra.mxu0 0.0
  %2761 = vmatprep.subr.mxu0 0.0
  %2762 = vmatpush1.msra.mxu0 0.0
  %2763 = vmatprep.subr.mxu0 0.0
  %2764 = vmatpush1.msra.mxu0 0.0
  %2765 = vmatprep.subr.mxu0 0.0
  %2766 = vmatpush1.msra.mxu0 0.0
  %2767 = vmatprep.subr.mxu0 0.0
  %2768 = vmatpush1.msra.mxu0 0.0
  %2769 = vmatprep.subr.mxu0 0.0
  %2770 = vmatpush1.msra.mxu0 0.0
  %2771 = vmatprep.subr.mxu0 0.0
  %2772 = vmatpush1.msra.mxu0 0.0
  %2773 = vmatprep.subr.mxu0 0.0
  %2774 = vmatpush1.msra.mxu0 0.0
  %2775 = vmatprep.mubr.f32.mxu0 0.0
  %2776 = vmatmul.mubr.f32.gmra.mrb[0].mxu0 %v2709
  %v2777 = vpop.f32.mrb[0].mxu0
  %v2778 = vadd.f32 %v2705, %v2777
  %v2779 = vpop.f32.mrb[0].mxu0
  %2780 = vdwg.mxu0
  %v2781 = vld [vmem:[#allocation3 + $0xd] sm:$0x1]
  %v2782 = vld [vmem:[%s1269] sm:$0xff]
  %v2783 = vld [vmem:[%s1269 + $0x8] sm:$0xff]
  %v2784 = vld [vmem:[%s1269 + $0x10] sm:$0xff]
  %v2785 = vld [vmem:[%s1269 + $0x18] sm:$0xff]
  %v2787 = vsel %vm1107, %v2781, 0
  %2789 = vmatprep.subr.mxu0 0.0
  %2790 = vmatpush1.msra.mxu0 %v2782
  %2791 = vmatprep.subr.mxu0 0.0
  %2792 = vmatpush1.msra.mxu0 %v2783
  %2793 = vmatprep.subr.mxu0 0.0
  %2794 = vmatpush1.msra.mxu0 %v2784
  %2795 = vmatprep.subr.mxu0 0.0
  %2796 = vmatpush1.msra.mxu0 %v2785
  %2797 = vmatprep.subr.mxu0 0.0
  %2798 = vmatpush1.msra.mxu0 0.0
  %2799 = vmatprep.subr.mxu0 0.0
  %2800 = vmatpush1.msra.mxu0 0.0
  %2801 = vmatprep.subr.mxu0 0.0
  %2802 = vmatpush1.msra.mxu0 0.0
  %2803 = vmatprep.subr.mxu0 0.0
  %2804 = vmatpush1.msra.mxu0 0.0
  %2805 = vmatprep.subr.mxu0 0.0
  %2806 = vmatpush1.msra.mxu0 0.0
  %2807 = vmatprep.subr.mxu0 0.0
  %2808 = vmatpush1.msra.mxu0 0.0
  %2809 = vmatprep.subr.mxu0 0.0
  %2810 = vmatpush1.msra.mxu0 0.0
  %2811 = vmatprep.subr.mxu0 0.0
  %2812 = vmatpush1.msra.mxu0 0.0
  %2813 = vmatprep.subr.mxu0 0.0
  %2814 = vmatpush1.msra.mxu0 0.0
  %2815 = vmatprep.subr.mxu0 0.0
  %2816 = vmatpush1.msra.mxu0 0.0
  %2817 = vmatprep.subr.mxu0 0.0
  %2818 = vmatpush1.msra.mxu0 0.0
  %2819 = vmatprep.subr.mxu0 0.0
  %2820 = vmatpush1.msra.mxu0 0.0
  %2821 = vmatprep.subr.mxu0 0.0
  %2822 = vmatpush1.msra.mxu0 0.0
  %2823 = vmatprep.subr.mxu0 0.0
  %2824 = vmatpush1.msra.mxu0 0.0
  %2825 = vmatprep.subr.mxu0 0.0
  %2826 = vmatpush1.msra.mxu0 0.0
  %2827 = vmatprep.subr.mxu0 0.0
  %2828 = vmatpush1.msra.mxu0 0.0
  %2829 = vmatprep.subr.mxu0 0.0
  %2830 = vmatpush1.msra.mxu0 0.0
  %2831 = vmatprep.subr.mxu0 0.0
  %2832 = vmatpush1.msra.mxu0 0.0
  %2833 = vmatprep.subr.mxu0 0.0
  %2834 = vmatpush1.msra.mxu0 0.0
  %2835 = vmatprep.subr.mxu0 0.0
  %2836 = vmatpush1.msra.mxu0 0.0
  %2837 = vmatprep.subr.mxu0 0.0
  %2838 = vmatpush1.msra.mxu0 0.0
  %2839 = vmatprep.subr.mxu0 0.0
  %2840 = vmatpush1.msra.mxu0 0.0
  %2841 = vmatprep.subr.mxu0 0.0
  %2842 = vmatpush1.msra.mxu0 0.0
  %2843 = vmatprep.subr.mxu0 0.0
  %2844 = vmatpush1.msra.mxu0 0.0
  %2845 = vmatprep.subr.mxu0 0.0
  %2846 = vmatpush1.msra.mxu0 0.0
  %2847 = vmatprep.subr.mxu0 0.0
  %2848 = vmatpush1.msra.mxu0 0.0
  %2849 = vmatprep.subr.mxu0 0.0
  %2850 = vmatpush1.msra.mxu0 0.0
  %2851 = vmatprep.subr.mxu0 0.0
  %2852 = vmatpush1.msra.mxu0 0.0
  %2853 = vmatprep.mubr.f32.mxu0 0.0
  %2854 = vmatmul.mubr.f32.gmra.mrb[0].mxu0 %v2787
  %v2855 = vpop.f32.mrb[0].mxu0
  %v2856 = vadd.f32 0.0, %v2855
  %v2857 = vpop.f32.mrb[0].mxu0
  %2858 = vdwg.mxu0
  %v2859 = vadd.f32 %v2778, %v2856
  %v2860 = vld [vmem:[#allocation3 + $0xf] sm:$0x1]
  %v2861 = vld [vmem:[%s1349] sm:$0xff]
  %v2862 = vld [vmem:[%s1349 + $0x8] sm:$0xff]
  %v2863 = vld [vmem:[%s1349 + $0x10] sm:$0xff]
  %v2864 = vld [vmem:[%s1349 + $0x18] sm:$0xff]
  %v2866 = vsel %vm1107, %v2860, 0
  %2868 = vmatprep.subr.mxu0 0.0
  %2869 = vmatpush1.msra.mxu0 %v2861
  %2870 = vmatprep.subr.mxu0 0.0
  %2871 = vmatpush1.msra.mxu0 %v2862
  %2872 = vmatprep.subr.mxu0 0.0
  %2873 = vmatpush1.msra.mxu0 %v2863
  %2874 = vmatprep.subr.mxu0 0.0
  %2875 = vmatpush1.msra.mxu0 %v2864
  %2876 = vmatprep.subr.mxu0 0.0
  %2877 = vmatpush1.msra.mxu0 0.0
  %2878 = vmatprep.subr.mxu0 0.0
  %2879 = vmatpush1.msra.mxu0 0.0
  %2880 = vmatprep.subr.mxu0 0.0
  %2881 = vmatpush1.msra.mxu0 0.0
  %2882 = vmatprep.subr.mxu0 0.0
  %2883 = vmatpush1.msra.mxu0 0.0
  %2884 = vmatprep.subr.mxu0 0.0
  %2885 = vmatpush1.msra.mxu0 0.0
  %2886 = vmatprep.subr.mxu0 0.0
  %2887 = vmatpush1.msra.mxu0 0.0
  %2888 = vmatprep.subr.mxu0 0.0
  %2889 = vmatpush1.msra.mxu0 0.0
  %2890 = vmatprep.subr.mxu0 0.0
  %2891 = vmatpush1.msra.mxu0 0.0
  %2892 = vmatprep.subr.mxu0 0.0
  %2893 = vmatpush1.msra.mxu0 0.0
  %2894 = vmatprep.subr.mxu0 0.0
  %2895 = vmatpush1.msra.mxu0 0.0
  %2896 = vmatprep.subr.mxu0 0.0
  %2897 = vmatpush1.msra.mxu0 0.0
  %2898 = vmatprep.subr.mxu0 0.0
  %2899 = vmatpush1.msra.mxu0 0.0
  %2900 = vmatprep.subr.mxu0 0.0
  %2901 = vmatpush1.msra.mxu0 0.0
  %2902 = vmatprep.subr.mxu0 0.0
  %2903 = vmatpush1.msra.mxu0 0.0
  %2904 = vmatprep.subr.mxu0 0.0
  %2905 = vmatpush1.msra.mxu0 0.0
  %2906 = vmatprep.subr.mxu0 0.0
  %2907 = vmatpush1.msra.mxu0 0.0
  %2908 = vmatprep.subr.mxu0 0.0
  %2909 = vmatpush1.msra.mxu0 0.0
  %2910 = vmatprep.subr.mxu0 0.0
  %2911 = vmatpush1.msra.mxu0 0.0
  %2912 = vmatprep.subr.mxu0 0.0
  %2913 = vmatpush1.msra.mxu0 0.0
  %2914 = vmatprep.subr.mxu0 0.0
  %2915 = vmatpush1.msra.mxu0 0.0
  %2916 = vmatprep.subr.mxu0 0.0
  %2917 = vmatpush1.msra.mxu0 0.0
  %2918 = vmatprep.subr.mxu0 0.0
  %2919 = vmatpush1.msra.mxu0 0.0
  %2920 = vmatprep.subr.mxu0 0.0
  %2921 = vmatpush1.msra.mxu0 0.0
  %2922 = vmatprep.subr.mxu0 0.0
  %2923 = vmatpush1.msra.mxu0 0.0
  %2924 = vmatprep.subr.mxu0 0.0
  %2925 = vmatpush1.msra.mxu0 0.0
  %2926 = vmatprep.subr.mxu0 0.0
  %2927 = vmatpush1.msra.mxu0 0.0
  %2928 = vmatprep.subr.mxu0 0.0
  %2929 = vmatpush1.msra.mxu0 0.0
  %2930 = vmatprep.subr.mxu0 0.0
  %2931 = vmatpush1.msra.mxu0 0.0
  %2932 = vmatprep.mubr.f32.mxu0 0.0
  %2933 = vmatmul.mubr.f32.gmra.mrb[0].mxu0 %v2866
  %v2934 = vpop.f32.mrb[0].mxu0
  %v2935 = vadd.f32 0.0, %v2934
  %v2936 = vpop.f32.mrb[0].mxu0
  %2937 = vdwg.mxu0
  %v2938 = vadd.f32 %v2859, %v2935
  %v2939 = vld [vmem:[#allocation3 + $0x10] sm:$0x1]
  %v2940 = vld [vmem:[%s1429] sm:$0xff]
  %v2941 = vld [vmem:[%s1429 + $0x8] sm:$0xff]
  %v2942 = vld [vmem:[%s1429 + $0x10] sm:$0xff]
  %v2943 = vld [vmem:[%s1429 + $0x18] sm:$0xff]
  %v2945 = vsel %vm1107, %v2939, 0
  %2947 = vmatprep.subr.mxu0 0.0
  %2948 = vmatpush1.msra.mxu0 %v2940
  %2949 = vmatprep.subr.mxu0 0.0
  %2950 = vmatpush1.msra.mxu0 %v2941
  %2951 = vmatprep.subr.mxu0 0.0
  %2952 = vmatpush1.msra.mxu0 %v2942
  %2953 = vmatprep.subr.mxu0 0.0
  %2954 = vmatpush1.msra.mxu0 %v2943
  %2955 = vmatprep.subr.mxu0 0.0
  %2956 = vmatpush1.msra.mxu0 0.0
  %2957 = vmatprep.subr.mxu0 0.0
  %2958 = vmatpush1.msra.mxu0 0.0
  %2959 = vmatprep.subr.mxu0 0.0
  %2960 = vmatpush1.msra.mxu0 0.0
  %2961 = vmatprep.subr.mxu0 0.0
  %2962 = vmatpush1.msra.mxu0 0.0
  %2963 = vmatprep.subr.mxu0 0.0
  %2964 = vmatpush1.msra.mxu0 0.0
  %2965 = vmatprep.subr.mxu0 0.0
  %2966 = vmatpush1.msra.mxu0 0.0
  %2967 = vmatprep.subr.mxu0 0.0
  %2968 = vmatpush1.msra.mxu0 0.0
  %2969 = vmatprep.subr.mxu0 0.0
  %2970 = vmatpush1.msra.mxu0 0.0
  %2971 = vmatprep.subr.mxu0 0.0
  %2972 = vmatpush1.msra.mxu0 0.0
  %2973 = vmatprep.subr.mxu0 0.0
  %2974 = vmatpush1.msra.mxu0 0.0
  %2975 = vmatprep.subr.mxu0 0.0
  %2976 = vmatpush1.msra.mxu0 0.0
  %2977 = vmatprep.subr.mxu0 0.0
  %2978 = vmatpush1.msra.mxu0 0.0
  %2979 = vmatprep.subr.mxu0 0.0
  %2980 = vmatpush1.msra.mxu0 0.0
  %2981 = vmatprep.subr.mxu0 0.0
  %2982 = vmatpush1.msra.mxu0 0.0
  %2983 = vmatprep.subr.mxu0 0.0
  %2984 = vmatpush1.msra.mxu0 0.0
  %2985 = vmatprep.subr.mxu0 0.0
  %2986 = vmatpush1.msra.mxu0 0.0
  %2987 = vmatprep.subr.mxu0 0.0
  %2988 = vmatpush1.msra.mxu0 0.0
  %2989 = vmatprep.subr.mxu0 0.0
  %2990 = vmatpush1.msra.mxu0 0.0
  %2991 = vmatprep.subr.mxu0 0.0
  %2992 = vmatpush1.msra.mxu0 0.0
  %2993 = vmatprep.subr.mxu0 0.0
  %2994 = vmatpush1.msra.mxu0 0.0
  %2995 = vmatprep.subr.mxu0 0.0
  %2996 = vmatpush1.msra.mxu0 0.0
  %2997 = vmatprep.subr.mxu0 0.0
  %2998 = vmatpush1.msra.mxu0 0.0
  %2999 = vmatprep.subr.mxu0 0.0
  %3000 = vmatpush1.msra.mxu0 0.0
  %3001 = vmatprep.subr.mxu0 0.0
  %3002 = vmatpush1.msra.mxu0 0.0
  %3003 = vmatprep.subr.mxu0 0.0
  %3004 = vmatpush1.msra.mxu0 0.0
  %3005 = vmatprep.subr.mxu0 0.0
  %3006 = vmatpush1.msra.mxu0 0.0
  %3007 = vmatprep.subr.mxu0 0.0
  %3008 = vmatpush1.msra.mxu0 0.0
  %3009 = vmatprep.subr.mxu0 0.0
  %3010 = vmatpush1.msra.mxu0 0.0
  %3011 = vmatprep.mubr.f32.mxu0 0.0
  %3012 = vmatmul.mubr.f32.gmra.mrb[0].mxu0 %v2945
  %v3013 = vpop.f32.mrb[0].mxu0
  %v3014 = vadd.f32 0.0, %v3013
  %v3015 = vpop.f32.mrb[0].mxu0
  %3016 = vdwg.mxu0
  %v3017 = vadd.f32 %v2938, %v3014
  %v3018 = vld [vmem:[#allocation3 + $0x11] sm:$0x1]
  %v3019 = vld [vmem:[%s1509] sm:$0xff]
  %v3020 = vld [vmem:[%s1509 + $0x8] sm:$0xff]
  %v3021 = vld [vmem:[%s1509 + $0x10] sm:$0xff]
  %v3022 = vld [vmem:[%s1509 + $0x18] sm:$0xff]
  %v3024 = vsel %vm1107, %v3018, 0
  %3026 = vmatprep.subr.mxu0 0.0
  %3027 = vmatpush1.msra.mxu0 %v3019
  %3028 = vmatprep.subr.mxu0 0.0
  %3029 = vmatpush1.msra.mxu0 %v3020
  %3030 = vmatprep.subr.mxu0 0.0
  %3031 = vmatpush1.msra.mxu0 %v3021
  %3032 = vmatprep.subr.mxu0 0.0
  %3033 = vmatpush1.msra.mxu0 %v3022
  %3034 = vmatprep.subr.mxu0 0.0
  %3035 = vmatpush1.msra.mxu0 0.0
  %3036 = vmatprep.subr.mxu0 0.0
  %3037 = vmatpush1.msra.mxu0 0.0
  %3038 = vmatprep.subr.mxu0 0.0
  %3039 = vmatpush1.msra.mxu0 0.0
  %3040 = vmatprep.subr.mxu0 0.0
  %3041 = vmatpush1.msra.mxu0 0.0
  %3042 = vmatprep.subr.mxu0 0.0
  %3043 = vmatpush1.msra.mxu0 0.0
  %3044 = vmatprep.subr.mxu0 0.0
  %3045 = vmatpush1.msra.mxu0 0.0
  %3046 = vmatprep.subr.mxu0 0.0
  %3047 = vmatpush1.msra.mxu0 0.0
  %3048 = vmatprep.subr.mxu0 0.0
  %3049 = vmatpush1.msra.mxu0 0.0
  %3050 = vmatprep.subr.mxu0 0.0
  %3051 = vmatpush1.msra.mxu0 0.0
  %3052 = vmatprep.subr.mxu0 0.0
  %3053 = vmatpush1.msra.mxu0 0.0
  %3054 = vmatprep.subr.mxu0 0.0
  %3055 = vmatpush1.msra.mxu0 0.0
  %3056 = vmatprep.subr.mxu0 0.0
  %3057 = vmatpush1.msra.mxu0 0.0
  %3058 = vmatprep.subr.mxu0 0.0
  %3059 = vmatpush1.msra.mxu0 0.0
  %3060 = vmatprep.subr.mxu0 0.0
  %3061 = vmatpush1.msra.mxu0 0.0
  %3062 = vmatprep.subr.mxu0 0.0
  %3063 = vmatpush1.msra.mxu0 0.0
  %3064 = vmatprep.subr.mxu0 0.0
  %3065 = vmatpush1.msra.mxu0 0.0
  %3066 = vmatprep.subr.mxu0 0.0
  %3067 = vmatpush1.msra.mxu0 0.0
  %3068 = vmatprep.subr.mxu0 0.0
  %3069 = vmatpush1.msra.mxu0 0.0
  %3070 = vmatprep.subr.mxu0 0.0
  %3071 = vmatpush1.msra.mxu0 0.0
  %3072 = vmatprep.subr.mxu0 0.0
  %3073 = vmatpush1.msra.mxu0 0.0
  %3074 = vmatprep.subr.mxu0 0.0
  %3075 = vmatpush1.msra.mxu0 0.0
  %3076 = vmatprep.subr.mxu0 0.0
  %3077 = vmatpush1.msra.mxu0 0.0
  %3078 = vmatprep.subr.mxu0 0.0
  %3079 = vmatpush1.msra.mxu0 0.0
  %3080 = vmatprep.subr.mxu0 0.0
  %3081 = vmatpush1.msra.mxu0 0.0
  %3082 = vmatprep.subr.mxu0 0.0
  %3083 = vmatpush1.msra.mxu0 0.0
  %3084 = vmatprep.subr.mxu0 0.0
  %3085 = vmatpush1.msra.mxu0 0.0
  %3086 = vmatprep.subr.mxu0 0.0
  %3087 = vmatpush1.msra.mxu0 0.0
  %3088 = vmatprep.subr.mxu0 0.0
  %3089 = vmatpush1.msra.mxu0 0.0
  %3090 = vmatprep.mubr.f32.mxu0 0.0
  %3091 = vmatmul.mubr.f32.gmra.mrb[0].mxu0 %v3024
  %v3092 = vpop.f32.mrb[0].mxu0
  %v3093 = vadd.f32 0.0, %v3092
  %v3094 = vpop.f32.mrb[0].mxu0
  %3095 = vdwg.mxu0
  %v3096 = vadd.f32 %v3017, %v3093
  %v3097 = vld [vmem:[#allocation3 + $0x13] sm:$0x1]
  %v3098 = vld [vmem:[%s1589] sm:$0xff]
  %v3099 = vld [vmem:[%s1589 + $0x8] sm:$0xff]
  %v3100 = vld [vmem:[%s1589 + $0x10] sm:$0xff]
  %v3101 = vld [vmem:[%s1589 + $0x18] sm:$0xff]
  %v3103 = vsel %vm1107, %v3097, 0
  %3105 = vmatprep.subr.mxu0 0.0
  %3106 = vmatpush1.msra.mxu0 %v3098
  %3107 = vmatprep.subr.mxu0 0.0
  %3108 = vmatpush1.msra.mxu0 %v3099
  %3109 = vmatprep.subr.mxu0 0.0
  %3110 = vmatpush1.msra.mxu0 %v3100
  %3111 = vmatprep.subr.mxu0 0.0
  %3112 = vmatpush1.msra.mxu0 %v3101
  %3113 = vmatprep.subr.mxu0 0.0
  %3114 = vmatpush1.msra.mxu0 0.0
  %3115 = vmatprep.subr.mxu0 0.0
  %3116 = vmatpush1.msra.mxu0 0.0
  %3117 = vmatprep.subr.mxu0 0.0
  %3118 = vmatpush1.msra.mxu0 0.0
  %3119 = vmatprep.subr.mxu0 0.0
  %3120 = vmatpush1.msra.mxu0 0.0
  %3121 = vmatprep.subr.mxu0 0.0
  %3122 = vmatpush1.msra.mxu0 0.0
  %3123 = vmatprep.subr.mxu0 0.0
  %3124 = vmatpush1.msra.mxu0 0.0
  %3125 = vmatprep.subr.mxu0 0.0
  %3126 = vmatpush1.msra.mxu0 0.0
  %3127 = vmatprep.subr.mxu0 0.0
  %3128 = vmatpush1.msra.mxu0 0.0
  %3129 = vmatprep.subr.mxu0 0.0
  %3130 = vmatpush1.msra.mxu0 0.0
  %3131 = vmatprep.subr.mxu0 0.0
  %3132 = vmatpush1.msra.mxu0 0.0
  %3133 = vmatprep.subr.mxu0 0.0
  %3134 = vmatpush1.msra.mxu0 0.0
  %3135 = vmatprep.subr.mxu0 0.0
  %3136 = vmatpush1.msra.mxu0 0.0
  %3137 = vmatprep.subr.mxu0 0.0
  %3138 = vmatpush1.msra.mxu0 0.0
  %3139 = vmatprep.subr.mxu0 0.0
  %3140 = vmatpush1.msra.mxu0 0.0
  %3141 = vmatprep.subr.mxu0 0.0
  %3142 = vmatpush1.msra.mxu0 0.0
  %3143 = vmatprep.subr.mxu0 0.0
  %3144 = vmatpush1.msra.mxu0 0.0
  %3145 = vmatprep.subr.mxu0 0.0
  %3146 = vmatpush1.msra.mxu0 0.0
  %3147 = vmatprep.subr.mxu0 0.0
  %3148 = vmatpush1.msra.mxu0 0.0
  %3149 = vmatprep.subr.mxu0 0.0
  %3150 = vmatpush1.msra.mxu0 0.0
  %3151 = vmatprep.subr.mxu0 0.0
  %3152 = vmatpush1.msra.mxu0 0.0
  %3153 = vmatprep.subr.mxu0 0.0
  %3154 = vmatpush1.msra.mxu0 0.0
  %3155 = vmatprep.subr.mxu0 0.0
  %3156 = vmatpush1.msra.mxu0 0.0
  %3157 = vmatprep.subr.mxu0 0.0
  %3158 = vmatpush1.msra.mxu0 0.0
  %3159 = vmatprep.subr.mxu0 0.0
  %3160 = vmatpush1.msra.mxu0 0.0
  %3161 = vmatprep.subr.mxu0 0.0
  %3162 = vmatpush1.msra.mxu0 0.0
  %3163 = vmatprep.subr.mxu0 0.0
  %3164 = vmatpush1.msra.mxu0 0.0
  %3165 = vmatprep.subr.mxu0 0.0
  %3166 = vmatpush1.msra.mxu0 0.0
  %3167 = vmatprep.subr.mxu0 0.0
  %3168 = vmatpush1.msra.mxu0 0.0
  %3169 = vmatprep.mubr.f32.mxu0 0.0
  %3170 = vmatmul.mubr.f32.gmra.mrb[0].mxu0 %v3103
  %v3171 = vpop.f32.mrb[0].mxu0
  %v3172 = vadd.f32 0.0, %v3171
  %v3173 = vpop.f32.mrb[0].mxu0
  %3174 = vdwg.mxu0
  %v3175 = vadd.f32 %v3096, %v3172
  %v3176 = vld [vmem:[#allocation3 + $0x14] sm:$0x1]
  %v3177 = vld [vmem:[%s1669] sm:$0xff]
  %v3178 = vld [vmem:[%s1669 + $0x8] sm:$0xff]
  %v3179 = vld [vmem:[%s1669 + $0x10] sm:$0xff]
  %v3180 = vld [vmem:[%s1669 + $0x18] sm:$0xff]
  %v3182 = vsel %vm1107, %v3176, 0
  %3184 = vmatprep.subr.mxu0 0.0
  %3185 = vmatpush1.msra.mxu0 %v3177
  %3186 = vmatprep.subr.mxu0 0.0
  %3187 = vmatpush1.msra.mxu0 %v3178
  %3188 = vmatprep.subr.mxu0 0.0
  %3189 = vmatpush1.msra.mxu0 %v3179
  %3190 = vmatprep.subr.mxu0 0.0
  %3191 = vmatpush1.msra.mxu0 %v3180
  %3192 = vmatprep.subr.mxu0 0.0
  %3193 = vmatpush1.msra.mxu0 0.0
  %3194 = vmatprep.subr.mxu0 0.0
  %3195 = vmatpush1.msra.mxu0 0.0
  %3196 = vmatprep.subr.mxu0 0.0
  %3197 = vmatpush1.msra.mxu0 0.0
  %3198 = vmatprep.subr.mxu0 0.0
  %3199 = vmatpush1.msra.mxu0 0.0
  %3200 = vmatprep.subr.mxu0 0.0
  %3201 = vmatpush1.msra.mxu0 0.0
  %3202 = vmatprep.subr.mxu0 0.0
  %3203 = vmatpush1.msra.mxu0 0.0
  %3204 = vmatprep.subr.mxu0 0.0
  %3205 = vmatpush1.msra.mxu0 0.0
  %3206 = vmatprep.subr.mxu0 0.0
  %3207 = vmatpush1.msra.mxu0 0.0
  %3208 = vmatprep.subr.mxu0 0.0
  %3209 = vmatpush1.msra.mxu0 0.0
  %3210 = vmatprep.subr.mxu0 0.0
  %3211 = vmatpush1.msra.mxu0 0.0
  %3212 = vmatprep.subr.mxu0 0.0
  %3213 = vmatpush1.msra.mxu0 0.0
  %3214 = vmatprep.subr.mxu0 0.0
  %3215 = vmatpush1.msra.mxu0 0.0
  %3216 = vmatprep.subr.mxu0 0.0
  %3217 = vmatpush1.msra.mxu0 0.0
  %3218 = vmatprep.subr.mxu0 0.0
  %3219 = vmatpush1.msra.mxu0 0.0
  %3220 = vmatprep.subr.mxu0 0.0
  %3221 = vmatpush1.msra.mxu0 0.0
  %3222 = vmatprep.subr.mxu0 0.0
  %3223 = vmatpush1.msra.mxu0 0.0
  %3224 = vmatprep.subr.mxu0 0.0
  %3225 = vmatpush1.msra.mxu0 0.0
  %3226 = vmatprep.subr.mxu0 0.0
  %3227 = vmatpush1.msra.mxu0 0.0
  %3228 = vmatprep.subr.mxu0 0.0
  %3229 = vmatpush1.msra.mxu0 0.0
  %3230 = vmatprep.subr.mxu0 0.0
  %3231 = vmatpush1.msra.mxu0 0.0
  %3232 = vmatprep.subr.mxu0 0.0
  %3233 = vmatpush1.msra.mxu0 0.0
  %3234 = vmatprep.subr.mxu0 0.0
  %3235 = vmatpush1.msra.mxu0 0.0
  %3236 = vmatprep.subr.mxu0 0.0
  %3237 = vmatpush1.msra.mxu0 0.0
  %3238 = vmatprep.subr.mxu0 0.0
  %3239 = vmatpush1.msra.mxu0 0.0
  %3240 = vmatprep.subr.mxu0 0.0
  %3241 = vmatpush1.msra.mxu0 0.0
  %3242 = vmatprep.subr.mxu0 0.0
  %3243 = vmatpush1.msra.mxu0 0.0
  %3244 = vmatprep.subr.mxu0 0.0
  %3245 = vmatpush1.msra.mxu0 0.0
  %3246 = vmatprep.subr.mxu0 0.0
  %3247 = vmatpush1.msra.mxu0 0.0
  %3248 = vmatprep.mubr.f32.mxu0 0.0
  %3249 = vmatmul.mubr.f32.gmra.mrb[0].mxu0 %v3182
  %v3250 = vpop.f32.mrb[0].mxu0
  %v3251 = vadd.f32 0.0, %v3250
  %v3252 = vpop.f32.mrb[0].mxu0
  %3253 = vdwg.mxu0
  %v3254 = vadd.f32 %v3175, %v3251
  %v3255 = vld [vmem:[#allocation3 + $0x15] sm:$0x1]
  %v3256 = vld [vmem:[%s1749] sm:$0xff]
  %v3257 = vld [vmem:[%s1749 + $0x8] sm:$0xff]
  %v3258 = vld [vmem:[%s1749 + $0x10] sm:$0xff]
  %v3259 = vld [vmem:[%s1749 + $0x18] sm:$0xff]
  %v3261 = vsel %vm1107, %v3255, 0
  %3263 = vmatprep.subr.mxu0 0.0
  %3264 = vmatpush1.msra.mxu0 %v3256
  %3265 = vmatprep.subr.mxu0 0.0
  %3266 = vmatpush1.msra.mxu0 %v3257
  %3267 = vmatprep.subr.mxu0 0.0
  %3268 = vmatpush1.msra.mxu0 %v3258
  %3269 = vmatprep.subr.mxu0 0.0
  %3270 = vmatpush1.msra.mxu0 %v3259
  %3271 = vmatprep.subr.mxu0 0.0
  %3272 = vmatpush1.msra.mxu0 0.0
  %3273 = vmatprep.subr.mxu0 0.0
  %3274 = vmatpush1.msra.mxu0 0.0
  %3275 = vmatprep.subr.mxu0 0.0
  %3276 = vmatpush1.msra.mxu0 0.0
  %3277 = vmatprep.subr.mxu0 0.0
  %3278 = vmatpush1.msra.mxu0 0.0
  %3279 = vmatprep.subr.mxu0 0.0
  %3280 = vmatpush1.msra.mxu0 0.0
  %3281 = vmatprep.subr.mxu0 0.0
  %3282 = vmatpush1.msra.mxu0 0.0
  %3283 = vmatprep.subr.mxu0 0.0
  %3284 = vmatpush1.msra.mxu0 0.0
  %3285 = vmatprep.subr.mxu0 0.0
  %3286 = vmatpush1.msra.mxu0 0.0
  %3287 = vmatprep.subr.mxu0 0.0
  %3288 = vmatpush1.msra.mxu0 0.0
  %3289 = vmatprep.subr.mxu0 0.0
  %3290 = vmatpush1.msra.mxu0 0.0
  %3291 = vmatprep.subr.mxu0 0.0
  %3292 = vmatpush1.msra.mxu0 0.0
  %3293 = vmatprep.subr.mxu0 0.0
  %3294 = vmatpush1.msra.mxu0 0.0
  %3295 = vmatprep.subr.mxu0 0.0
  %3296 = vmatpush1.msra.mxu0 0.0
  %3297 = vmatprep.subr.mxu0 0.0
  %3298 = vmatpush1.msra.mxu0 0.0
  %3299 = vmatprep.subr.mxu0 0.0
  %3300 = vmatpush1.msra.mxu0 0.0
  %3301 = vmatprep.subr.mxu0 0.0
  %3302 = vmatpush1.msra.mxu0 0.0
  %3303 = vmatprep.subr.mxu0 0.0
  %3304 = vmatpush1.msra.mxu0 0.0
  %3305 = vmatprep.subr.mxu0 0.0
  %3306 = vmatpush1.msra.mxu0 0.0
  %3307 = vmatprep.subr.mxu0 0.0
  %3308 = vmatpush1.msra.mxu0 0.0
  %3309 = vmatprep.subr.mxu0 0.0
  %3310 = vmatpush1.msra.mxu0 0.0
  %3311 = vmatprep.subr.mxu0 0.0
  %3312 = vmatpush1.msra.mxu0 0.0
  %3313 = vmatprep.subr.mxu0 0.0
  %3314 = vmatpush1.msra.mxu0 0.0
  %3315 = vmatprep.subr.mxu0 0.0
  %3316 = vmatpush1.msra.mxu0 0.0
  %3317 = vmatprep.subr.mxu0 0.0
  %3318 = vmatpush1.msra.mxu0 0.0
  %3319 = vmatprep.subr.mxu0 0.0
  %3320 = vmatpush1.msra.mxu0 0.0
  %3321 = vmatprep.subr.mxu0 0.0
  %3322 = vmatpush1.msra.mxu0 0.0
  %3323 = vmatprep.subr.mxu0 0.0
  %3324 = vmatpush1.msra.mxu0 0.0
  %3325 = vmatprep.subr.mxu0 0.0
  %3326 = vmatpush1.msra.mxu0 0.0
  %3327 = vmatprep.mubr.f32.mxu0 0.0
  %3328 = vmatmul.mubr.f32.gmra.mrb[0].mxu0 %v3261
  %v3329 = vpop.f32.mrb[0].mxu0
  %v3330 = vadd.f32 0.0, %v3329
  %v3331 = vpop.f32.mrb[0].mxu0
  %3332 = vdwg.mxu0
  %v3333 = vadd.f32 %v3254, %v3330
  %v3334 = vld [vmem:[%s7] sm:$0x1]
  %v3335 = vadd.f32 %v3333, %v3334
  %v3336 = vmax.f32 %v3335, 0.0
  %3337 = vst.msk [vmem:[#allocation4 + $0x1] sm:$0x1] %vm1831, %v3336
  %v3338 = vld [vmem:[%s1] sm:$0x3]
  %v3339 = vld [vmem:[#allocation4] sm:$0x3]
  %v3340 = vld [vmem:[%s8] sm:$0xff]
  %v3341 = vld [vmem:[%s9] sm:$0xff]
  %v3342 = vld [vmem:[%s9 + $0x8] sm:$0xff]
  %v3343 = vld [vmem:[%s9 + $0x10] sm:$0xff]
  %v3344 = vld [vmem:[%s9 + $0x18] sm:$0xff]
  %v3345 = vld [vmem:[%s9 + $0x20] sm:$0xff]
  %v3346 = vld [vmem:[%s9 + $0x28] sm:$0xff]
  %v3347 = vld [vmem:[%s9 + $0x30] sm:$0xff]
  %v3348 = vld [vmem:[%s9 + $0x38] sm:$0xff]
  %vm3349 = vcmask 523264
  %v3351 = vsel %vm3349, %v3339, 0
  %3353 = vmatprep.subr.mxu0 0.0
  %3354 = vmatpush1.msra.mxu0 %v3341
  %3355 = vmatprep.subr.mxu0 0.0
  %3356 = vmatpush1.msra.mxu0 %v3342
  %3357 = vmatprep.subr.mxu0 0.0
  %3358 = vmatpush1.msra.mxu0 %v3343
  %3359 = vmatprep.subr.mxu0 0.0
  %3360 = vmatpush1.msra.mxu0 %v3344
  %3361 = vmatprep.subr.mxu0 0.0
  %3362 = vmatpush1.msra.mxu0 %v3345
  %3363 = vmatprep.subr.mxu0 0.0
  %3364 = vmatpush1.msra.mxu0 %v3346
  %3365 = vmatprep.subr.mxu0 0.0
  %3366 = vmatpush1.msra.mxu0 %v3347
  %3367 = vmatprep.subr.mxu0 0.0
  %3368 = vmatpush1.msra.mxu0 %v3348
  %3369 = vmatprep.subr.mxu0 0.0
  %3370 = vmatpush1.msra.mxu0 0.0
  %3371 = vmatprep.subr.mxu0 0.0
  %3372 = vmatpush1.msra.mxu0 0.0
  %3373 = vmatprep.subr.mxu0 0.0
  %3374 = vmatpush1.msra.mxu0 0.0
  %3375 = vmatprep.subr.mxu0 0.0
  %3376 = vmatpush1.msra.mxu0 0.0
  %3377 = vmatprep.subr.mxu0 0.0
  %3378 = vmatpush1.msra.mxu0 0.0
  %3379 = vmatprep.subr.mxu0 0.0
  %3380 = vmatpush1.msra.mxu0 0.0
  %3381 = vmatprep.subr.mxu0 0.0
  %3382 = vmatpush1.msra.mxu0 0.0
  %3383 = vmatprep.subr.mxu0 0.0
  %3384 = vmatpush1.msra.mxu0 0.0
  %3385 = vmatprep.subr.mxu0 0.0
  %3386 = vmatpush1.msra.mxu0 0.0
  %3387 = vmatprep.subr.mxu0 0.0
  %3388 = vmatpush1.msra.mxu0 0.0
  %3389 = vmatprep.subr.mxu0 0.0
  %3390 = vmatpush1.msra.mxu0 0.0
  %3391 = vmatprep.subr.mxu0 0.0
  %3392 = vmatpush1.msra.mxu0 0.0
  %3393 = vmatprep.subr.mxu0 0.0
  %3394 = vmatpush1.msra.mxu0 0.0
  %3395 = vmatprep.subr.mxu0 0.0
  %3396 = vmatpush1.msra.mxu0 0.0
  %3397 = vmatprep.subr.mxu0 0.0
  %3398 = vmatpush1.msra.mxu0 0.0
  %3399 = vmatprep.subr.mxu0 0.0
  %3400 = vmatpush1.msra.mxu0 0.0
  %3401 = vmatprep.subr.mxu0 0.0
  %3402 = vmatpush1.msra.mxu0 0.0
  %3403 = vmatprep.subr.mxu0 0.0
  %3404 = vmatpush1.msra.mxu0 0.0
  %3405 = vmatprep.subr.mxu0 0.0
  %3406 = vmatpush1.msra.mxu0 0.0
  %3407 = vmatprep.subr.mxu0 0.0
  %3408 = vmatpush1.msra.mxu0 0.0
  %3409 = vmatprep.subr.mxu0 0.0
  %3410 = vmatpush1.msra.mxu0 0.0
  %3411 = vmatprep.subr.mxu0 0.0
  %3412 = vmatpush1.msra.mxu0 0.0
  %3413 = vmatprep.subr.mxu0 0.0
  %3414 = vmatpush1.msra.mxu0 0.0
  %3415 = vmatprep.subr.mxu0 0.0
  %3416 = vmatpush1.msra.mxu0 0.0
  %3417 = vmatprep.mubr.f32.mxu0 0.0
  %3418 = vmatmul.mubr.f32.gmra.mrb[0].mxu0 %v3351
  %v3419 = vpop.f32.mrb[0].mxu0
  %v3420 = vadd.f32 0.0, %v3419
  %v3421 = vpop.f32.mrb[0].mxu0
  %3422 = vdwg.mxu0
  %vm3423 = vcmask 64512
  %v3425 = vsel %vm3423, %v3338, 0
  %3427 = vmatprep.subr.mxu0 0.0
  %3428 = vmatpush1.msra.mxu0 %v3340
  %3429 = vmatprep.subr.mxu0 0.0
  %3430 = vmatpush1.msra.mxu0 0.0
  %3431 = vmatprep.subr.mxu0 0.0
  %3432 = vmatpush1.msra.mxu0 0.0
  %3433 = vmatprep.subr.mxu0 0.0
  %3434 = vmatpush1.msra.mxu0 0.0
  %3435 = vmatprep.subr.mxu0 0.0
  %3436 = vmatpush1.msra.mxu0 0.0
  %3437 = vmatprep.subr.mxu0 0.0
  %3438 = vmatpush1.msra.mxu0 0.0
  %3439 = vmatprep.subr.mxu0 0.0
  %3440 = vmatpush1.msra.mxu0 0.0
  %3441 = vmatprep.subr.mxu0 0.0
  %3442 = vmatpush1.msra.mxu0 0.0
  %3443 = vmatprep.subr.mxu0 0.0
  %3444 = vmatpush1.msra.mxu0 0.0
  %3445 = vmatprep.subr.mxu0 0.0
  %3446 = vmatpush1.msra.mxu0 0.0
  %3447 = vmatprep.subr.mxu0 0.0
  %3448 = vmatpush1.msra.mxu0 0.0
  %3449 = vmatprep.subr.mxu0 0.0
  %3450 = vmatpush1.msra.mxu0 0.0
  %3451 = vmatprep.subr.mxu0 0.0
  %3452 = vmatpush1.msra.mxu0 0.0
  %3453 = vmatprep.subr.mxu0 0.0
  %3454 = vmatpush1.msra.mxu0 0.0
  %3455 = vmatprep.subr.mxu0 0.0
  %3456 = vmatpush1.msra.mxu0 0.0
  %3457 = vmatprep.subr.mxu0 0.0
  %3458 = vmatpush1.msra.mxu0 0.0
  %3459 = vmatprep.subr.mxu0 0.0
  %3460 = vmatpush1.msra.mxu0 0.0
  %3461 = vmatprep.subr.mxu0 0.0
  %3462 = vmatpush1.msra.mxu0 0.0
  %3463 = vmatprep.subr.mxu0 0.0
  %3464 = vmatpush1.msra.mxu0 0.0
  %3465 = vmatprep.subr.mxu0 0.0
  %3466 = vmatpush1.msra.mxu0 0.0
  %3467 = vmatprep.subr.mxu0 0.0
  %3468 = vmatpush1.msra.mxu0 0.0
  %3469 = vmatprep.subr.mxu0 0.0
  %3470 = vmatpush1.msra.mxu0 0.0
  %3471 = vmatprep.subr.mxu0 0.0
  %3472 = vmatpush1.msra.mxu0 0.0
  %3473 = vmatprep.subr.mxu0 0.0
  %3474 = vmatpush1.msra.mxu0 0.0
  %3475 = vmatprep.subr.mxu0 0.0
  %3476 = vmatpush1.msra.mxu0 0.0
  %3477 = vmatprep.subr.mxu0 0.0
  %3478 = vmatpush1.msra.mxu0 0.0
  %3479 = vmatprep.subr.mxu0 0.0
  %3480 = vmatpush1.msra.mxu0 0.0
  %3481 = vmatprep.subr.mxu0 0.0
  %3482 = vmatpush1.msra.mxu0 0.0
  %3483 = vmatprep.subr.mxu0 0.0
  %3484 = vmatpush1.msra.mxu0 0.0
  %3485 = vmatprep.subr.mxu0 0.0
  %3486 = vmatpush1.msra.mxu0 0.0
  %3487 = vmatprep.subr.mxu0 0.0
  %3488 = vmatpush1.msra.mxu0 0.0
  %3489 = vmatprep.subr.mxu0 0.0
  %3490 = vmatpush1.msra.mxu0 0.0
  %3491 = vmatprep.mubr.f32.mxu0 0.0
  %3492 = vmatmul.mubr.f32.gmra.mrb[0].mxu0 %v3425
  %v3493 = vpop.f32.mrb[0].mxu0
  %v3494 = vadd.f32 %v3420, %v3493
  %v3495 = vpop.f32.mrb[0].mxu0
  %3496 = vdwg.mxu0
  %v3497 = vld [vmem:[%s10] sm:$0x1]
  %v3499 = vlaneseq
  %v3500 = vshrl.u32 %v3499, 7
  %v3501 = vsub.s32 0, %v3500
  %v3502 = vrot.slane %v3497, %v3501
  %v3504 = vadd.f32 %v3494, %v3502
  %v3505 = vmax.f32 %v3504, 0.0
  %v3506 = vld [vmem:[%s11] sm:$0xff]
  %v3507 = vld [vmem:[%s11 + $0x8] sm:$0xff]
  %v3508 = vld [vmem:[%s11 + $0x10] sm:$0xff]
  %v3509 = vld [vmem:[%s11 + $0x18] sm:$0xff]
  %v3510 = vld [vmem:[%s11 + $0x20] sm:$0xff]
  %v3511 = vld [vmem:[%s11 + $0x28] sm:$0xff]
  %v3512 = vld [vmem:[%s11 + $0x30] sm:$0xff]
  %v3513 = vld [vmem:[%s11 + $0x38] sm:$0xff]
  %v3514 = vld [vmem:[%s12] sm:$0x1]
  %v3516 = vlaneseq
  %v3517 = vshrl.u32 %v3516, 7
  %v3518 = vsub.s32 0, %v3517
  %v3519 = vrot.slane %v3514, %v3518
  %v3522 = vsel %vm3349, %v3505, 0
  %3524 = vmatprep.subr.mxu0 0.0
  %3525 = vmatpush1.msra.mxu0 %v3506
  %3526 = vmatprep.subr.mxu0 0.0
  %3527 = vmatpush1.msra.mxu0 %v3507
  %3528 = vmatprep.subr.mxu0 0.0
  %3529 = vmatpush1.msra.mxu0 %v3508
  %3530 = vmatprep.subr.mxu0 0.0
  %3531 = vmatpush1.msra.mxu0 %v3509
  %3532 = vmatprep.subr.mxu0 0.0
  %3533 = vmatpush1.msra.mxu0 %v3510
  %3534 = vmatprep.subr.mxu0 0.0
  %3535 = vmatpush1.msra.mxu0 %v3511
  %3536 = vmatprep.subr.mxu0 0.0
  %3537 = vmatpush1.msra.mxu0 %v3512
  %3538 = vmatprep.subr.mxu0 0.0
  %3539 = vmatpush1.msra.mxu0 %v3513
  %3540 = vmatprep.subr.mxu0 0.0
  %3541 = vmatpush1.msra.mxu0 0.0
  %3542 = vmatprep.subr.mxu0 0.0
  %3543 = vmatpush1.msra.mxu0 0.0
  %3544 = vmatprep.subr.mxu0 0.0
  %3545 = vmatpush1.msra.mxu0 0.0
  %3546 = vmatprep.subr.mxu0 0.0
  %3547 = vmatpush1.msra.mxu0 0.0
  %3548 = vmatprep.subr.mxu0 0.0
  %3549 = vmatpush1.msra.mxu0 0.0
  %3550 = vmatprep.subr.mxu0 0.0
  %3551 = vmatpush1.msra.mxu0 0.0
  %3552 = vmatprep.subr.mxu0 0.0
  %3553 = vmatpush1.msra.mxu0 0.0
  %3554 = vmatprep.subr.mxu0 0.0
  %3555 = vmatpush1.msra.mxu0 0.0
  %3556 = vmatprep.subr.mxu0 0.0
  %3557 = vmatpush1.msra.mxu0 0.0
  %3558 = vmatprep.subr.mxu0 0.0
  %3559 = vmatpush1.msra.mxu0 0.0
  %3560 = vmatprep.subr.mxu0 0.0
  %3561 = vmatpush1.msra.mxu0 0.0
  %3562 = vmatprep.subr.mxu0 0.0
  %3563 = vmatpush1.msra.mxu0 0.0
  %3564 = vmatprep.subr.mxu0 0.0
  %3565 = vmatpush1.msra.mxu0 0.0
  %3566 = vmatprep.subr.mxu0 0.0
  %3567 = vmatpush1.msra.mxu0 0.0
  %3568 = vmatprep.subr.mxu0 0.0
  %3569 = vmatpush1.msra.mxu0 0.0
  %3570 = vmatprep.subr.mxu0 0.0
  %3571 = vmatpush1.msra.mxu0 0.0
  %3572 = vmatprep.subr.mxu0 0.0
  %3573 = vmatpush1.msra.mxu0 0.0
  %3574 = vmatprep.subr.mxu0 0.0
  %3575 = vmatpush1.msra.mxu0 0.0
  %3576 = vmatprep.subr.mxu0 0.0
  %3577 = vmatpush1.msra.mxu0 0.0
  %3578 = vmatprep.subr.mxu0 0.0
  %3579 = vmatpush1.msra.mxu0 0.0
  %3580 = vmatprep.subr.mxu0 0.0
  %3581 = vmatpush1.msra.mxu0 0.0
  %3582 = vmatprep.subr.mxu0 0.0
  %3583 = vmatpush1.msra.mxu0 0.0
  %3584 = vmatprep.subr.mxu0 0.0
  %3585 = vmatpush1.msra.mxu0 0.0
  %3586 = vmatprep.subr.mxu0 0.0
  %3587 = vmatpush1.msra.mxu0 0.0
  %3588 = vmatprep.mubr.f32.mxu0 0.0
  %3589 = vmatmul.mubr.f32.gmra.mrb[0].mxu0 %v3522
  %v3590 = vpop.f32.mrb[0].mxu0
  %v3591 = vadd.f32 %v3519, %v3590
  %v3592 = vpop.f32.mrb[0].mxu0
  %3593 = vdwg.mxu0
  %v3594 = vlaneseq
  %v3595 = vand.u32 %v3594, 127
  %vm3596 = vcmp.lt.s32.totalorder %v3595, 32
  %v3597 = vtanh.pop %v3591
  %v3598 = vmax.f32 %v3591, 0.0
  %v3599 = vsel %vm3596, %v3597, %v3598
  %v3600 = vld [vmem:[%s13] sm:$0xff]
  %v3601 = vld [vmem:[%s13 + $0x8] sm:$0xff]
  %v3602 = vld [vmem:[%s13 + $0x10] sm:$0xff]
  %v3603 = vld [vmem:[%s13 + $0x18] sm:$0xff]
  %v3604 = vld [vmem:[%s13 + $0x20] sm:$0xff]
  %v3605 = vld [vmem:[%s13 + $0x28] sm:$0xff]
  %v3606 = vld [vmem:[%s13 + $0x30] sm:$0xff]
  %v3607 = vld [vmem:[%s13 + $0x38] sm:$0xff]
  %v3608 = vld [vmem:[%s14] sm:$0x1]
  %v3610 = vlaneseq
  %v3611 = vshrl.u32 %v3610, 7
  %v3612 = vsub.s32 0, %v3611
  %v3613 = vrot.slane %v3608, %v3612
  %v3616 = vsel %vm3349, %v3599, 0
  %3618 = vmatprep.subr.mxu0 0.0
  %3619 = vmatpush1.msra.mxu0 %v3600
  %3620 = vmatprep.subr.mxu0 0.0
  %3621 = vmatpush1.msra.mxu0 %v3601
  %3622 = vmatprep.subr.mxu0 0.0
  %3623 = vmatpush1.msra.mxu0 %v3602
  %3624 = vmatprep.subr.mxu0 0.0
  %3625 = vmatpush1.msra.mxu0 %v3603
  %3626 = vmatprep.subr.mxu0 0.0
  %3627 = vmatpush1.msra.mxu0 %v3604
  %3628 = vmatprep.subr.mxu0 0.0
  %3629 = vmatpush1.msra.mxu0 %v3605
  %3630 = vmatprep.subr.mxu0 0.0
  %3631 = vmatpush1.msra.mxu0 %v3606
  %3632 = vmatprep.subr.mxu0 0.0
  %3633 = vmatpush1.msra.mxu0 %v3607
  %3634 = vmatprep.subr.mxu0 0.0
  %3635 = vmatpush1.msra.mxu0 0.0
  %3636 = vmatprep.subr.mxu0 0.0
  %3637 = vmatpush1.msra.mxu0 0.0
  %3638 = vmatprep.subr.mxu0 0.0
  %3639 = vmatpush1.msra.mxu0 0.0
  %3640 = vmatprep.subr.mxu0 0.0
  %3641 = vmatpush1.msra.mxu0 0.0
  %3642 = vmatprep.subr.mxu0 0.0
  %3643 = vmatpush1.msra.mxu0 0.0
  %3644 = vmatprep.subr.mxu0 0.0
  %3645 = vmatpush1.msra.mxu0 0.0
  %3646 = vmatprep.subr.mxu0 0.0
  %3647 = vmatpush1.msra.mxu0 0.0
  %3648 = vmatprep.subr.mxu0 0.0
  %3649 = vmatpush1.msra.mxu0 0.0
  %3650 = vmatprep.subr.mxu0 0.0
  %3651 = vmatpush1.msra.mxu0 0.0
  %3652 = vmatprep.subr.mxu0 0.0
  %3653 = vmatpush1.msra.mxu0 0.0
  %3654 = vmatprep.subr.mxu0 0.0
  %3655 = vmatpush1.msra.mxu0 0.0
  %3656 = vmatprep.subr.mxu0 0.0
  %3657 = vmatpush1.msra.mxu0 0.0
  %3658 = vmatprep.subr.mxu0 0.0
  %3659 = vmatpush1.msra.mxu0 0.0
  %3660 = vmatprep.subr.mxu0 0.0
  %3661 = vmatpush1.msra.mxu0 0.0
  %3662 = vmatprep.subr.mxu0 0.0
  %3663 = vmatpush1.msra.mxu0 0.0
  %3664 = vmatprep.subr.mxu0 0.0
  %3665 = vmatpush1.msra.mxu0 0.0
  %3666 = vmatprep.subr.mxu0 0.0
  %3667 = vmatpush1.msra.mxu0 0.0
  %3668 = vmatprep.subr.mxu0 0.0
  %3669 = vmatpush1.msra.mxu0 0.0
  %3670 = vmatprep.subr.mxu0 0.0
  %3671 = vmatpush1.msra.mxu0 0.0
  %3672 = vmatprep.subr.mxu0 0.0
  %3673 = vmatpush1.msra.mxu0 0.0
  %3674 = vmatprep.subr.mxu0 0.0
  %3675 = vmatpush1.msra.mxu0 0.0
  %3676 = vmatprep.subr.mxu0 0.0
  %3677 = vmatpush1.msra.mxu0 0.0
  %3678 = vmatprep.subr.mxu0 0.0
  %3679 = vmatpush1.msra.mxu0 0.0
  %3680 = vmatprep.subr.mxu0 0.0
  %3681 = vmatpush1.msra.mxu0 0.0
  %3682 = vmatprep.mubr.f32.mxu0 0.0
  %3683 = vmatmul.mubr.f32.gmra.mrb[0].mxu0 %v3616
  %v3684 = vpop.f32.mrb[0].mxu0
  %v3685 = vadd.f32 %v3613, %v3684
  %v3686 = vpop.f32.mrb[0].mxu0
  %3687 = vdwg.mxu0
  %vm3688 = vcmp.lt.s32.totalorder %v3595, 6
  %v3689 = vsel %vm3688, %v3685, -inf
  %vm3690 = vcmask 1041408
  %v3691 = vsel %vm3690, %v3689, -inf
  %3692 = vmax.xlane.f32.xlu0 %v3691
  %v3693 = vpop.xlane.xlu0 %3692
  %v3694 = vsub.f32 %v3689, %v3693
  %v3695 = vmul.f32 %v3694, 1.442695
  %v3696 = vpow.pop %v3695
  %v3697 = vsel %vm3690, %v3696, 0.0
  %3698 = vadd.xlane.f32.xlu0 %v3697
  %v3699 = vpop.xlane.xlu0 %3698
  %v3700 = vrcp.pop %v3699
  %v3701 = vmul.f32 %v3696, %v3700
  %vm3702 = vcmp.eq.s32.totalorder %v3595, 6
  %v3703 = vsel %vm3702, %v3685, 0.0
  %v3704 = vsel %vm3688, %v3701, %v3703
  %3705 = vst [vmem:[%s15] sm:$0x3] %v3704
  // Predicated region
  $region62: #{forward.1} parent=0 // pred_check
    _
  $region63: #{forward.1} parent=0 // pred_check_branch
    %3707 = sbr.rel (0) target = $region65
  $region64: #{forward.1} parent=0 // pred_region
    _
  $region65: #{forward.1} parent=0 // pred_fallthru
    _
  // Predicated region
  $region66: #{forward.1} parent=0 // pred_check
    _
  $region67: #{forward.1} parent=0 // pred_check_branch
    %3709 = sbr.rel (0) target = $region69
  $region68: #{forward.1} parent=0 // pred_region
    _
  $region69: #{forward.1} parent=0 // pred_fallthru
    _

</llo_original>
